<compile_context>
chip_gen: v6e
topology: v6e:2x2x1
jax: 0.10.0
libtpu: 0.0.40
codegen_flags: <defaults>
</compile_context>

<pallas_src>
import functools

import jax
import jax.numpy as jnp
from jax.experimental import pallas as pl
from jax.experimental.pallas import tpu as pltpu


HIDDEN = 400          # logical width of the type==1 network
H_PAD = 512           # padded width (multiple of 128 -> clean MXU tiles)
LANE = 128


def _round_up(n, m):
    return ((n + m - 1) // m) * m


# ----------------------------------------------------------------------------- #
# Kernel
# ----------------------------------------------------------------------------- #
def _mlp_kernel(x_ref, w1_ref, wmid_ref, w5_ref, bh_ref, b5_ref, out_ref):
    """Fused 5-layer MLP forward on one batch tile.

    x_ref   : [TB, D_in_pad]      bf16
    w1_ref  : [D_in_pad, H_PAD]   bf16
    wmid_ref: [3, H_PAD, H_PAD]   bf16   (layers 2..4)
    w5_ref  : [H_PAD, D_out_pad]  bf16
    bh_ref  : [4, 1, H_PAD]       f32    (biases of layers 1..4)
    b5_ref  : [1, D_out_pad]      f32
    out_ref : [TB, D_out_pad]     f32
    """
    # Layer 1: Linear + ReLU (bf16 MXU operands, f32 accumulation / VPU math).
    h = jnp.dot(x_ref[...], w1_ref[...], preferred_element_type=jnp.float32)
    h = jnp.maximum(h + bh_ref[0], 0.0).astype(jnp.bfloat16)

    # Layers 2-4: Linear + ReLU (static unroll over the packed weight stack).
    for k in range(3):
        h = jnp.dot(h, wmid_ref[k], preferred_element_type=jnp.float32)
        h = jnp.maximum(h + bh_ref[k + 1], 0.0).astype(jnp.bfloat16)

    # Layer 5: Linear (no activation).
    out = jnp.dot(h, w5_ref[...], preferred_element_type=jnp.float32) + b5_ref[...]
    out_ref[...] = out.astype(out_ref.dtype)


# ----------------------------------------------------------------------------- #
# Wrapper
# ----------------------------------------------------------------------------- #
@functools.partial(jax.jit, static_argnames=("d_out", "block_b"))
def ff_network_forward(x, packed, *, d_out, block_b=128):
    """x: [B, D_in] f32 (or bf16).  packed: output of pack_params().
    Returns [B, d_out] f32."""
    w1, wmid, w5, bh, b5 = packed
    b, d_in = x.shape
    d_in_pad = w1.shape[0]
    d_out_pad = w5.shape[1]
    h_pad = w1.shape[1]

    # Pad batch to the tile size and features to the padded input width.
    b_pad = _round_up(b, block_b)
    x_p = jnp.zeros((b_pad, d_in_pad), jnp.bfloat16)
    x_p = x_p.at[:b, :d_in].set(x.astype(jnp.bfloat16))

    grid = (b_pad // block_b,)

    out = pl.pallas_call(
        _mlp_kernel,
        out_shape=jax.ShapeDtypeStruct((b_pad, d_out_pad), jnp.float32),
        grid=grid,
        in_specs=[
            # Activations: tiled along the batch grid axis.
            pl.BlockSpec((block_b, d_in_pad), lambda i: (i, 0)),
            # Weights / biases: constant index maps -> loaded once, VMEM-resident.
            pl.BlockSpec((d_in_pad, h_pad), lambda i: (0, 0)),
            pl.BlockSpec((3, h_pad, h_pad), lambda i: (0, 0, 0)),
            pl.BlockSpec((h_pad, d_out_pad), lambda i: (0, 0)),
            pl.BlockSpec((4, 1, h_pad), lambda i: (0, 0, 0)),
            pl.BlockSpec((1, d_out_pad), lambda i: (0, 0)),
        ],
        out_specs=pl.BlockSpec((block_b, d_out_pad), lambda i: (i, 0)),
        compiler_params=pltpu.CompilerParams(
            dimension_semantics=("parallel",),
        ),
    )(x_p, w1, wmid, w5, bh, b5)

    return out[:b, :d_out]


# ----------------------------------------------------------------------------- #
# Parameter helpers
# ----------------------------------------------------------------------------- #
def init_params(key, d_in, d_out, hidden=HIDDEN):
    """Deterministic init mimicking PyTorch nn.Linear default:
    U(-1/sqrt(fan_in), 1/sqrt(fan_in)). Weights stored as [in, out] (= W_pt.T)."""
    dims = [(d_in, hidden), (hidden, hidden), (hidden, hidden),
            (hidden, hidden), (hidden, d_out)]
    params = []
    for i, (fi, fo) in enumerate(dims):
        kw, kb = jax.random.split(jax.random.fold_in(key, i))
        bound = 1.0 / jnp.sqrt(jnp.float32(fi))
        w = jax.random.uniform(kw, (fi, fo), jnp.float32, -bound, bound)
        bvec = jax.random.uniform(kb, (1, fo), jnp.float32, -bound, bound)
        params += [w, bvec]
    return params


def pack_params(params, d_in, d_out, hidden=HIDDEN, hidden_pad=H_PAD):
    """Zero-pad to MXU-friendly shapes, pack into 5 arrays, cast weights to bf16."""
    d_in_pad = _round_up(d_in, LANE)
    d_out_pad = _round_up(d_out, LANE)

    w1 = jnp.zeros((d_in_pad, hidden_pad), jnp.float32)
    w1 = w1.at[:d_in, :hidden].set(params[0])

    wmid = jnp.zeros((3, hidden_pad, hidden_pad), jnp.float32)
    for k in range(3):
        wmid = wmid.at[k, :hidden, :hidden].set(params[2 + 2 * k])

    w5 = jnp.zeros((hidden_pad, d_out_pad), jnp.float32)
    w5 = w5.at[:hidden, :d_out].set(params[8])

    bh = jnp.zeros((4, 1, hidden_pad), jnp.float32)
    for k in range(4):
        bh = bh.at[k, 0, :hidden].set(params[1 + 2 * k].reshape(-1))

    b5 = jnp.zeros((1, d_out_pad), jnp.float32)
    b5 = b5.at[0, :d_out].set(params[9].reshape(-1))

    return (w1.astype(jnp.bfloat16),
            wmid.astype(jnp.bfloat16),
            w5.astype(jnp.bfloat16),
            bh, b5)


def reference_forward(x, packed, d_out):
    """Pure-JAX reference using exactly the kernel's numerics
    (bf16 matmul operands, f32 accumulation, f32 bias/ReLU)."""
    w1, wmid, w5, bh, b5 = packed
    b, d_in = x.shape
    d_in_pad = w1.shape[0]
    xp = jnp.zeros((b, d_in_pad), jnp.bfloat16).at[:, :d_in].set(x.astype(jnp.bfloat16))

    h = jnp.dot(xp, w1, preferred_element_type=jnp.float32)
    h = jnp.maximum(h + bh[0], 0.0).astype(jnp.bfloat16)
    for k in range(3):
        h = jnp.dot(h, wmid[k], preferred_element_type=jnp.float32)
        h = jnp.maximum(h + bh[k + 1], 0.0).astype(jnp.bfloat16)
    out = jnp.dot(h, w5, preferred_element_type=jnp.float32) + b5
    return out[:, :d_out]


# ----------------------------------------------------------------------------- #
# Demo / self-test
# ----------------------------------------------------------------------------- #
if __name__ == "__main__":
    key = jax.random.PRNGKey(0)
    batch, d_in, d_out = 200, 32, 10   # batch pads to 256 -> grid of 2 tiles

    k_x, k_p = jax.random.split(key)
    x = jax.random.normal(k_x, (batch, d_in), jnp.float32)
    params = init_params(k_p, d_in, d_out)
    packed = pack_params(params, d_in, d_out)

    out = ff_network_forward(x, packed, d_out=d_out)
    out = jax.block_until_ready(out)

    ref = reference_forward(x, packed, d_out)
    assert out.shape == (batch, d_out)
    assert jnp.allclose(out, ref, atol=1e-2, rtol=1e-2)

    print("KERNEL_OK")
</pallas_src>

<mosaic_0001>
module attributes {stable_mosaic.version = 11 : i64} {
  func.func @_mlp_kernel(%arg0: i32, %arg1: memref<128x128xbf16, #tpu.memory_space<vmem>>, %arg2: memref<128x512xbf16, #tpu.memory_space<vmem>>, %arg3: memref<3x512x512xbf16, #tpu.memory_space<vmem>>, %arg4: memref<512x128xbf16, #tpu.memory_space<vmem>>, %arg5: memref<4x1x512xf32, #tpu.memory_space<vmem>>, %arg6: memref<1x128xf32, #tpu.memory_space<vmem>>, %arg7: memref<128x128xf32, #tpu.memory_space<vmem>>) attributes {dimension_semantics = [#tpu.dimension_semantics<parallel>], iteration_bounds = array<i64: 2>, scalar_prefetch = 0 : i64, scratch_operands = 0 : i64, tpu.core_type = #tpu.core_type<tc>, window_params = [{transform_indices = @transform_0, window_bounds = array<i64: 128, 128>}, {pipeline_mode = #tpu.pipeline_mode<synchronous>, transform_indices = @transform_1, window_bounds = array<i64: 128, 512>}, {pipeline_mode = #tpu.pipeline_mode<synchronous>, transform_indices = @transform_2, window_bounds = array<i64: 3, 512, 512>}, {pipeline_mode = #tpu.pipeline_mode<synchronous>, transform_indices = @transform_3, window_bounds = array<i64: 512, 128>}, {pipeline_mode = #tpu.pipeline_mode<synchronous>, transform_indices = @transform_4, window_bounds = array<i64: 4, 1, 512>}, {pipeline_mode = #tpu.pipeline_mode<synchronous>, transform_indices = @transform_5, window_bounds = array<i64: 1, 128>}, {transform_indices = @transform_6, window_bounds = array<i64: 128, 128>}]} {
    %c0 = arith.constant 0 : index
    %c0_0 = arith.constant 0 : index
    %0 = vector.load %arg1[%c0, %c0_0] : memref<128x128xbf16, #tpu.memory_space<vmem>>, vector<128x128xbf16>
    %c0_1 = arith.constant 0 : index
    %c0_2 = arith.constant 0 : index
    %1 = vector.load %arg2[%c0_1, %c0_2] : memref<128x512xbf16, #tpu.memory_space<vmem>>, vector<128x512xbf16>
    %cst = arith.constant dense<0.000000e+00> : vector<128x512xf32>
    %2 = tpu.matmul %0, %1, %cst {dimension_numbers = #tpu.dot_dimension_numbers<[1], [0], [0], [1], [0, 0, 1, 1], [], []>} : vector<128x128xbf16>, vector<128x512xbf16>, vector<128x512xf32> -> vector<128x512xf32>
    %c0_3 = arith.constant 0 : index
    %c0_4 = arith.constant 0 : index
    %c0_5 = arith.constant 0 : index
    %3 = vector.load %arg5[%c0_3, %c0_4, %c0_5] : memref<4x1x512xf32, #tpu.memory_space<vmem>>, vector<1x1x512xf32>
    %4 = vector.shape_cast %3 : vector<1x1x512xf32> to vector<1x512xf32>
    %5 = vector.broadcast %4 : vector<1x512xf32> to vector<128x512xf32>
    %6 = arith.addf %2, %5 : vector<128x512xf32>
    %cst_6 = arith.constant 0.000000e+00 : f32
    %7 = vector.broadcast %cst_6 : f32 to vector<128x512xf32>
    %8 = arith.maximumf %6, %7 : vector<128x512xf32>
    %9 = arith.truncf %8 : vector<128x512xf32> to vector<128x512xbf16>
    %c0_7 = arith.constant 0 : index
    %c0_8 = arith.constant 0 : index
    %c0_9 = arith.constant 0 : index
    %10 = vector.load %arg3[%c0_7, %c0_8, %c0_9] : memref<3x512x512xbf16, #tpu.memory_space<vmem>>, vector<1x512x512xbf16>
    %11 = vector.shape_cast %10 : vector<1x512x512xbf16> to vector<512x512xbf16>
    %cst_10 = arith.constant dense<0.000000e+00> : vector<128x512xf32>
    %12 = tpu.matmul %9, %11, %cst_10 {dimension_numbers = #tpu.dot_dimension_numbers<[1], [0], [0], [1], [0, 0, 1, 1], [], []>} : vector<128x512xbf16>, vector<512x512xbf16>, vector<128x512xf32> -> vector<128x512xf32>
    %c1 = arith.constant 1 : index
    %c0_11 = arith.constant 0 : index
    %c0_12 = arith.constant 0 : index
    %13 = vector.load %arg5[%c1, %c0_11, %c0_12] : memref<4x1x512xf32, #tpu.memory_space<vmem>>, vector<1x1x512xf32>
    %14 = vector.shape_cast %13 : vector<1x1x512xf32> to vector<1x512xf32>
    %15 = vector.broadcast %14 : vector<1x512xf32> to vector<128x512xf32>
    %16 = arith.addf %12, %15 : vector<128x512xf32>
    %cst_13 = arith.constant 0.000000e+00 : f32
    %17 = vector.broadcast %cst_13 : f32 to vector<128x512xf32>
    %18 = arith.maximumf %16, %17 : vector<128x512xf32>
    %19 = arith.truncf %18 : vector<128x512xf32> to vector<128x512xbf16>
    %c1_14 = arith.constant 1 : index
    %c0_15 = arith.constant 0 : index
    %c0_16 = arith.constant 0 : index
    %20 = vector.load %arg3[%c1_14, %c0_15, %c0_16] : memref<3x512x512xbf16, #tpu.memory_space<vmem>>, vector<1x512x512xbf16>
    %21 = vector.shape_cast %20 : vector<1x512x512xbf16> to vector<512x512xbf16>
    %cst_17 = arith.constant dense<0.000000e+00> : vector<128x512xf32>
    %22 = tpu.matmul %19, %21, %cst_17 {dimension_numbers = #tpu.dot_dimension_numbers<[1], [0], [0], [1], [0, 0, 1, 1], [], []>} : vector<128x512xbf16>, vector<512x512xbf16>, vector<128x512xf32> -> vector<128x512xf32>
    %c2 = arith.constant 2 : index
    %c0_18 = arith.constant 0 : index
    %c0_19 = arith.constant 0 : index
    %23 = vector.load %arg5[%c2, %c0_18, %c0_19] : memref<4x1x512xf32, #tpu.memory_space<vmem>>, vector<1x1x512xf32>
    %24 = vector.shape_cast %23 : vector<1x1x512xf32> to vector<1x512xf32>
    %25 = vector.broadcast %24 : vector<1x512xf32> to vector<128x512xf32>
    %26 = arith.addf %22, %25 : vector<128x512xf32>
    %cst_20 = arith.constant 0.000000e+00 : f32
    %27 = vector.broadcast %cst_20 : f32 to vector<128x512xf32>
    %28 = arith.maximumf %26, %27 : vector<128x512xf32>
    %29 = arith.truncf %28 : vector<128x512xf32> to vector<128x512xbf16>
    %c2_21 = arith.constant 2 : index
    %c0_22 = arith.constant 0 : index
    %c0_23 = arith.constant 0 : index
    %30 = vector.load %arg3[%c2_21, %c0_22, %c0_23] : memref<3x512x512xbf16, #tpu.memory_space<vmem>>, vector<1x512x512xbf16>
    %31 = vector.shape_cast %30 : vector<1x512x512xbf16> to vector<512x512xbf16>
    %cst_24 = arith.constant dense<0.000000e+00> : vector<128x512xf32>
    %32 = tpu.matmul %29, %31, %cst_24 {dimension_numbers = #tpu.dot_dimension_numbers<[1], [0], [0], [1], [0, 0, 1, 1], [], []>} : vector<128x512xbf16>, vector<512x512xbf16>, vector<128x512xf32> -> vector<128x512xf32>
    %c3 = arith.constant 3 : index
    %c0_25 = arith.constant 0 : index
    %c0_26 = arith.constant 0 : index
    %33 = vector.load %arg5[%c3, %c0_25, %c0_26] : memref<4x1x512xf32, #tpu.memory_space<vmem>>, vector<1x1x512xf32>
    %34 = vector.shape_cast %33 : vector<1x1x512xf32> to vector<1x512xf32>
    %35 = vector.broadcast %34 : vector<1x512xf32> to vector<128x512xf32>
    %36 = arith.addf %32, %35 : vector<128x512xf32>
    %cst_27 = arith.constant 0.000000e+00 : f32
    %37 = vector.broadcast %cst_27 : f32 to vector<128x512xf32>
    %38 = arith.maximumf %36, %37 : vector<128x512xf32>
    %39 = arith.truncf %38 : vector<128x512xf32> to vector<128x512xbf16>
    %c0_28 = arith.constant 0 : index
    %c0_29 = arith.constant 0 : index
    %40 = vector.load %arg4[%c0_28, %c0_29] : memref<512x128xbf16, #tpu.memory_space<vmem>>, vector<512x128xbf16>
    %cst_30 = arith.constant dense<0.000000e+00> : vector<128x128xf32>
    %41 = tpu.matmul %39, %40, %cst_30 {dimension_numbers = #tpu.dot_dimension_numbers<[1], [0], [0], [1], [0, 0, 1, 1], [], []>} : vector<128x512xbf16>, vector<512x128xbf16>, vector<128x128xf32> -> vector<128x128xf32>
    %c0_31 = arith.constant 0 : index
    %c0_32 = arith.constant 0 : index
    %42 = vector.load %arg6[%c0_31, %c0_32] : memref<1x128xf32, #tpu.memory_space<vmem>>, vector<1x128xf32>
    %43 = vector.broadcast %42 : vector<1x128xf32> to vector<128x128xf32>
    %44 = arith.addf %41, %43 : vector<128x128xf32>
    %c0_33 = arith.constant 0 : index
    %c0_34 = arith.constant 0 : index
    %45 = vector.load %arg7[%c0_33, %c0_34] : memref<128x128xf32, #tpu.memory_space<vmem>>, vector<128x128xf32>
    tpu.vector_store %arg7[%c0_33, %c0_34], %44 {strides = array<i32>} : memref<128x128xf32, #tpu.memory_space<vmem>>, vector<128x128xf32>,
    return
  }
  func.func @transform_0(%arg0: i32) -> (i32, i32) {
    %c0_i32 = arith.constant 0 : i32
    %c0_i32_0 = arith.constant 0 : i32
    return %arg0, %c0_i32 : i32, i32
  }
  func.func @transform_1(%arg0: i32) -> (i32, i32) {
    %c0_i32 = arith.constant 0 : i32
    %c0_i32_0 = arith.constant 0 : i32
    %c0_i32_1 = arith.constant 0 : i32
    return %c0_i32, %c0_i32_0 : i32, i32
  }
  func.func @transform_2(%arg0: i32) -> (i32, i32, i32) {
    %c0_i32 = arith.constant 0 : i32
    %c0_i32_0 = arith.constant 0 : i32
    %c0_i32_1 = arith.constant 0 : i32
    %c0_i32_2 = arith.constant 0 : i32
    return %c0_i32, %c0_i32_0, %c0_i32_1 : i32, i32, i32
  }
  func.func @transform_3(%arg0: i32) -> (i32, i32) {
    %c0_i32 = arith.constant 0 : i32
    %c0_i32_0 = arith.constant 0 : i32
    %c0_i32_1 = arith.constant 0 : i32
    return %c0_i32, %c0_i32_0 : i32, i32
  }
  func.func @transform_4(%arg0: i32) -> (i32, i32, i32) {
    %c0_i32 = arith.constant 0 : i32
    %c0_i32_0 = arith.constant 0 : i32
    %c0_i32_1 = arith.constant 0 : i32
    %c0_i32_2 = arith.constant 0 : i32
    return %c0_i32, %c0_i32_0, %c0_i32_1 : i32, i32, i32
  }
  func.func @transform_5(%arg0: i32) -> (i32, i32) {
    %c0_i32 = arith.constant 0 : i32
    %c0_i32_0 = arith.constant 0 : i32
    %c0_i32_1 = arith.constant 0 : i32
    return %c0_i32, %c0_i32_0 : i32, i32
  }
  func.func @transform_6(%arg0: i32) -> (i32, i32) {
    %c0_i32 = arith.constant 0 : i32
    %c0_i32_0 = arith.constant 0 : i32
    return %arg0, %c0_i32 : i32, i32
  }
}

</mosaic_0001>

<llo_original>
// kernel: ff_network_forward.1
$region0: #{ff_network_forward.1}
  #allocation0 [shape = 'u32[]', space=smem, size = 0x4, offset = 0x4, fixed_abs, tag = 'smem constant byte address 0x4 - core index']
  #allocation1 [shape = 'u32[144,128]{1,0:T(1,128)}', space=vmem, size = 0x12000, scoped, tag = 'internal scratch']
  %s0 = inlined_call_operand.vmem [shape: bf16[256,128], index: 0, kind: input, shape index: {}]
  %s1 = inlined_call_operand.hbm [shape: bf16[128,512], index: 1, kind: input, shape index: {}]
  %s2 = inlined_call_operand.hbm [shape: bf16[3,512,512], index: 2, kind: input, shape index: {}]
  %s3 = inlined_call_operand.hbm [shape: bf16[512,128], index: 3, kind: input, shape index: {}]
  %s4 = inlined_call_operand.hbm [shape: f32[4,1,512], index: 4, kind: input, shape index: {}]
  %s5 = inlined_call_operand.hbm [shape: f32[1,128], index: 5, kind: input, shape index: {}]
  %s6 = inlined_call_operand.vmem [shape: f32[256,128], index: 6, kind: output, shape index: {}]
  %s7 = sld [smem:[#allocation0]]
  $region77: #{ff_network_forward.1} parent=0
    _
  %s9 = ssub.s32 1, %s7
  %s10 = scalar_select 0, %s9, %s7
  $region1: #{ff_network_forward.1} parent=0
    #allocation2 [shape = 'u8[131072]{0}', space=vmem, size = 0x20000, scoped, tag = 'input window, operand 1, single buffered']
    #allocation3 [shape = 's32[2]{0}', space=sflag, size = 0x8, scoped, tag = 'scoped memory for ff_network_forward.1']
    #allocation4 [shape = 'u8[1572864]{0}', space=vmem, size = 0x180000, scoped, tag = 'input window, operand 2, single buffered']
    #allocation5 [shape = 's32[1]{0}', space=sflag, size = 0x4, scoped, tag = 'scoped memory for ff_network_forward.1']
    #allocation6 [shape = 'u8[131072]{0}', space=vmem, size = 0x20000, scoped, tag = 'input window, operand 3, single buffered']
    #allocation7 [shape = 'u8[8192]{0}', space=vmem, size = 0x2000, scoped, tag = 'input window, operand 4, single buffered']
    #allocation8 [shape = 's32[1]{0}', space=sflag, size = 0x4, scoped, tag = 'scoped memory for ff_network_forward.1']
    #allocation9 [shape = 'u8[512]{0}', space=vmem, size = 0x400, scoped, tag = 'input window, operand 5, single buffered']
    %11 = vsyncpa [#allocation3], 0
    %12 = vsyncpa [#allocation5], 0
    %13 = vsyncpa [#allocation8], 0
    loop: start=0, step=1, limit=4
    $region2: #{ff_network_forward.1} parent=1 // loop_pre_header
      _
    $region3: #{ff_network_forward.1} parent=1 // loop_header
      %s15 = sphi 0, %s19
      %p16 = scmp.ge.s32.totalorder %s15, 4
      %s25 = sphi 0, %s27
      %s28 = sphi 0, %s25
      %s29 = sphi 0, %s28
      %s45 = sphi 0, %s29
      %s49 = sphi 0, %s49
      %s51 = sphi 0, %s49
      %s52 = sphi 0, %s51
      %s66 = sphi 0, %s52
      %s70 = sphi 0, %s70
      %s72 = sphi 0, %s70
      %s73 = sphi 0, %s72
      %s87 = sphi 0, %s73
      %s91 = sphi 0, %s91
      %s93 = sphi 0, %s91
      %s94 = sphi 0, %s93
      %s108 = sphi 0, %s94
      %s112 = sphi 0, %s112
      %s114 = sphi 0, %s112
      %s115 = sphi 0, %s114
      %s129 = sphi 0, %s115
      %s133 = sphi 0, %s133
      %s135 = sphi 0, %s133
      %s136 = sphi 0, %s135
      %s150 = sphi 0, %s136
      %s156 = sphi 0, %s158
      %s159 = sphi 0, %s156
      %s160 = sphi 0, %s159
      %s176 = sphi 0, %s160
    $region4: #{ff_network_forward.1} parent=1 // loop_header_branch
      %18 = sbr.rel (%p16) target = $region8
    $region5: #{ff_network_forward.1} parent=1 // loop_body
      %s20 = ssub.s32 %s15, 1
      %s21 = ssub.s32 %s15, 2
      %s22 = sadd.s32 %s15, 1
      %s23 = ssub.s32 %s15, %s22
      %p24 = scmp.eq.s32.totalorder %s23, 0
      %s26 = sadd.s32 %s25, 1
      %s27 = scalar_select %p24, %s25, %s26
      %p30 = pneg %p24
      %p31 = scmp.eq.s32.totalorder %s15, 1
      %p32 = por %p30, %p31
      %p33 = scmp.ne.s32.totalorder %s25, %s28
      %p34 = scmp.eq.s32.totalorder %s15, 0
      %p35 = por %p33, %p34
      %p36 = scmp.ne.s32.totalorder %s25, %s28
      %p37 = scmp.eq.s32.totalorder %s20, 1
      %p38 = por %p36, %p37
      %p39 = scmp.ne.s32.totalorder %s28, %s29
      %p40 = scmp.eq.s32.totalorder %s20, 0
      %p41 = por %p39, %p40
      %p42 = scmp.ne.s32.totalorder %s28, %s29
      %p43 = scmp.eq.s32.totalorder %s21, 1
      %p44 = por %p42, %p43
      %p46 = scmp.ne.s32.totalorder %s29, %s45
      %p47 = scmp.eq.s32.totalorder %s21, 0
      %p48 = por %p46, %p47
      %s50 = sadd.s32 %s49, 1
      %p53 = scmp.eq.s32.totalorder %s15, 1
      %p54 = scmp.ne.s32.totalorder %s49, %s51
      %p55 = scmp.eq.s32.totalorder %s15, 0
      %p56 = por %p54, %p55
      %p57 = scmp.ne.s32.totalorder %s49, %s51
      %p58 = scmp.eq.s32.totalorder %s20, 1
      %p59 = por %p57, %p58
      %p60 = scmp.ne.s32.totalorder %s51, %s52
      %p61 = scmp.eq.s32.totalorder %s20, 0
      %p62 = por %p60, %p61
      %p63 = scmp.ne.s32.totalorder %s51, %s52
      %p64 = scmp.eq.s32.totalorder %s21, 1
      %p65 = por %p63, %p64
      %p67 = scmp.ne.s32.totalorder %s52, %s66
      %p68 = scmp.eq.s32.totalorder %s21, 0
      %p69 = por %p67, %p68
      %s71 = sadd.s32 %s70, 1
      %p74 = scmp.eq.s32.totalorder %s15, 1
      %p75 = scmp.ne.s32.totalorder %s70, %s72
      %p76 = scmp.eq.s32.totalorder %s15, 0
      %p77 = por %p75, %p76
      %p78 = scmp.ne.s32.totalorder %s70, %s72
      %p79 = scmp.eq.s32.totalorder %s20, 1
      %p80 = por %p78, %p79
      %p81 = scmp.ne.s32.totalorder %s72, %s73
      %p82 = scmp.eq.s32.totalorder %s20, 0
      %p83 = por %p81, %p82
      %p84 = scmp.ne.s32.totalorder %s72, %s73
      %p85 = scmp.eq.s32.totalorder %s21, 1
      %p86 = por %p84, %p85
      %p88 = scmp.ne.s32.totalorder %s73, %s87
      %p89 = scmp.eq.s32.totalorder %s21, 0
      %p90 = por %p88, %p89
      %s92 = sadd.s32 %s91, 1
      %p95 = scmp.eq.s32.totalorder %s15, 1
      %p96 = scmp.ne.s32.totalorder %s91, %s93
      %p97 = scmp.eq.s32.totalorder %s15, 0
      %p98 = por %p96, %p97
      %p99 = scmp.ne.s32.totalorder %s91, %s93
      %p100 = scmp.eq.s32.totalorder %s20, 1
      %p101 = por %p99, %p100
      %p102 = scmp.ne.s32.totalorder %s93, %s94
      %p103 = scmp.eq.s32.totalorder %s20, 0
      %p104 = por %p102, %p103
      %p105 = scmp.ne.s32.totalorder %s93, %s94
      %p106 = scmp.eq.s32.totalorder %s21, 1
      %p107 = por %p105, %p106
      %p109 = scmp.ne.s32.totalorder %s94, %s108
      %p110 = scmp.eq.s32.totalorder %s21, 0
      %p111 = por %p109, %p110
      %s113 = sadd.s32 %s112, 1
      %p116 = scmp.eq.s32.totalorder %s15, 1
      %p117 = scmp.ne.s32.totalorder %s112, %s114
      %p118 = scmp.eq.s32.totalorder %s15, 0
      %p119 = por %p117, %p118
      %p120 = scmp.ne.s32.totalorder %s112, %s114
      %p121 = scmp.eq.s32.totalorder %s20, 1
      %p122 = por %p120, %p121
      %p123 = scmp.ne.s32.totalorder %s114, %s115
      %p124 = scmp.eq.s32.totalorder %s20, 0
      %p125 = por %p123, %p124
      %p126 = scmp.ne.s32.totalorder %s114, %s115
      %p127 = scmp.eq.s32.totalorder %s21, 1
      %p128 = por %p126, %p127
      %p130 = scmp.ne.s32.totalorder %s115, %s129
      %p131 = scmp.eq.s32.totalorder %s21, 0
      %p132 = por %p130, %p131
      %s134 = sadd.s32 %s133, 1
      %p137 = scmp.eq.s32.totalorder %s15, 1
      %p138 = scmp.ne.s32.totalorder %s133, %s135
      %p139 = scmp.eq.s32.totalorder %s15, 0
      %p140 = por %p138, %p139
      %p141 = scmp.ne.s32.totalorder %s133, %s135
      %p142 = scmp.eq.s32.totalorder %s20, 1
      %p143 = por %p141, %p142
      %p144 = scmp.ne.s32.totalorder %s135, %s136
      %p145 = scmp.eq.s32.totalorder %s20, 0
      %p146 = por %p144, %p145
      %p147 = scmp.ne.s32.totalorder %s135, %s136
      %p148 = scmp.eq.s32.totalorder %s21, 1
      %p149 = por %p147, %p148
      %p151 = scmp.ne.s32.totalorder %s136, %s150
      %p152 = scmp.eq.s32.totalorder %s21, 0
      %p153 = por %p151, %p152
      %s154 = ssub.s32 %s15, %s22
      %p155 = scmp.eq.s32.totalorder %s154, 0
      %s157 = sadd.s32 %s156, 1
      %s158 = scalar_select %p155, %s156, %s157
      %p161 = pneg %p155
      %p162 = scmp.eq.s32.totalorder %s15, 1
      %p163 = por %p161, %p162
      %p164 = scmp.ne.s32.totalorder %s156, %s159
      %p165 = scmp.eq.s32.totalorder %s15, 0
      %p166 = por %p164, %p165
      %p167 = scmp.ne.s32.totalorder %s156, %s159
      %p168 = scmp.eq.s32.totalorder %s20, 1
      %p169 = por %p167, %p168
      %p170 = scmp.ne.s32.totalorder %s159, %s160
      %p171 = scmp.eq.s32.totalorder %s20, 0
      %p172 = por %p170, %p171
      %p173 = scmp.ne.s32.totalorder %s159, %s160
      %p174 = scmp.eq.s32.totalorder %s21, 1
      %p175 = por %p173, %p174
      %p177 = scmp.ne.s32.totalorder %s160, %s176
      %p178 = scmp.eq.s32.totalorder %s21, 0
      %p179 = por %p177, %p178
      %p180 = scmp.le.s32.totalorder 1, %s15
      %p181 = scmp.lt.s32.totalorder %s15, 3
      %p182 = pnand %p180, %p181
      %p183 = pneg %p182
      // Predicated region
      $region9: #{ff_network_forward.1} parent=5 // pred_check
        _
      $region10: #{ff_network_forward.1} parent=5 // pred_check_branch
        %185 = sbr.rel (%p182) target = $region12
      $region11: #{ff_network_forward.1} parent=5 // pred_region
        %s186 = ssub.s32 %s15, 1
        // Predicated region
        $region13: #{ff_network_forward.1} parent=11 // pred_check
          %p187 = pneg %p62
        $region14: #{ff_network_forward.1} parent=11 // pred_check_branch
          %189 = sbr.rel (%p187) target = $region16
        $region15: #{ff_network_forward.1} parent=11 // pred_region
          %s191 = ssub.s32 4096, 4096
          %192 = vsyncadd [#allocation3], %s191
          %s193 = sshll.u32 [#allocation2], 4
          %s194 = int_to_ptr.vmem [resolvable:$true] %s193
          %199 = dma.hbm_to_vmem [thread:$0]  %s1, 4096, %s194, [#allocation3], 256, 256, 16
        $region16: #{ff_network_forward.1} parent=11 // pred_fallthru
          _
        // Predicated region
        $region17: #{ff_network_forward.1} parent=11 // pred_check
          %p200 = pneg %p83
        $region18: #{ff_network_forward.1} parent=11 // pred_check_branch
          %202 = sbr.rel (%p200) target = $region20
        $region19: #{ff_network_forward.1} parent=11 // pred_region
          %s204 = ssub.s32 49152, 49152
          %205 = vsyncadd [#allocation5], %s204
          %s206 = sshll.u32 [#allocation4], 4
          %s207 = int_to_ptr.vmem [resolvable:$true] %s206
          %212 = dma.hbm_to_vmem [thread:$0]  %s2, 49152, %s207, [#allocation5], 256, 256, 16
        $region20: #{ff_network_forward.1} parent=11 // pred_fallthru
          _
        // Predicated region
        $region21: #{ff_network_forward.1} parent=11 // pred_check
          %p213 = pneg %p104
        $region22: #{ff_network_forward.1} parent=11 // pred_check_branch
          %215 = sbr.rel (%p213) target = $region24
        $region23: #{ff_network_forward.1} parent=11 // pred_region
          %s217 = ssub.s32 4096, 4096
          %218 = vsyncadd [#allocation5], %s217
          %s219 = sshll.u32 [#allocation6], 4
          %s220 = int_to_ptr.vmem [resolvable:$true] %s219
          %225 = dma.hbm_to_vmem [thread:$0]  %s3, 4096, %s220, [#allocation5], 64, 64, 4
        $region24: #{ff_network_forward.1} parent=11 // pred_fallthru
          _
        // Predicated region
        $region25: #{ff_network_forward.1} parent=11 // pred_check
          %p226 = pneg %p125
        $region26: #{ff_network_forward.1} parent=11 // pred_check_branch
          %228 = sbr.rel (%p226) target = $region28
        $region27: #{ff_network_forward.1} parent=11 // pred_region
          %s230 = ssub.s32 256, 256
          %231 = vsyncadd [#allocation8], %s230
          %s232 = sshll.u32 [#allocation7], 4
          %s233 = int_to_ptr.vmem [resolvable:$true] %s232
          %238 = dma.hbm_to_vmem [thread:$0]  %s4, 256, %s233, [#allocation8], 64, 64, 4
        $region28: #{ff_network_forward.1} parent=11 // pred_fallthru
          _
        // Predicated region
        $region29: #{ff_network_forward.1} parent=11 // pred_check
          %p239 = pneg %p146
        $region30: #{ff_network_forward.1} parent=11 // pred_check_branch
          %241 = sbr.rel (%p239) target = $region32
        $region31: #{ff_network_forward.1} parent=11 // pred_region
          %s243 = ssub.s32 16, 16
          %244 = vsyncadd [#allocation8], %s243
          %s246 = sshll.u32 [#allocation9], 4
          %s247 = int_to_ptr.vmem [resolvable:$true] %s246
          %249 = dma.hbm_to_vmem [thread:$0]  %s5, 16, %s247, [#allocation8]
        $region32: #{ff_network_forward.1} parent=11 // pred_fallthru
          _
      $region12: #{ff_network_forward.1} parent=5 // pred_fallthru
        _
      %p250 = scmp.lt.s32.totalorder %s15, 2
      // Predicated region
      $region33: #{ff_network_forward.1} parent=5 // pred_check
        %p251 = pneg %p250
      $region34: #{ff_network_forward.1} parent=5 // pred_check_branch
        %253 = sbr.rel (%p251) target = $region36
      $region35: #{ff_network_forward.1} parent=5 // pred_region
        // Predicated region
        $region37: #{ff_network_forward.1} parent=35 // pred_check
          %p254 = pneg %p35
        $region38: #{ff_network_forward.1} parent=35 // pred_check_branch
          %256 = sbr.rel (%p254) target = $region40
        $region39: #{ff_network_forward.1} parent=35 // pred_region
          %s257 = smul.u32 16, %s15
          %p258 = scmp.lt.s32.totalorder %s257, 31
          %s259 = scalar_select %p258, %s257, 31
          %s260 = smul.addr %s259, 4
          %s261 = scalar_lea.vmem %s0, %s260
          %s262 = smul.u32 16, %s15
        $region40: #{ff_network_forward.1} parent=35 // pred_fallthru
          _
      $region36: #{ff_network_forward.1} parent=5 // pred_fallthru
        _
      %p263 = scmp.le.s32.totalorder 1, %s15
      %p264 = scmp.lt.s32.totalorder %s15, 3
      %p265 = pnand %p263, %p264
      %p266 = pneg %p265
      // Predicated region
      $region41: #{ff_network_forward.1} parent=5 // pred_check
        _
      $region42: #{ff_network_forward.1} parent=5 // pred_check_branch
        %268 = sbr.rel (%p265) target = $region44
      $region43: #{ff_network_forward.1} parent=5 // pred_region
        %s269 = ssub.s32 %s15, 1
        // Predicated region
        $region45: #{ff_network_forward.1} parent=43 // pred_check
          %p270 = pneg %p62
        $region46: #{ff_network_forward.1} parent=43 // pred_check_branch
          %272 = sbr.rel (%p270) target = $region48
        $region47: #{ff_network_forward.1} parent=43 // pred_region
          %273 = dma.done [#allocation3], 4096
        $region48: #{ff_network_forward.1} parent=43 // pred_fallthru
          _
        // Predicated region
        $region49: #{ff_network_forward.1} parent=43 // pred_check
          %p274 = pneg %p83
        $region50: #{ff_network_forward.1} parent=43 // pred_check_branch
          %276 = sbr.rel (%p274) target = $region52
        $region51: #{ff_network_forward.1} parent=43 // pred_region
          %277 = dma.done [#allocation5], 49152
        $region52: #{ff_network_forward.1} parent=43 // pred_fallthru
          _
        // Predicated region
        $region53: #{ff_network_forward.1} parent=43 // pred_check
          %p278 = pneg %p104
        $region54: #{ff_network_forward.1} parent=43 // pred_check_branch
          %280 = sbr.rel (%p278) target = $region56
        $region55: #{ff_network_forward.1} parent=43 // pred_region
          %281 = dma.done [#allocation5], 4096
        $region56: #{ff_network_forward.1} parent=43 // pred_fallthru
          _
        // Predicated region
        $region57: #{ff_network_forward.1} parent=43 // pred_check
          %p282 = pneg %p125
        $region58: #{ff_network_forward.1} parent=43 // pred_check_branch
          %284 = sbr.rel (%p282) target = $region60
        $region59: #{ff_network_forward.1} parent=43 // pred_region
          %285 = dma.done [#allocation8], 256
        $region60: #{ff_network_forward.1} parent=43 // pred_fallthru
          _
        // Predicated region
        $region61: #{ff_network_forward.1} parent=43 // pred_check
          %p286 = pneg %p146
        $region62: #{ff_network_forward.1} parent=43 // pred_check_branch
          %288 = sbr.rel (%p286) target = $region64
        $region63: #{ff_network_forward.1} parent=43 // pred_region
          %289 = dma.done [#allocation8], 16
        $region64: #{ff_network_forward.1} parent=43 // pred_fallthru
          _
        %s290 = smul.u32 16, %s20
        %p291 = scmp.lt.s32.totalorder %s290, 31
        %s292 = scalar_select %p291, %s290, 31
        %s293 = smul.addr %s292, 4
        %s294 = scalar_lea.vmem %s0, %s293
        %p295 = pneg %p41
        %p296 = pneg %p38
        %p297 = pneg %p62
        %p298 = pneg %p59
        %p299 = pneg %p83
        %p300 = pneg %p80
        %p301 = pneg %p104
        %p302 = pneg %p101
        %p303 = pneg %p125
        %p304 = pneg %p122
        %p305 = pneg %p146
        %p306 = pneg %p143
        %p307 = pneg %p172
        %p308 = pneg %p169
        %s309 = smul.u32 16, %s20
        %p310 = scmp.lt.s32.totalorder %s309, 31
        %s311 = scalar_select %p310, %s309, 31
        %s312 = smul.addr %s311, 8
        %s313 = scalar_lea.vmem %s6, %s312
        %s314 = smul.u32 16, %s20
        %p315 = scmp.lt.s32.totalorder %s314, 31
        %s316 = scalar_select %p315, %s314, 31
        %s317 = smul.addr %s316, 4
        %s318 = scalar_lea.vmem %s0, %s317
        %s319 = smul.u32 16, %s20
        %s320 = smul.u32 16, %s20
        %p321 = scmp.lt.s32.totalorder %s320, 31
        %s322 = scalar_select %p321, %s320, 31
        %s323 = smul.addr %s322, 8
        %s324 = scalar_lea.vmem %s6, %s323
        %s325 = smul.u32 16, %s20
        %v327 = vld [vmem:[%s318] sm:$0xf]
        %v328 = vld [vmem:[%s318 + $0x4] sm:$0xf]
        %v329 = vld [vmem:[%s318 + $0x8] sm:$0xf]
        %v330 = vld [vmem:[%s318 + $0xc] sm:$0xf]
        %v331 = vld [vmem:[%s318 + $0x10] sm:$0xf]
        %v332 = vld [vmem:[%s318 + $0x14] sm:$0xf]
        %v333 = vld [vmem:[%s318 + $0x18] sm:$0xf]
        %v334 = vld [vmem:[%s318 + $0x1c] sm:$0xf]
        %v335 = vld [vmem:[%s318 + $0x20] sm:$0xf]
        %v336 = vld [vmem:[%s318 + $0x24] sm:$0xf]
        %v337 = vld [vmem:[%s318 + $0x28] sm:$0xf]
        %v338 = vld [vmem:[%s318 + $0x2c] sm:$0xf]
        %v339 = vld [vmem:[%s318 + $0x30] sm:$0xf]
        %v340 = vld [vmem:[%s318 + $0x34] sm:$0xf]
        %v341 = vld [vmem:[%s318 + $0x38] sm:$0xf]
        %v342 = vld [vmem:[%s318 + $0x3c] sm:$0xf]
        %v343 = vld [vmem:[#allocation2] sm:$0xff]
        %v344 = vld [vmem:[#allocation2 + $0x8] sm:$0xff]
        %v345 = vld [vmem:[#allocation2 + $0x10] sm:$0xff]
        %v346 = vld [vmem:[#allocation2 + $0x18] sm:$0xff]
        %v347 = vld [vmem:[#allocation2 + $0x20] sm:$0xff]
        %v348 = vld [vmem:[#allocation2 + $0x28] sm:$0xff]
        %v349 = vld [vmem:[#allocation2 + $0x30] sm:$0xff]
        %v350 = vld [vmem:[#allocation2 + $0x38] sm:$0xff]
        %v351 = vld [vmem:[#allocation2 + $0x40] sm:$0xff]
        %v352 = vld [vmem:[#allocation2 + $0x48] sm:$0xff]
        %v353 = vld [vmem:[#allocation2 + $0x50] sm:$0xff]
        %v354 = vld [vmem:[#allocation2 + $0x58] sm:$0xff]
        %v355 = vld [vmem:[#allocation2 + $0x60] sm:$0xff]
        %v356 = vld [vmem:[#allocation2 + $0x68] sm:$0xff]
        %v357 = vld [vmem:[#allocation2 + $0x70] sm:$0xff]
        %v358 = vld [vmem:[#allocation2 + $0x78] sm:$0xff]
        %v359 = vld [vmem:[#allocation2 + $0x80] sm:$0xff]
        %v360 = vld [vmem:[#allocation2 + $0x88] sm:$0xff]
        %v361 = vld [vmem:[#allocation2 + $0x90] sm:$0xff]
        %v362 = vld [vmem:[#allocation2 + $0x98] sm:$0xff]
        %v363 = vld [vmem:[#allocation2 + $0xa0] sm:$0xff]
        %v364 = vld [vmem:[#allocation2 + $0xa8] sm:$0xff]
        %v365 = vld [vmem:[#allocation2 + $0xb0] sm:$0xff]
        %v366 = vld [vmem:[#allocation2 + $0xb8] sm:$0xff]
        %v367 = vld [vmem:[#allocation2 + $0xc0] sm:$0xff]
        %v368 = vld [vmem:[#allocation2 + $0xc8] sm:$0xff]
        %v369 = vld [vmem:[#allocation2 + $0xd0] sm:$0xff]
        %v370 = vld [vmem:[#allocation2 + $0xd8] sm:$0xff]
        %v371 = vld [vmem:[#allocation2 + $0xe0] sm:$0xff]
        %v372 = vld [vmem:[#allocation2 + $0xe8] sm:$0xff]
        %v373 = vld [vmem:[#allocation2 + $0xf0] sm:$0xff]
        %v374 = vld [vmem:[#allocation2 + $0xf8] sm:$0xff]
        %v375 = vld [vmem:[#allocation7] sm:$0xf]
        %v377 = vlaneseq
        %v378 = vshrl.u32 %v377, 7
        %v379 = vsub.s32 0, %v378
        %v380 = vrot.slane %v375, %v379
        %v381 = vlaneseq
        %v382 = vshrl.u32 %v381, 7
        %v383 = vsub.s32 1, %v382
        %v384 = vrot.slane %v375, %v383
        %v385 = vlaneseq
        %v386 = vshrl.u32 %v385, 7
        %v387 = vsub.s32 2, %v386
        %v388 = vrot.slane %v375, %v387
        %v389 = vlaneseq
        %v390 = vshrl.u32 %v389, 7
        %v391 = vsub.s32 3, %v390
        %v392 = vrot.slane %v375, %v391
        %v413 = vunpack.c.l.b16 %v327
        %v414 = vunpack.c.l.b16 %v328
        %v415 = vunpack.c.l.b16 %v329
        %v416 = vunpack.c.l.b16 %v330
        %v417 = vunpack.c.l.b16 %v331
        %v418 = vunpack.c.l.b16 %v332
        %v419 = vunpack.c.l.b16 %v333
        %v420 = vunpack.c.l.b16 %v334
        %v421 = vunpack.c.l.b16 %v335
        %v422 = vunpack.c.l.b16 %v336
        %v423 = vunpack.c.l.b16 %v337
        %v424 = vunpack.c.l.b16 %v338
        %v425 = vunpack.c.l.b16 %v339
        %v426 = vunpack.c.l.b16 %v340
        %v427 = vunpack.c.l.b16 %v341
        %v428 = vunpack.c.l.b16 %v342
        %v429 = vpack.c.b16 %v414, %v413
        %v430 = vpack.c.b16 %v416, %v415
        %v431 = vpack.c.b16 %v418, %v417
        %v432 = vpack.c.b16 %v420, %v419
        %v433 = vpack.c.b16 %v422, %v421
        %v434 = vpack.c.b16 %v424, %v423
        %v435 = vpack.c.b16 %v426, %v425
        %v436 = vpack.c.b16 %v428, %v427
        %v477 = vunpack.c.l.b16 %v343
        %v478 = vunpack.c.h.b16 %v343
        %v479 = vunpack.c.l.b16 %v344
        %v480 = vunpack.c.h.b16 %v344
        %v481 = vunpack.c.l.b16 %v345
        %v482 = vunpack.c.h.b16 %v345
        %v483 = vunpack.c.l.b16 %v346
        %v484 = vunpack.c.h.b16 %v346
        %v485 = vunpack.c.l.b16 %v347
        %v486 = vunpack.c.h.b16 %v347
        %v487 = vunpack.c.l.b16 %v348
        %v488 = vunpack.c.h.b16 %v348
        %v489 = vunpack.c.l.b16 %v349
        %v490 = vunpack.c.h.b16 %v349
        %v491 = vunpack.c.l.b16 %v350
        %v492 = vunpack.c.h.b16 %v350
        %v493 = vunpack.c.l.b16 %v351
        %v494 = vunpack.c.h.b16 %v351
        %v495 = vunpack.c.l.b16 %v352
        %v496 = vunpack.c.h.b16 %v352
        %v497 = vunpack.c.l.b16 %v353
        %v498 = vunpack.c.h.b16 %v353
        %v499 = vunpack.c.l.b16 %v354
        %v500 = vunpack.c.h.b16 %v354
        %v501 = vunpack.c.l.b16 %v355
        %v502 = vunpack.c.h.b16 %v355
        %v503 = vunpack.c.l.b16 %v356
        %v504 = vunpack.c.h.b16 %v356
        %v505 = vunpack.c.l.b16 %v357
        %v506 = vunpack.c.h.b16 %v357
        %v507 = vunpack.c.l.b16 %v358
        %v508 = vunpack.c.h.b16 %v358
        %v509 = vunpack.c.l.b16 %v359
        %v510 = vunpack.c.h.b16 %v359
        %v511 = vunpack.c.l.b16 %v360
        %v512 = vunpack.c.h.b16 %v360
        %v513 = vunpack.c.l.b16 %v361
        %v514 = vunpack.c.h.b16 %v361
        %v515 = vunpack.c.l.b16 %v362
        %v516 = vunpack.c.h.b16 %v362
        %v517 = vunpack.c.l.b16 %v363
        %v518 = vunpack.c.h.b16 %v363
        %v519 = vunpack.c.l.b16 %v364
        %v520 = vunpack.c.h.b16 %v364
        %v521 = vunpack.c.l.b16 %v365
        %v522 = vunpack.c.h.b16 %v365
        %v523 = vunpack.c.l.b16 %v366
        %v524 = vunpack.c.h.b16 %v366
        %v525 = vunpack.c.l.b16 %v367
        %v526 = vunpack.c.h.b16 %v367
        %v527 = vunpack.c.l.b16 %v368
        %v528 = vunpack.c.h.b16 %v368
        %v529 = vunpack.c.l.b16 %v369
        %v530 = vunpack.c.h.b16 %v369
        %v531 = vunpack.c.l.b16 %v370
        %v532 = vunpack.c.h.b16 %v370
        %v533 = vunpack.c.l.b16 %v371
        %v534 = vunpack.c.h.b16 %v371
        %v535 = vunpack.c.l.b16 %v372
        %v536 = vunpack.c.h.b16 %v372
        %v537 = vunpack.c.l.b16 %v373
        %v538 = vunpack.c.h.b16 %v373
        %v539 = vunpack.c.l.b16 %v374
        %v540 = vunpack.c.h.b16 %v374
        %v541 = vpack.c.b16 %v481, %v477
        %v542 = vpack.c.b16 %v482, %v478
        %v543 = vpack.c.b16 %v483, %v479
        %v544 = vpack.c.b16 %v484, %v480
        %v545 = vpack.c.b16 %v489, %v485
        %v546 = vpack.c.b16 %v490, %v486
        %v547 = vpack.c.b16 %v491, %v487
        %v548 = vpack.c.b16 %v492, %v488
        %v549 = vpack.c.b16 %v497, %v493
        %v550 = vpack.c.b16 %v498, %v494
        %v551 = vpack.c.b16 %v499, %v495
        %v552 = vpack.c.b16 %v500, %v496
        %v553 = vpack.c.b16 %v505, %v501
        %v554 = vpack.c.b16 %v506, %v502
        %v555 = vpack.c.b16 %v507, %v503
        %v556 = vpack.c.b16 %v508, %v504
        %v557 = vpack.c.b16 %v513, %v509
        %v558 = vpack.c.b16 %v514, %v510
        %v559 = vpack.c.b16 %v515, %v511
        %v560 = vpack.c.b16 %v516, %v512
        %v561 = vpack.c.b16 %v521, %v517
        %v562 = vpack.c.b16 %v522, %v518
        %v563 = vpack.c.b16 %v523, %v519
        %v564 = vpack.c.b16 %v524, %v520
        %v565 = vpack.c.b16 %v529, %v525
        %v566 = vpack.c.b16 %v530, %v526
        %v567 = vpack.c.b16 %v531, %v527
        %v568 = vpack.c.b16 %v532, %v528
        %v569 = vpack.c.b16 %v537, %v533
        %v570 = vpack.c.b16 %v538, %v534
        %v571 = vpack.c.b16 %v539, %v535
        %v572 = vpack.c.b16 %v540, %v536
        %605 = vmatprep.subr.bf16.mxu0 %v570
        %606 = vmatpush1.bf16.msra.mxu0 %v569
        %607 = vmatprep.subr.bf16.mxu0 %v566
        %608 = vmatpush1.bf16.msra.mxu0 %v565
        %609 = vmatprep.subr.bf16.mxu0 %v562
        %610 = vmatpush1.bf16.msra.mxu0 %v561
        %611 = vmatprep.subr.bf16.mxu0 %v558
        %612 = vmatpush1.bf16.msra.mxu0 %v557
        %613 = vmatprep.subr.bf16.mxu0 %v554
        %614 = vmatpush1.bf16.msra.mxu0 %v553
        %615 = vmatprep.subr.bf16.mxu0 %v550
        %616 = vmatpush1.bf16.msra.mxu0 %v549
        %617 = vmatprep.subr.bf16.mxu0 %v546
        %618 = vmatpush1.bf16.msra.mxu0 %v545
        %619 = vmatprep.subr.bf16.mxu0 %v542
        %620 = vmatpush1.bf16.msra.mxu0 %v541
        %621 = vmatprep.subr.bf16.mxu0 0
        %622 = vmatpush2.bf16.msra.mxu0 0
        %623 = vmatprep.subr.bf16.mxu0 0
        %624 = vmatpush2.bf16.msra.mxu0 0
        %625 = vmatprep.subr.bf16.mxu0 0
        %626 = vmatpush2.bf16.msra.mxu0 0
        %627 = vmatprep.subr.bf16.mxu0 0
        %628 = vmatpush2.bf16.msra.mxu0 0
        %629 = vmatprep.subr.bf16.mxu0 0
        %630 = vmatpush2.bf16.msra.mxu0 0
        %631 = vmatprep.subr.bf16.mxu0 0
        %632 = vmatpush2.bf16.msra.mxu0 0
        %633 = vmatprep.subr.bf16.mxu0 0
        %634 = vmatpush2.bf16.msra.mxu0 0
        %635 = vmatprep.subr.bf16.mxu0 0
        %636 = vmatpush2.bf16.msra.mxu0 0
        %637 = vmatprep.mubr.bf16.mxu0 0
        %638 = vmatmul.mubr.bf16.gmra.mxu0 %v429
        %v639 = vpop.f32.mrf.mxu0
        %v640 = vadd.f32 %v380, %v639
        %v641 = vpop.f32.mrf.mxu0
        %v642 = vadd.f32 %v384, %v641
        %v643 = vpop.f32.mrf.mxu0
        %v644 = vadd.f32 %v380, %v643
        %v645 = vpop.f32.mrf.mxu0
        %v646 = vadd.f32 %v384, %v645
        %647 = vmatprep.mubr.bf16.mxu0 0
        %648 = vmatmul.mubr.bf16.gmra.mxu0 %v430
        %v649 = vpop.f32.mrf.mxu0
        %v650 = vadd.f32 %v380, %v649
        %v651 = vpop.f32.mrf.mxu0
        %v652 = vadd.f32 %v384, %v651
        %v653 = vpop.f32.mrf.mxu0
        %v654 = vadd.f32 %v380, %v653
        %v655 = vpop.f32.mrf.mxu0
        %v656 = vadd.f32 %v384, %v655
        %657 = vmatprep.mubr.bf16.mxu0 0
        %658 = vmatmul.mubr.bf16.gmra.mxu0 %v431
        %v659 = vpop.f32.mrf.mxu0
        %v660 = vadd.f32 %v380, %v659
        %v661 = vpop.f32.mrf.mxu0
        %v662 = vadd.f32 %v384, %v661
        %v663 = vpop.f32.mrf.mxu0
        %v664 = vadd.f32 %v380, %v663
        %v665 = vpop.f32.mrf.mxu0
        %v666 = vadd.f32 %v384, %v665
        %667 = vmatprep.mubr.bf16.mxu0 0
        %668 = vmatmul.mubr.bf16.gmra.mxu0 %v432
        %v669 = vpop.f32.mrf.mxu0
        %v670 = vadd.f32 %v380, %v669
        %v671 = vpop.f32.mrf.mxu0
        %v672 = vadd.f32 %v384, %v671
        %v673 = vpop.f32.mrf.mxu0
        %v674 = vadd.f32 %v380, %v673
        %v675 = vpop.f32.mrf.mxu0
        %v676 = vadd.f32 %v384, %v675
        %677 = vmatprep.mubr.bf16.mxu0 0
        %678 = vmatmul.mubr.bf16.gmra.mxu0 %v433
        %v679 = vpop.f32.mrf.mxu0
        %v680 = vadd.f32 %v380, %v679
        %v681 = vpop.f32.mrf.mxu0
        %v682 = vadd.f32 %v384, %v681
        %v683 = vpop.f32.mrf.mxu0
        %v684 = vadd.f32 %v380, %v683
        %v685 = vpop.f32.mrf.mxu0
        %v686 = vadd.f32 %v384, %v685
        %687 = vmatprep.mubr.bf16.mxu0 0
        %688 = vmatmul.mubr.bf16.gmra.mxu0 %v434
        %v689 = vpop.f32.mrf.mxu0
        %v690 = vadd.f32 %v380, %v689
        %v691 = vpop.f32.mrf.mxu0
        %v692 = vadd.f32 %v384, %v691
        %v693 = vpop.f32.mrf.mxu0
        %v694 = vadd.f32 %v380, %v693
        %v695 = vpop.f32.mrf.mxu0
        %v696 = vadd.f32 %v384, %v695
        %697 = vmatprep.mubr.bf16.mxu0 0
        %698 = vmatmul.mubr.bf16.gmra.mxu0 %v435
        %v699 = vpop.f32.mrf.mxu0
        %v700 = vadd.f32 %v380, %v699
        %v701 = vpop.f32.mrf.mxu0
        %v702 = vadd.f32 %v384, %v701
        %v703 = vpop.f32.mrf.mxu0
        %v704 = vadd.f32 %v380, %v703
        %v705 = vpop.f32.mrf.mxu0
        %v706 = vadd.f32 %v384, %v705
        %707 = vmatprep.mubr.bf16.mxu0 0
        %708 = vmatmul.mubr.bf16.gmra.mxu0 %v436
        %v709 = vpop.f32.mrf.mxu0
        %v710 = vadd.f32 %v380, %v709
        %v711 = vpop.f32.mrf.mxu0
        %v712 = vadd.f32 %v384, %v711
        %v713 = vpop.f32.mrf.mxu0
        %v714 = vadd.f32 %v380, %v713
        %v715 = vpop.f32.mrf.mxu0
        %v716 = vadd.f32 %v384, %v715
        %717 = vdwg.mxu0
        %718 = vmatprep.subr.bf16.mxu0 %v572
        %719 = vmatpush1.bf16.msra.mxu0 %v571
        %720 = vmatprep.subr.bf16.mxu0 %v568
        %721 = vmatpush1.bf16.msra.mxu0 %v567
        %722 = vmatprep.subr.bf16.mxu0 %v564
        %723 = vmatpush1.bf16.msra.mxu0 %v563
        %724 = vmatprep.subr.bf16.mxu0 %v560
        %725 = vmatpush1.bf16.msra.mxu0 %v559
        %726 = vmatprep.subr.bf16.mxu0 %v556
        %727 = vmatpush1.bf16.msra.mxu0 %v555
        %728 = vmatprep.subr.bf16.mxu0 %v552
        %729 = vmatpush1.bf16.msra.mxu0 %v551
        %730 = vmatprep.subr.bf16.mxu0 %v548
        %731 = vmatpush1.bf16.msra.mxu0 %v547
        %732 = vmatprep.subr.bf16.mxu0 %v544
        %733 = vmatpush1.bf16.msra.mxu0 %v543
        %734 = vmatprep.subr.bf16.mxu0 0
        %735 = vmatpush2.bf16.msra.mxu0 0
        %736 = vmatprep.subr.bf16.mxu0 0
        %737 = vmatpush2.bf16.msra.mxu0 0
        %738 = vmatprep.subr.bf16.mxu0 0
        %739 = vmatpush2.bf16.msra.mxu0 0
        %740 = vmatprep.subr.bf16.mxu0 0
        %741 = vmatpush2.bf16.msra.mxu0 0
        %742 = vmatprep.subr.bf16.mxu0 0
        %743 = vmatpush2.bf16.msra.mxu0 0
        %744 = vmatprep.subr.bf16.mxu0 0
        %745 = vmatpush2.bf16.msra.mxu0 0
        %746 = vmatprep.subr.bf16.mxu0 0
        %747 = vmatpush2.bf16.msra.mxu0 0
        %748 = vmatprep.subr.bf16.mxu0 0
        %749 = vmatpush2.bf16.msra.mxu0 0
        %750 = vmatprep.mubr.bf16.mxu0 0
        %751 = vmatmul.mubr.bf16.gmra.mxu0 %v429
        %v752 = vpop.f32.mrf.mxu0
        %v753 = vadd.f32 %v388, %v752
        %v754 = vpop.f32.mrf.mxu0
        %v755 = vadd.f32 %v392, %v754
        %v756 = vpop.f32.mrf.mxu0
        %v757 = vadd.f32 %v388, %v756
        %v758 = vpop.f32.mrf.mxu0
        %v759 = vadd.f32 %v392, %v758
        %760 = vmatprep.mubr.bf16.mxu0 0
        %761 = vmatmul.mubr.bf16.gmra.mxu0 %v430
        %v762 = vpop.f32.mrf.mxu0
        %v763 = vadd.f32 %v388, %v762
        %v764 = vpop.f32.mrf.mxu0
        %v765 = vadd.f32 %v392, %v764
        %v766 = vpop.f32.mrf.mxu0
        %v767 = vadd.f32 %v388, %v766
        %v768 = vpop.f32.mrf.mxu0
        %v769 = vadd.f32 %v392, %v768
        %770 = vmatprep.mubr.bf16.mxu0 0
        %771 = vmatmul.mubr.bf16.gmra.mxu0 %v431
        %v772 = vpop.f32.mrf.mxu0
        %v773 = vadd.f32 %v388, %v772
        %v774 = vpop.f32.mrf.mxu0
        %v775 = vadd.f32 %v392, %v774
        %v776 = vpop.f32.mrf.mxu0
        %v777 = vadd.f32 %v388, %v776
        %v778 = vpop.f32.mrf.mxu0
        %v779 = vadd.f32 %v392, %v778
        %780 = vmatprep.mubr.bf16.mxu0 0
        %781 = vmatmul.mubr.bf16.gmra.mxu0 %v432
        %v782 = vpop.f32.mrf.mxu0
        %v783 = vadd.f32 %v388, %v782
        %v784 = vpop.f32.mrf.mxu0
        %v785 = vadd.f32 %v392, %v784
        %v786 = vpop.f32.mrf.mxu0
        %v787 = vadd.f32 %v388, %v786
        %v788 = vpop.f32.mrf.mxu0
        %v789 = vadd.f32 %v392, %v788
        %790 = vmatprep.mubr.bf16.mxu0 0
        %791 = vmatmul.mubr.bf16.gmra.mxu0 %v433
        %v792 = vpop.f32.mrf.mxu0
        %v793 = vadd.f32 %v388, %v792
        %v794 = vpop.f32.mrf.mxu0
        %v795 = vadd.f32 %v392, %v794
        %v796 = vpop.f32.mrf.mxu0
        %v797 = vadd.f32 %v388, %v796
        %v798 = vpop.f32.mrf.mxu0
        %v799 = vadd.f32 %v392, %v798
        %800 = vmatprep.mubr.bf16.mxu0 0
        %801 = vmatmul.mubr.bf16.gmra.mxu0 %v434
        %v802 = vpop.f32.mrf.mxu0
        %v803 = vadd.f32 %v388, %v802
        %v804 = vpop.f32.mrf.mxu0
        %v805 = vadd.f32 %v392, %v804
        %v806 = vpop.f32.mrf.mxu0
        %v807 = vadd.f32 %v388, %v806
        %v808 = vpop.f32.mrf.mxu0
        %v809 = vadd.f32 %v392, %v808
        %810 = vmatprep.mubr.bf16.mxu0 0
        %811 = vmatmul.mubr.bf16.gmra.mxu0 %v435
        %v812 = vpop.f32.mrf.mxu0
        %v813 = vadd.f32 %v388, %v812
        %v814 = vpop.f32.mrf.mxu0
        %v815 = vadd.f32 %v392, %v814
        %v816 = vpop.f32.mrf.mxu0
        %v817 = vadd.f32 %v388, %v816
        %v818 = vpop.f32.mrf.mxu0
        %v819 = vadd.f32 %v392, %v818
        %820 = vmatprep.mubr.bf16.mxu0 0
        %821 = vmatmul.mubr.bf16.gmra.mxu0 %v436
        %v822 = vpop.f32.mrf.mxu0
        %v823 = vadd.f32 %v388, %v822
        %v824 = vpop.f32.mrf.mxu0
        %v825 = vadd.f32 %v392, %v824
        %v826 = vpop.f32.mrf.mxu0
        %v827 = vadd.f32 %v388, %v826
        %v828 = vpop.f32.mrf.mxu0
        %v829 = vadd.f32 %v392, %v828
        %830 = vdwg.mxu0
        %v831 = vmax.f32 %v640, 0.0
        %v832 = vmax.f32 %v642, 0.0
        %v833 = vmax.f32 %v753, 0.0
        %v834 = vmax.f32 %v755, 0.0
        %v835 = vmax.f32 %v644, 0.0
        %v836 = vmax.f32 %v646, 0.0
        %v837 = vmax.f32 %v757, 0.0
        %v838 = vmax.f32 %v759, 0.0
        %v839 = vmax.f32 %v650, 0.0
        %v840 = vmax.f32 %v652, 0.0
        %v841 = vmax.f32 %v763, 0.0
        %v842 = vmax.f32 %v765, 0.0
        %v843 = vmax.f32 %v654, 0.0
        %v844 = vmax.f32 %v656, 0.0
        %v845 = vmax.f32 %v767, 0.0
        %v846 = vmax.f32 %v769, 0.0
        %v847 = vmax.f32 %v660, 0.0
        %v848 = vmax.f32 %v662, 0.0
        %v849 = vmax.f32 %v773, 0.0
        %v850 = vmax.f32 %v775, 0.0
        %v851 = vmax.f32 %v664, 0.0
        %v852 = vmax.f32 %v666, 0.0
        %v853 = vmax.f32 %v777, 0.0
        %v854 = vmax.f32 %v779, 0.0
        %v855 = vmax.f32 %v670, 0.0
        %v856 = vmax.f32 %v672, 0.0
        %v857 = vmax.f32 %v783, 0.0
        %v858 = vmax.f32 %v785, 0.0
        %v859 = vmax.f32 %v674, 0.0
        %v860 = vmax.f32 %v676, 0.0
        %v861 = vmax.f32 %v787, 0.0
        %v862 = vmax.f32 %v789, 0.0
        %v863 = vmax.f32 %v680, 0.0
        %v864 = vmax.f32 %v682, 0.0
        %v865 = vmax.f32 %v793, 0.0
        %v866 = vmax.f32 %v795, 0.0
        %v867 = vmax.f32 %v684, 0.0
        %v868 = vmax.f32 %v686, 0.0
        %v869 = vmax.f32 %v797, 0.0
        %v870 = vmax.f32 %v799, 0.0
        %v871 = vmax.f32 %v690, 0.0
        %v872 = vmax.f32 %v692, 0.0
        %v873 = vmax.f32 %v803, 0.0
        %v874 = vmax.f32 %v805, 0.0
        %v875 = vmax.f32 %v694, 0.0
        %v876 = vmax.f32 %v696, 0.0
        %v877 = vmax.f32 %v807, 0.0
        %v878 = vmax.f32 %v809, 0.0
        %v879 = vmax.f32 %v700, 0.0
        %v880 = vmax.f32 %v702, 0.0
        %v881 = vmax.f32 %v813, 0.0
        %v882 = vmax.f32 %v815, 0.0
        %v883 = vmax.f32 %v704, 0.0
        %v884 = vmax.f32 %v706, 0.0
        %v885 = vmax.f32 %v817, 0.0
        %v886 = vmax.f32 %v819, 0.0
        %v887 = vmax.f32 %v710, 0.0
        %v888 = vmax.f32 %v712, 0.0
        %v889 = vmax.f32 %v823, 0.0
        %v890 = vmax.f32 %v825, 0.0
        %v891 = vmax.f32 %v714, 0.0
        %v892 = vmax.f32 %v716, 0.0
        %v893 = vmax.f32 %v827, 0.0
        %v894 = vmax.f32 %v829, 0.0
        %v895 = vpack.c.bf16 %v835, %v831
        %v896 = vpack.c.bf16 %v836, %v832
        %v897 = vpack.c.bf16 %v837, %v833
        %v898 = vpack.c.bf16 %v838, %v834
        %v899 = vpack.c.bf16 %v843, %v839
        %v900 = vpack.c.bf16 %v844, %v840
        %v901 = vpack.c.bf16 %v845, %v841
        %v902 = vpack.c.bf16 %v846, %v842
        %v903 = vpack.c.bf16 %v851, %v847
        %v904 = vpack.c.bf16 %v852, %v848
        %v905 = vpack.c.bf16 %v853, %v849
        %v906 = vpack.c.bf16 %v854, %v850
        %v907 = vpack.c.bf16 %v859, %v855
        %v908 = vpack.c.bf16 %v860, %v856
        %v909 = vpack.c.bf16 %v861, %v857
        %v910 = vpack.c.bf16 %v862, %v858
        %v911 = vpack.c.bf16 %v867, %v863
        %v912 = vpack.c.bf16 %v868, %v864
        %v913 = vpack.c.bf16 %v869, %v865
        %v914 = vpack.c.bf16 %v870, %v866
        %v915 = vpack.c.bf16 %v875, %v871
        %v916 = vpack.c.bf16 %v876, %v872
        %v917 = vpack.c.bf16 %v877, %v873
        %v918 = vpack.c.bf16 %v878, %v874
        %v919 = vpack.c.bf16 %v883, %v879
        %v920 = vpack.c.bf16 %v884, %v880
        %v921 = vpack.c.bf16 %v885, %v881
        %v922 = vpack.c.bf16 %v886, %v882
        %v923 = vpack.c.bf16 %v891, %v887
        %v924 = vpack.c.bf16 %v892, %v888
        %v925 = vpack.c.bf16 %v893, %v889
        %v926 = vpack.c.bf16 %v894, %v890
        %v927 = vld [vmem:[#allocation4] sm:$0xff]
        %v928 = vld [vmem:[#allocation4 + $0x8] sm:$0xff]
        %v929 = vld [vmem:[#allocation4 + $0x10] sm:$0xff]
        %v930 = vld [vmem:[#allocation4 + $0x18] sm:$0xff]
        %v931 = vld [vmem:[#allocation4 + $0x20] sm:$0xff]
        %v932 = vld [vmem:[#allocation4 + $0x28] sm:$0xff]
        %v933 = vld [vmem:[#allocation4 + $0x30] sm:$0xff]
        %v934 = vld [vmem:[#allocation4 + $0x38] sm:$0xff]
        %v935 = vld [vmem:[#allocation4 + $0x40] sm:$0xff]
        %v936 = vld [vmem:[#allocation4 + $0x48] sm:$0xff]
        %v937 = vld [vmem:[#allocation4 + $0x50] sm:$0xff]
        %v938 = vld [vmem:[#allocation4 + $0x58] sm:$0xff]
        %v939 = vld [vmem:[#allocation4 + $0x60] sm:$0xff]
        %v940 = vld [vmem:[#allocation4 + $0x68] sm:$0xff]
        %v941 = vld [vmem:[#allocation4 + $0x70] sm:$0xff]
        %v942 = vld [vmem:[#allocation4 + $0x78] sm:$0xff]
        %v943 = vld [vmem:[#allocation4 + $0x80] sm:$0xff]
        %v944 = vld [vmem:[#allocation4 + $0x88] sm:$0xff]
        %v945 = vld [vmem:[#allocation4 + $0x90] sm:$0xff]
        %v946 = vld [vmem:[#allocation4 + $0x98] sm:$0xff]
        %v947 = vld [vmem:[#allocation4 + $0xa0] sm:$0xff]
        %v948 = vld [vmem:[#allocation4 + $0xa8] sm:$0xff]
        %v949 = vld [vmem:[#allocation4 + $0xb0] sm:$0xff]
        %v950 = vld [vmem:[#allocation4 + $0xb8] sm:$0xff]
        %v951 = vld [vmem:[#allocation4 + $0xc0] sm:$0xff]
        %v952 = vld [vmem:[#allocation4 + $0xc8] sm:$0xff]
        %v953 = vld [vmem:[#allocation4 + $0xd0] sm:$0xff]
        %v954 = vld [vmem:[#allocation4 + $0xd8] sm:$0xff]
        %v955 = vld [vmem:[#allocation4 + $0xe0] sm:$0xff]
        %v956 = vld [vmem:[#allocation4 + $0xe8] sm:$0xff]
        %v957 = vld [vmem:[#allocation4 + $0xf0] sm:$0xff]
        %v958 = vld [vmem:[#allocation4 + $0xf8] sm:$0xff]
        %v959 = vld [vmem:[#allocation4 + $0x100] sm:$0xff]
        %v960 = vld [vmem:[#allocation4 + $0x108] sm:$0xff]
        %v961 = vld [vmem:[#allocation4 + $0x110] sm:$0xff]
        %v962 = vld [vmem:[#allocation4 + $0x118] sm:$0xff]
        %v963 = vld [vmem:[#allocation4 + $0x120] sm:$0xff]
        %v964 = vld [vmem:[#allocation4 + $0x128] sm:$0xff]
        %v965 = vld [vmem:[#allocation4 + $0x130] sm:$0xff]
        %v966 = vld [vmem:[#allocation4 + $0x138] sm:$0xff]
        %v967 = vld [vmem:[#allocation4 + $0x140] sm:$0xff]
        %v968 = vld [vmem:[#allocation4 + $0x148] sm:$0xff]
        %v969 = vld [vmem:[#allocation4 + $0x150] sm:$0xff]
        %v970 = vld [vmem:[#allocation4 + $0x158] sm:$0xff]
        %v971 = vld [vmem:[#allocation4 + $0x160] sm:$0xff]
        %v972 = vld [vmem:[#allocation4 + $0x168] sm:$0xff]
        %v973 = vld [vmem:[#allocation4 + $0x170] sm:$0xff]
        %v974 = vld [vmem:[#allocation4 + $0x178] sm:$0xff]
        %v975 = vld [vmem:[#allocation4 + $0x180] sm:$0xff]
        %v976 = vld [vmem:[#allocation4 + $0x188] sm:$0xff]
        %v977 = vld [vmem:[#allocation4 + $0x190] sm:$0xff]
        %v978 = vld [vmem:[#allocation4 + $0x198] sm:$0xff]
        %v979 = vld [vmem:[#allocation4 + $0x1a0] sm:$0xff]
        %v980 = vld [vmem:[#allocation4 + $0x1a8] sm:$0xff]
        %v981 = vld [vmem:[#allocation4 + $0x1b0] sm:$0xff]
        %v982 = vld [vmem:[#allocation4 + $0x1b8] sm:$0xff]
        %v983 = vld [vmem:[#allocation4 + $0x1c0] sm:$0xff]
        %v984 = vld [vmem:[#allocation4 + $0x1c8] sm:$0xff]
        %v985 = vld [vmem:[#allocation4 + $0x1d0] sm:$0xff]
        %v986 = vld [vmem:[#allocation4 + $0x1d8] sm:$0xff]
        %v987 = vld [vmem:[#allocation4 + $0x1e0] sm:$0xff]
        %v988 = vld [vmem:[#allocation4 + $0x1e8] sm:$0xff]
        %v989 = vld [vmem:[#allocation4 + $0x1f0] sm:$0xff]
        %v990 = vld [vmem:[#allocation4 + $0x1f8] sm:$0xff]
        %v991 = vld [vmem:[#allocation4 + $0x200] sm:$0xff]
        %v992 = vld [vmem:[#allocation4 + $0x208] sm:$0xff]
        %v993 = vld [vmem:[#allocation4 + $0x210] sm:$0xff]
        %v994 = vld [vmem:[#allocation4 + $0x218] sm:$0xff]
        %v995 = vld [vmem:[#allocation4 + $0x220] sm:$0xff]
        %v996 = vld [vmem:[#allocation4 + $0x228] sm:$0xff]
        %v997 = vld [vmem:[#allocation4 + $0x230] sm:$0xff]
        %v998 = vld [vmem:[#allocation4 + $0x238] sm:$0xff]
        %v999 = vld [vmem:[#allocation4 + $0x240] sm:$0xff]
        %v1000 = vld [vmem:[#allocation4 + $0x248] sm:$0xff]
        %v1001 = vld [vmem:[#allocation4 + $0x250] sm:$0xff]
        %v1002 = vld [vmem:[#allocation4 + $0x258] sm:$0xff]
        %v1003 = vld [vmem:[#allocation4 + $0x260] sm:$0xff]
        %v1004 = vld [vmem:[#allocation4 + $0x268] sm:$0xff]
        %v1005 = vld [vmem:[#allocation4 + $0x270] sm:$0xff]
        %v1006 = vld [vmem:[#allocation4 + $0x278] sm:$0xff]
        %v1007 = vld [vmem:[#allocation4 + $0x280] sm:$0xff]
        %v1008 = vld [vmem:[#allocation4 + $0x288] sm:$0xff]
        %v1009 = vld [vmem:[#allocation4 + $0x290] sm:$0xff]
        %v1010 = vld [vmem:[#allocation4 + $0x298] sm:$0xff]
        %v1011 = vld [vmem:[#allocation4 + $0x2a0] sm:$0xff]
        %v1012 = vld [vmem:[#allocation4 + $0x2a8] sm:$0xff]
        %v1013 = vld [vmem:[#allocation4 + $0x2b0] sm:$0xff]
        %v1014 = vld [vmem:[#allocation4 + $0x2b8] sm:$0xff]
        %v1015 = vld [vmem:[#allocation4 + $0x2c0] sm:$0xff]
        %v1016 = vld [vmem:[#allocation4 + $0x2c8] sm:$0xff]
        %v1017 = vld [vmem:[#allocation4 + $0x2d0] sm:$0xff]
        %v1018 = vld [vmem:[#allocation4 + $0x2d8] sm:$0xff]
        %v1019 = vld [vmem:[#allocation4 + $0x2e0] sm:$0xff]
        %v1020 = vld [vmem:[#allocation4 + $0x2e8] sm:$0xff]
        %v1021 = vld [vmem:[#allocation4 + $0x2f0] sm:$0xff]
        %v1022 = vld [vmem:[#allocation4 + $0x2f8] sm:$0xff]
        %v1023 = vld [vmem:[#allocation4 + $0x300] sm:$0xff]
        %v1024 = vld [vmem:[#allocation4 + $0x308] sm:$0xff]
        %v1025 = vld [vmem:[#allocation4 + $0x310] sm:$0xff]
        %v1026 = vld [vmem:[#allocation4 + $0x318] sm:$0xff]
        %v1027 = vld [vmem:[#allocation4 + $0x320] sm:$0xff]
        %v1028 = vld [vmem:[#allocation4 + $0x328] sm:$0xff]
        %v1029 = vld [vmem:[#allocation4 + $0x330] sm:$0xff]
        %v1030 = vld [vmem:[#allocation4 + $0x338] sm:$0xff]
        %v1031 = vld [vmem:[#allocation4 + $0x340] sm:$0xff]
        %v1032 = vld [vmem:[#allocation4 + $0x348] sm:$0xff]
        %v1033 = vld [vmem:[#allocation4 + $0x350] sm:$0xff]
        %v1034 = vld [vmem:[#allocation4 + $0x358] sm:$0xff]
        %v1035 = vld [vmem:[#allocation4 + $0x360] sm:$0xff]
        %v1036 = vld [vmem:[#allocation4 + $0x368] sm:$0xff]
        %v1037 = vld [vmem:[#allocation4 + $0x370] sm:$0xff]
        %v1038 = vld [vmem:[#allocation4 + $0x378] sm:$0xff]
        %v1039 = vld [vmem:[#allocation4 + $0x380] sm:$0xff]
        %v1040 = vld [vmem:[#allocation4 + $0x388] sm:$0xff]
        %v1041 = vld [vmem:[#allocation4 + $0x390] sm:$0xff]
        %v1042 = vld [vmem:[#allocation4 + $0x398] sm:$0xff]
        %v1043 = vld [vmem:[#allocation4 + $0x3a0] sm:$0xff]
        %v1044 = vld [vmem:[#allocation4 + $0x3a8] sm:$0xff]
        %v1045 = vld [vmem:[#allocation4 + $0x3b0] sm:$0xff]
        %v1046 = vld [vmem:[#allocation4 + $0x3b8] sm:$0xff]
        %v1047 = vld [vmem:[#allocation4 + $0x3c0] sm:$0xff]
        %v1048 = vld [vmem:[#allocation4 + $0x3c8] sm:$0xff]
        %v1049 = vld [vmem:[#allocation4 + $0x3d0] sm:$0xff]
        %v1050 = vld [vmem:[#allocation4 + $0x3d8] sm:$0xff]
        %v1051 = vld [vmem:[#allocation4 + $0x3e0] sm:$0xff]
        %v1052 = vld [vmem:[#allocation4 + $0x3e8] sm:$0xff]
        %v1053 = vld [vmem:[#allocation4 + $0x3f0] sm:$0xff]
        %v1054 = vld [vmem:[#allocation4 + $0x3f8] sm:$0xff]
        %s1055 = scalar_lea.vmem [#allocation7], 4
        %v1056 = vld [vmem:[%s1055] sm:$0xf]
        %v1058 = vlaneseq
        %v1059 = vshrl.u32 %v1058, 7
        %v1060 = vsub.s32 0, %v1059
        %v1061 = vrot.slane %v1056, %v1060
        %v1062 = vlaneseq
        %v1063 = vshrl.u32 %v1062, 7
        %v1064 = vsub.s32 1, %v1063
        %v1065 = vrot.slane %v1056, %v1064
        %v1066 = vlaneseq
        %v1067 = vshrl.u32 %v1066, 7
        %v1068 = vsub.s32 2, %v1067
        %v1069 = vrot.slane %v1056, %v1068
        %v1070 = vlaneseq
        %v1071 = vshrl.u32 %v1070, 7
        %v1072 = vsub.s32 3, %v1071
        %v1073 = vrot.slane %v1056, %v1072
        %v1206 = vunpack.c.l.b16 %v927
        %v1207 = vunpack.c.h.b16 %v927
        %v1208 = vunpack.c.l.b16 %v928
        %v1209 = vunpack.c.h.b16 %v928
        %v1210 = vunpack.c.l.b16 %v929
        %v1211 = vunpack.c.h.b16 %v929
        %v1212 = vunpack.c.l.b16 %v930
        %v1213 = vunpack.c.h.b16 %v930
        %v1214 = vunpack.c.l.b16 %v931
        %v1215 = vunpack.c.h.b16 %v931
        %v1216 = vunpack.c.l.b16 %v932
        %v1217 = vunpack.c.h.b16 %v932
        %v1218 = vunpack.c.l.b16 %v933
        %v1219 = vunpack.c.h.b16 %v933
        %v1220 = vunpack.c.l.b16 %v934
        %v1221 = vunpack.c.h.b16 %v934
        %v1222 = vunpack.c.l.b16 %v935
        %v1223 = vunpack.c.h.b16 %v935
        %v1224 = vunpack.c.l.b16 %v936
        %v1225 = vunpack.c.h.b16 %v936
        %v1226 = vunpack.c.l.b16 %v937
        %v1227 = vunpack.c.h.b16 %v937
        %v1228 = vunpack.c.l.b16 %v938
        %v1229 = vunpack.c.h.b16 %v938
        %v1230 = vunpack.c.l.b16 %v939
        %v1231 = vunpack.c.h.b16 %v939
        %v1232 = vunpack.c.l.b16 %v940
        %v1233 = vunpack.c.h.b16 %v940
        %v1234 = vunpack.c.l.b16 %v941
        %v1235 = vunpack.c.h.b16 %v941
        %v1236 = vunpack.c.l.b16 %v942
        %v1237 = vunpack.c.h.b16 %v942
        %v1238 = vunpack.c.l.b16 %v943
        %v1239 = vunpack.c.h.b16 %v943
        %v1240 = vunpack.c.l.b16 %v944
        %v1241 = vunpack.c.h.b16 %v944
        %v1242 = vunpack.c.l.b16 %v945
        %v1243 = vunpack.c.h.b16 %v945
        %v1244 = vunpack.c.l.b16 %v946
        %v1245 = vunpack.c.h.b16 %v946
        %v1246 = vunpack.c.l.b16 %v947
        %v1247 = vunpack.c.h.b16 %v947
        %v1248 = vunpack.c.l.b16 %v948
        %v1249 = vunpack.c.h.b16 %v948
        %v1250 = vunpack.c.l.b16 %v949
        %v1251 = vunpack.c.h.b16 %v949
        %v1252 = vunpack.c.l.b16 %v950
        %v1253 = vunpack.c.h.b16 %v950
        %v1254 = vunpack.c.l.b16 %v951
        %v1255 = vunpack.c.h.b16 %v951
        %v1256 = vunpack.c.l.b16 %v952
        %v1257 = vunpack.c.h.b16 %v952
        %v1258 = vunpack.c.l.b16 %v953
        %v1259 = vunpack.c.h.b16 %v953
        %v1260 = vunpack.c.l.b16 %v954
        %v1261 = vunpack.c.h.b16 %v954
        %v1262 = vunpack.c.l.b16 %v955
        %v1263 = vunpack.c.h.b16 %v955
        %v1264 = vunpack.c.l.b16 %v956
        %v1265 = vunpack.c.h.b16 %v956
        %v1266 = vunpack.c.l.b16 %v957
        %v1267 = vunpack.c.h.b16 %v957
        %v1268 = vunpack.c.l.b16 %v958
        %v1269 = vunpack.c.h.b16 %v958
        %v1270 = vunpack.c.l.b16 %v959
        %v1271 = vunpack.c.h.b16 %v959
        %v1272 = vunpack.c.l.b16 %v960
        %v1273 = vunpack.c.h.b16 %v960
        %v1274 = vunpack.c.l.b16 %v961
        %v1275 = vunpack.c.h.b16 %v961
        %v1276 = vunpack.c.l.b16 %v962
        %v1277 = vunpack.c.h.b16 %v962
        %v1278 = vunpack.c.l.b16 %v963
        %v1279 = vunpack.c.h.b16 %v963
        %v1280 = vunpack.c.l.b16 %v964
        %v1281 = vunpack.c.h.b16 %v964
        %v1282 = vunpack.c.l.b16 %v965
        %v1283 = vunpack.c.h.b16 %v965
        %v1284 = vunpack.c.l.b16 %v966
        %v1285 = vunpack.c.h.b16 %v966
        %v1286 = vunpack.c.l.b16 %v967
        %v1287 = vunpack.c.h.b16 %v967
        %v1288 = vunpack.c.l.b16 %v968
        %v1289 = vunpack.c.h.b16 %v968
        %v1290 = vunpack.c.l.b16 %v969
        %v1291 = vunpack.c.h.b16 %v969
        %v1292 = vunpack.c.l.b16 %v970
        %v1293 = vunpack.c.h.b16 %v970
        %v1294 = vunpack.c.l.b16 %v971
        %v1295 = vunpack.c.h.b16 %v971
        %v1296 = vunpack.c.l.b16 %v972
        %v1297 = vunpack.c.h.b16 %v972
        %v1298 = vunpack.c.l.b16 %v973
        %v1299 = vunpack.c.h.b16 %v973
        %v1300 = vunpack.c.l.b16 %v974
        %v1301 = vunpack.c.h.b16 %v974
        %v1302 = vunpack.c.l.b16 %v975
        %v1303 = vunpack.c.h.b16 %v975
        %v1304 = vunpack.c.l.b16 %v976
        %v1305 = vunpack.c.h.b16 %v976
        %v1306 = vunpack.c.l.b16 %v977
        %v1307 = vunpack.c.h.b16 %v977
        %v1308 = vunpack.c.l.b16 %v978
        %v1309 = vunpack.c.h.b16 %v978
        %v1310 = vunpack.c.l.b16 %v979
        %v1311 = vunpack.c.h.b16 %v979
        %v1312 = vunpack.c.l.b16 %v980
        %v1313 = vunpack.c.h.b16 %v980
        %v1314 = vunpack.c.l.b16 %v981
        %v1315 = vunpack.c.h.b16 %v981
        %v1316 = vunpack.c.l.b16 %v982
        %v1317 = vunpack.c.h.b16 %v982
        %v1318 = vunpack.c.l.b16 %v983
        %v1319 = vunpack.c.h.b16 %v983
        %v1320 = vunpack.c.l.b16 %v984
        %v1321 = vunpack.c.h.b16 %v984
        %v1322 = vunpack.c.l.b16 %v985
        %v1323 = vunpack.c.h.b16 %v985
        %v1324 = vunpack.c.l.b16 %v986
        %v1325 = vunpack.c.h.b16 %v986
        %v1326 = vunpack.c.l.b16 %v987
        %v1327 = vunpack.c.h.b16 %v987
        %v1328 = vunpack.c.l.b16 %v988
        %v1329 = vunpack.c.h.b16 %v988
        %v1330 = vunpack.c.l.b16 %v989
        %v1331 = vunpack.c.h.b16 %v989
        %v1332 = vunpack.c.l.b16 %v990
        %v1333 = vunpack.c.h.b16 %v990
        %v1334 = vunpack.c.l.b16 %v991
        %v1335 = vunpack.c.h.b16 %v991
        %v1336 = vunpack.c.l.b16 %v992
        %v1337 = vunpack.c.h.b16 %v992
        %v1338 = vunpack.c.l.b16 %v993
        %v1339 = vunpack.c.h.b16 %v993
        %v1340 = vunpack.c.l.b16 %v994
        %v1341 = vunpack.c.h.b16 %v994
        %v1342 = vunpack.c.l.b16 %v995
        %v1343 = vunpack.c.h.b16 %v995
        %v1344 = vunpack.c.l.b16 %v996
        %v1345 = vunpack.c.h.b16 %v996
        %v1346 = vunpack.c.l.b16 %v997
        %v1347 = vunpack.c.h.b16 %v997
        %v1348 = vunpack.c.l.b16 %v998
        %v1349 = vunpack.c.h.b16 %v998
        %v1350 = vunpack.c.l.b16 %v999
        %v1351 = vunpack.c.h.b16 %v999
        %v1352 = vunpack.c.l.b16 %v1000
        %v1353 = vunpack.c.h.b16 %v1000
        %v1354 = vunpack.c.l.b16 %v1001
        %v1355 = vunpack.c.h.b16 %v1001
        %v1356 = vunpack.c.l.b16 %v1002
        %v1357 = vunpack.c.h.b16 %v1002
        %v1358 = vunpack.c.l.b16 %v1003
        %v1359 = vunpack.c.h.b16 %v1003
        %v1360 = vunpack.c.l.b16 %v1004
        %v1361 = vunpack.c.h.b16 %v1004
        %v1362 = vunpack.c.l.b16 %v1005
        %v1363 = vunpack.c.h.b16 %v1005
        %v1364 = vunpack.c.l.b16 %v1006
        %v1365 = vunpack.c.h.b16 %v1006
        %v1366 = vunpack.c.l.b16 %v1007
        %v1367 = vunpack.c.h.b16 %v1007
        %v1368 = vunpack.c.l.b16 %v1008
        %v1369 = vunpack.c.h.b16 %v1008
        %v1370 = vunpack.c.l.b16 %v1009
        %v1371 = vunpack.c.h.b16 %v1009
        %v1372 = vunpack.c.l.b16 %v1010
        %v1373 = vunpack.c.h.b16 %v1010
        %v1374 = vunpack.c.l.b16 %v1011
        %v1375 = vunpack.c.h.b16 %v1011
        %v1376 = vunpack.c.l.b16 %v1012
        %v1377 = vunpack.c.h.b16 %v1012
        %v1378 = vunpack.c.l.b16 %v1013
        %v1379 = vunpack.c.h.b16 %v1013
        %v1380 = vunpack.c.l.b16 %v1014
        %v1381 = vunpack.c.h.b16 %v1014
        %v1382 = vunpack.c.l.b16 %v1015
        %v1383 = vunpack.c.h.b16 %v1015
        %v1384 = vunpack.c.l.b16 %v1016
        %v1385 = vunpack.c.h.b16 %v1016
        %v1386 = vunpack.c.l.b16 %v1017
        %v1387 = vunpack.c.h.b16 %v1017
        %v1388 = vunpack.c.l.b16 %v1018
        %v1389 = vunpack.c.h.b16 %v1018
        %v1390 = vunpack.c.l.b16 %v1019
        %v1391 = vunpack.c.h.b16 %v1019
        %v1392 = vunpack.c.l.b16 %v1020
        %v1393 = vunpack.c.h.b16 %v1020
        %v1394 = vunpack.c.l.b16 %v1021
        %v1395 = vunpack.c.h.b16 %v1021
        %v1396 = vunpack.c.l.b16 %v1022
        %v1397 = vunpack.c.h.b16 %v1022
        %v1398 = vunpack.c.l.b16 %v1023
        %v1399 = vunpack.c.h.b16 %v1023
        %v1400 = vunpack.c.l.b16 %v1024
        %v1401 = vunpack.c.h.b16 %v1024
        %v1402 = vunpack.c.l.b16 %v1025
        %v1403 = vunpack.c.h.b16 %v1025
        %v1404 = vunpack.c.l.b16 %v1026
        %v1405 = vunpack.c.h.b16 %v1026
        %v1406 = vunpack.c.l.b16 %v1027
        %v1407 = vunpack.c.h.b16 %v1027
        %v1408 = vunpack.c.l.b16 %v1028
        %v1409 = vunpack.c.h.b16 %v1028
        %v1410 = vunpack.c.l.b16 %v1029
        %v1411 = vunpack.c.h.b16 %v1029
        %v1412 = vunpack.c.l.b16 %v1030
        %v1413 = vunpack.c.h.b16 %v1030
        %v1414 = vunpack.c.l.b16 %v1031
        %v1415 = vunpack.c.h.b16 %v1031
        %v1416 = vunpack.c.l.b16 %v1032
        %v1417 = vunpack.c.h.b16 %v1032
        %v1418 = vunpack.c.l.b16 %v1033
        %v1419 = vunpack.c.h.b16 %v1033
        %v1420 = vunpack.c.l.b16 %v1034
        %v1421 = vunpack.c.h.b16 %v1034
        %v1422 = vunpack.c.l.b16 %v1035
        %v1423 = vunpack.c.h.b16 %v1035
        %v1424 = vunpack.c.l.b16 %v1036
        %v1425 = vunpack.c.h.b16 %v1036
        %v1426 = vunpack.c.l.b16 %v1037
        %v1427 = vunpack.c.h.b16 %v1037
        %v1428 = vunpack.c.l.b16 %v1038
        %v1429 = vunpack.c.h.b16 %v1038
        %v1430 = vunpack.c.l.b16 %v1039
        %v1431 = vunpack.c.h.b16 %v1039
        %v1432 = vunpack.c.l.b16 %v1040
        %v1433 = vunpack.c.h.b16 %v1040
        %v1434 = vunpack.c.l.b16 %v1041
        %v1435 = vunpack.c.h.b16 %v1041
        %v1436 = vunpack.c.l.b16 %v1042
        %v1437 = vunpack.c.h.b16 %v1042
        %v1438 = vunpack.c.l.b16 %v1043
        %v1439 = vunpack.c.h.b16 %v1043
        %v1440 = vunpack.c.l.b16 %v1044
        %v1441 = vunpack.c.h.b16 %v1044
        %v1442 = vunpack.c.l.b16 %v1045
        %v1443 = vunpack.c.h.b16 %v1045
        %v1444 = vunpack.c.l.b16 %v1046
        %v1445 = vunpack.c.h.b16 %v1046
        %v1446 = vunpack.c.l.b16 %v1047
        %v1447 = vunpack.c.h.b16 %v1047
        %v1448 = vunpack.c.l.b16 %v1048
        %v1449 = vunpack.c.h.b16 %v1048
        %v1450 = vunpack.c.l.b16 %v1049
        %v1451 = vunpack.c.h.b16 %v1049
        %v1452 = vunpack.c.l.b16 %v1050
        %v1453 = vunpack.c.h.b16 %v1050
        %v1454 = vunpack.c.l.b16 %v1051
        %v1455 = vunpack.c.h.b16 %v1051
        %v1456 = vunpack.c.l.b16 %v1052
        %v1457 = vunpack.c.h.b16 %v1052
        %v1458 = vunpack.c.l.b16 %v1053
        %v1459 = vunpack.c.h.b16 %v1053
        %v1460 = vunpack.c.l.b16 %v1054
        %v1461 = vunpack.c.h.b16 %v1054
        %v1462 = vpack.c.b16 %v1210, %v1206
        %v1463 = vpack.c.b16 %v1211, %v1207
        %v1464 = vpack.c.b16 %v1212, %v1208
        %v1465 = vpack.c.b16 %v1213, %v1209
        %v1466 = vpack.c.b16 %v1218, %v1214
        %v1467 = vpack.c.b16 %v1219, %v1215
        %v1468 = vpack.c.b16 %v1220, %v1216
        %v1469 = vpack.c.b16 %v1221, %v1217
        %v1470 = vpack.c.b16 %v1226, %v1222
        %v1471 = vpack.c.b16 %v1227, %v1223
        %v1472 = vpack.c.b16 %v1228, %v1224
        %v1473 = vpack.c.b16 %v1229, %v1225
        %v1474 = vpack.c.b16 %v1234, %v1230
        %v1475 = vpack.c.b16 %v1235, %v1231
        %v1476 = vpack.c.b16 %v1236, %v1232
        %v1477 = vpack.c.b16 %v1237, %v1233
        %v1478 = vpack.c.b16 %v1242, %v1238
        %v1479 = vpack.c.b16 %v1243, %v1239
        %v1480 = vpack.c.b16 %v1244, %v1240
        %v1481 = vpack.c.b16 %v1245, %v1241
        %v1482 = vpack.c.b16 %v1250, %v1246
        %v1483 = vpack.c.b16 %v1251, %v1247
        %v1484 = vpack.c.b16 %v1252, %v1248
        %v1485 = vpack.c.b16 %v1253, %v1249
        %v1486 = vpack.c.b16 %v1258, %v1254
        %v1487 = vpack.c.b16 %v1259, %v1255
        %v1488 = vpack.c.b16 %v1260, %v1256
        %v1489 = vpack.c.b16 %v1261, %v1257
        %v1490 = vpack.c.b16 %v1266, %v1262
        %v1491 = vpack.c.b16 %v1267, %v1263
        %v1492 = vpack.c.b16 %v1268, %v1264
        %v1493 = vpack.c.b16 %v1269, %v1265
        %v1494 = vpack.c.b16 %v1274, %v1270
        %v1495 = vpack.c.b16 %v1275, %v1271
        %v1496 = vpack.c.b16 %v1276, %v1272
        %v1497 = vpack.c.b16 %v1277, %v1273
        %v1498 = vpack.c.b16 %v1282, %v1278
        %v1499 = vpack.c.b16 %v1283, %v1279
        %v1500 = vpack.c.b16 %v1284, %v1280
        %v1501 = vpack.c.b16 %v1285, %v1281
        %v1502 = vpack.c.b16 %v1290, %v1286
        %v1503 = vpack.c.b16 %v1291, %v1287
        %v1504 = vpack.c.b16 %v1292, %v1288
        %v1505 = vpack.c.b16 %v1293, %v1289
        %v1506 = vpack.c.b16 %v1298, %v1294
        %v1507 = vpack.c.b16 %v1299, %v1295
        %v1508 = vpack.c.b16 %v1300, %v1296
        %v1509 = vpack.c.b16 %v1301, %v1297
        %v1510 = vpack.c.b16 %v1306, %v1302
        %v1511 = vpack.c.b16 %v1307, %v1303
        %v1512 = vpack.c.b16 %v1308, %v1304
        %v1513 = vpack.c.b16 %v1309, %v1305
        %v1514 = vpack.c.b16 %v1314, %v1310
        %v1515 = vpack.c.b16 %v1315, %v1311
        %v1516 = vpack.c.b16 %v1316, %v1312
        %v1517 = vpack.c.b16 %v1317, %v1313
        %v1518 = vpack.c.b16 %v1322, %v1318
        %v1519 = vpack.c.b16 %v1323, %v1319
        %v1520 = vpack.c.b16 %v1324, %v1320
        %v1521 = vpack.c.b16 %v1325, %v1321
        %v1522 = vpack.c.b16 %v1330, %v1326
        %v1523 = vpack.c.b16 %v1331, %v1327
        %v1524 = vpack.c.b16 %v1332, %v1328
        %v1525 = vpack.c.b16 %v1333, %v1329
        %v1526 = vpack.c.b16 %v1338, %v1334
        %v1527 = vpack.c.b16 %v1339, %v1335
        %v1528 = vpack.c.b16 %v1340, %v1336
        %v1529 = vpack.c.b16 %v1341, %v1337
        %v1530 = vpack.c.b16 %v1346, %v1342
        %v1531 = vpack.c.b16 %v1347, %v1343
        %v1532 = vpack.c.b16 %v1348, %v1344
        %v1533 = vpack.c.b16 %v1349, %v1345
        %v1534 = vpack.c.b16 %v1354, %v1350
        %v1535 = vpack.c.b16 %v1355, %v1351
        %v1536 = vpack.c.b16 %v1356, %v1352
        %v1537 = vpack.c.b16 %v1357, %v1353
        %v1538 = vpack.c.b16 %v1362, %v1358
        %v1539 = vpack.c.b16 %v1363, %v1359
        %v1540 = vpack.c.b16 %v1364, %v1360
        %v1541 = vpack.c.b16 %v1365, %v1361
        %v1542 = vpack.c.b16 %v1370, %v1366
        %v1543 = vpack.c.b16 %v1371, %v1367
        %v1544 = vpack.c.b16 %v1372, %v1368
        %v1545 = vpack.c.b16 %v1373, %v1369
        %v1546 = vpack.c.b16 %v1378, %v1374
        %v1547 = vpack.c.b16 %v1379, %v1375
        %v1548 = vpack.c.b16 %v1380, %v1376
        %v1549 = vpack.c.b16 %v1381, %v1377
        %v1550 = vpack.c.b16 %v1386, %v1382
        %v1551 = vpack.c.b16 %v1387, %v1383
        %v1552 = vpack.c.b16 %v1388, %v1384
        %v1553 = vpack.c.b16 %v1389, %v1385
        %v1554 = vpack.c.b16 %v1394, %v1390
        %v1555 = vpack.c.b16 %v1395, %v1391
        %v1556 = vpack.c.b16 %v1396, %v1392
        %v1557 = vpack.c.b16 %v1397, %v1393
        %v1558 = vpack.c.b16 %v1402, %v1398
        %v1559 = vpack.c.b16 %v1403, %v1399
        %v1560 = vpack.c.b16 %v1404, %v1400
        %v1561 = vpack.c.b16 %v1405, %v1401
        %v1562 = vpack.c.b16 %v1410, %v1406
        %v1563 = vpack.c.b16 %v1411, %v1407
        %v1564 = vpack.c.b16 %v1412, %v1408
        %v1565 = vpack.c.b16 %v1413, %v1409
        %v1566 = vpack.c.b16 %v1418, %v1414
        %v1567 = vpack.c.b16 %v1419, %v1415
        %v1568 = vpack.c.b16 %v1420, %v1416
        %v1569 = vpack.c.b16 %v1421, %v1417
        %v1570 = vpack.c.b16 %v1426, %v1422
        %v1571 = vpack.c.b16 %v1427, %v1423
        %v1572 = vpack.c.b16 %v1428, %v1424
        %v1573 = vpack.c.b16 %v1429, %v1425
        %v1574 = vpack.c.b16 %v1434, %v1430
        %v1575 = vpack.c.b16 %v1435, %v1431
        %v1576 = vpack.c.b16 %v1436, %v1432
        %v1577 = vpack.c.b16 %v1437, %v1433
        %v1578 = vpack.c.b16 %v1442, %v1438
        %v1579 = vpack.c.b16 %v1443, %v1439
        %v1580 = vpack.c.b16 %v1444, %v1440
        %v1581 = vpack.c.b16 %v1445, %v1441
        %v1582 = vpack.c.b16 %v1450, %v1446
        %v1583 = vpack.c.b16 %v1451, %v1447
        %v1584 = vpack.c.b16 %v1452, %v1448
        %v1585 = vpack.c.b16 %v1453, %v1449
        %v1586 = vpack.c.b16 %v1458, %v1454
        %v1587 = vpack.c.b16 %v1459, %v1455
        %v1588 = vpack.c.b16 %v1460, %v1456
        %v1589 = vpack.c.b16 %v1461, %v1457
        %1718 = vmatprep.subr.bf16.mxu0 %v1491
        %1719 = vmatpush1.bf16.msra.mxu0 %v1490
        %1720 = vmatprep.subr.bf16.mxu0 %v1487
        %1721 = vmatpush1.bf16.msra.mxu0 %v1486
        %1722 = vmatprep.subr.bf16.mxu0 %v1483
        %1723 = vmatpush1.bf16.msra.mxu0 %v1482
        %1724 = vmatprep.subr.bf16.mxu0 %v1479
        %1725 = vmatpush1.bf16.msra.mxu0 %v1478
        %1726 = vmatprep.subr.bf16.mxu0 %v1475
        %1727 = vmatpush1.bf16.msra.mxu0 %v1474
        %1728 = vmatprep.subr.bf16.mxu0 %v1471
        %1729 = vmatpush1.bf16.msra.mxu0 %v1470
        %1730 = vmatprep.subr.bf16.mxu0 %v1467
        %1731 = vmatpush1.bf16.msra.mxu0 %v1466
        %1732 = vmatprep.subr.bf16.mxu0 %v1463
        %1733 = vmatpush1.bf16.msra.mxu0 %v1462
        %1734 = vmatprep.subr.bf16.mxu0 %v1523
        %1735 = vmatpush2.bf16.msra.mxu0 %v1522
        %1736 = vmatprep.subr.bf16.mxu0 %v1519
        %1737 = vmatpush2.bf16.msra.mxu0 %v1518
        %1738 = vmatprep.subr.bf16.mxu0 %v1515
        %1739 = vmatpush2.bf16.msra.mxu0 %v1514
        %1740 = vmatprep.subr.bf16.mxu0 %v1511
        %1741 = vmatpush2.bf16.msra.mxu0 %v1510
        %1742 = vmatprep.subr.bf16.mxu0 %v1507
        %1743 = vmatpush2.bf16.msra.mxu0 %v1506
        %1744 = vmatprep.subr.bf16.mxu0 %v1503
        %1745 = vmatpush2.bf16.msra.mxu0 %v1502
        %1746 = vmatprep.subr.bf16.mxu0 %v1499
        %1747 = vmatpush2.bf16.msra.mxu0 %v1498
        %1748 = vmatprep.subr.bf16.mxu0 %v1495
        %1749 = vmatpush2.bf16.msra.mxu0 %v1494
        %1750 = vmatprep.mubr.bf16.mxu0 %v896
        %1751 = vmatmul.mubr.bf16.gmra.mxu0 %v895
        %v1752 = vpop.f32.mrf.mxu0
        %v1753 = vadd.f32 %v1061, %v1752
        %v1754 = vpop.f32.mrf.mxu0
        %v1755 = vadd.f32 %v1065, %v1754
        %v1756 = vpop.f32.mrf.mxu0
        %v1757 = vadd.f32 %v1061, %v1756
        %v1758 = vpop.f32.mrf.mxu0
        %v1759 = vadd.f32 %v1065, %v1758
        %1760 = vmatprep.mubr.bf16.mxu0 %v900
        %1761 = vmatmul.mubr.bf16.gmra.mxu0 %v899
        %v1762 = vpop.f32.mrf.mxu0
        %v1763 = vadd.f32 %v1061, %v1762
        %v1764 = vpop.f32.mrf.mxu0
        %v1765 = vadd.f32 %v1065, %v1764
        %v1766 = vpop.f32.mrf.mxu0
        %v1767 = vadd.f32 %v1061, %v1766
        %v1768 = vpop.f32.mrf.mxu0
        %v1769 = vadd.f32 %v1065, %v1768
        %1770 = vmatprep.mubr.bf16.mxu0 %v904
        %1771 = vmatmul.mubr.bf16.gmra.mxu0 %v903
        %v1772 = vpop.f32.mrf.mxu0
        %v1773 = vadd.f32 %v1061, %v1772
        %v1774 = vpop.f32.mrf.mxu0
        %v1775 = vadd.f32 %v1065, %v1774
        %v1776 = vpop.f32.mrf.mxu0
        %v1777 = vadd.f32 %v1061, %v1776
        %v1778 = vpop.f32.mrf.mxu0
        %v1779 = vadd.f32 %v1065, %v1778
        %1780 = vmatprep.mubr.bf16.mxu0 %v908
        %1781 = vmatmul.mubr.bf16.gmra.mxu0 %v907
        %v1782 = vpop.f32.mrf.mxu0
        %v1783 = vadd.f32 %v1061, %v1782
        %v1784 = vpop.f32.mrf.mxu0
        %v1785 = vadd.f32 %v1065, %v1784
        %v1786 = vpop.f32.mrf.mxu0
        %v1787 = vadd.f32 %v1061, %v1786
        %v1788 = vpop.f32.mrf.mxu0
        %v1789 = vadd.f32 %v1065, %v1788
        %1790 = vmatprep.mubr.bf16.mxu0 %v912
        %1791 = vmatmul.mubr.bf16.gmra.mxu0 %v911
        %v1792 = vpop.f32.mrf.mxu0
        %v1793 = vadd.f32 %v1061, %v1792
        %v1794 = vpop.f32.mrf.mxu0
        %v1795 = vadd.f32 %v1065, %v1794
        %v1796 = vpop.f32.mrf.mxu0
        %v1797 = vadd.f32 %v1061, %v1796
        %v1798 = vpop.f32.mrf.mxu0
        %v1799 = vadd.f32 %v1065, %v1798
        %1800 = vmatprep.mubr.bf16.mxu0 %v916
        %1801 = vmatmul.mubr.bf16.gmra.mxu0 %v915
        %v1802 = vpop.f32.mrf.mxu0
        %v1803 = vadd.f32 %v1061, %v1802
        %v1804 = vpop.f32.mrf.mxu0
        %v1805 = vadd.f32 %v1065, %v1804
        %v1806 = vpop.f32.mrf.mxu0
        %v1807 = vadd.f32 %v1061, %v1806
        %v1808 = vpop.f32.mrf.mxu0
        %v1809 = vadd.f32 %v1065, %v1808
        %1810 = vmatprep.mubr.bf16.mxu0 %v920
        %1811 = vmatmul.mubr.bf16.gmra.mxu0 %v919
        %v1812 = vpop.f32.mrf.mxu0
        %v1813 = vadd.f32 %v1061, %v1812
        %v1814 = vpop.f32.mrf.mxu0
        %v1815 = vadd.f32 %v1065, %v1814
        %v1816 = vpop.f32.mrf.mxu0
        %v1817 = vadd.f32 %v1061, %v1816
        %v1818 = vpop.f32.mrf.mxu0
        %v1819 = vadd.f32 %v1065, %v1818
        %1820 = vmatprep.mubr.bf16.mxu0 %v924
        %1821 = vmatmul.mubr.bf16.gmra.mxu0 %v923
        %v1822 = vpop.f32.mrf.mxu0
        %v1823 = vadd.f32 %v1061, %v1822
        %v1824 = vpop.f32.mrf.mxu0
        %v1825 = vadd.f32 %v1065, %v1824
        %v1826 = vpop.f32.mrf.mxu0
        %v1827 = vadd.f32 %v1061, %v1826
        %v1828 = vpop.f32.mrf.mxu0
        %v1829 = vadd.f32 %v1065, %v1828
        %1830 = vdwg.mxu0
        %1831 = vmatprep.subr.bf16.mxu0 %v1555
        %1832 = vmatpush1.bf16.msra.mxu0 %v1554
        %1833 = vmatprep.subr.bf16.mxu0 %v1551
        %1834 = vmatpush1.bf16.msra.mxu0 %v1550
        %1835 = vmatprep.subr.bf16.mxu0 %v1547
        %1836 = vmatpush1.bf16.msra.mxu0 %v1546
        %1837 = vmatprep.subr.bf16.mxu0 %v1543
        %1838 = vmatpush1.bf16.msra.mxu0 %v1542
        %1839 = vmatprep.subr.bf16.mxu0 %v1539
        %1840 = vmatpush1.bf16.msra.mxu0 %v1538
        %1841 = vmatprep.subr.bf16.mxu0 %v1535
        %1842 = vmatpush1.bf16.msra.mxu0 %v1534
        %1843 = vmatprep.subr.bf16.mxu0 %v1531
        %1844 = vmatpush1.bf16.msra.mxu0 %v1530
        %1845 = vmatprep.subr.bf16.mxu0 %v1527
        %1846 = vmatpush1.bf16.msra.mxu0 %v1526
        %1847 = vmatprep.subr.bf16.mxu0 %v1587
        %1848 = vmatpush2.bf16.msra.mxu0 %v1586
        %1849 = vmatprep.subr.bf16.mxu0 %v1583
        %1850 = vmatpush2.bf16.msra.mxu0 %v1582
        %1851 = vmatprep.subr.bf16.mxu0 %v1579
        %1852 = vmatpush2.bf16.msra.mxu0 %v1578
        %1853 = vmatprep.subr.bf16.mxu0 %v1575
        %1854 = vmatpush2.bf16.msra.mxu0 %v1574
        %1855 = vmatprep.subr.bf16.mxu0 %v1571
        %1856 = vmatpush2.bf16.msra.mxu0 %v1570
        %1857 = vmatprep.subr.bf16.mxu0 %v1567
        %1858 = vmatpush2.bf16.msra.mxu0 %v1566
        %1859 = vmatprep.subr.bf16.mxu0 %v1563
        %1860 = vmatpush2.bf16.msra.mxu0 %v1562
        %1861 = vmatprep.subr.bf16.mxu0 %v1559
        %1862 = vmatpush2.bf16.msra.mxu0 %v1558
        %1863 = vmatprep.mubr.bf16.mxu0 %v898
        %1864 = vmatmul.mubr.bf16.gmra.mxu0 %v897
        %v1865 = vpop.f32.mrf.mxu0
        %v1866 = vadd.f32 %v1753, %v1865
        %v1867 = vpop.f32.mrf.mxu0
        %v1868 = vadd.f32 %v1755, %v1867
        %v1869 = vpop.f32.mrf.mxu0
        %v1870 = vadd.f32 %v1757, %v1869
        %v1871 = vpop.f32.mrf.mxu0
        %v1872 = vadd.f32 %v1759, %v1871
        %1873 = vmatprep.mubr.bf16.mxu0 %v902
        %1874 = vmatmul.mubr.bf16.gmra.mxu0 %v901
        %v1875 = vpop.f32.mrf.mxu0
        %v1876 = vadd.f32 %v1763, %v1875
        %v1877 = vpop.f32.mrf.mxu0
        %v1878 = vadd.f32 %v1765, %v1877
        %v1879 = vpop.f32.mrf.mxu0
        %v1880 = vadd.f32 %v1767, %v1879
        %v1881 = vpop.f32.mrf.mxu0
        %v1882 = vadd.f32 %v1769, %v1881
        %1883 = vmatprep.mubr.bf16.mxu0 %v906
        %1884 = vmatmul.mubr.bf16.gmra.mxu0 %v905
        %v1885 = vpop.f32.mrf.mxu0
        %v1886 = vadd.f32 %v1773, %v1885
        %v1887 = vpop.f32.mrf.mxu0
        %v1888 = vadd.f32 %v1775, %v1887
        %v1889 = vpop.f32.mrf.mxu0
        %v1890 = vadd.f32 %v1777, %v1889
        %v1891 = vpop.f32.mrf.mxu0
        %v1892 = vadd.f32 %v1779, %v1891
        %1893 = vmatprep.mubr.bf16.mxu0 %v910
        %1894 = vmatmul.mubr.bf16.gmra.mxu0 %v909
        %v1895 = vpop.f32.mrf.mxu0
        %v1896 = vadd.f32 %v1783, %v1895
        %v1897 = vpop.f32.mrf.mxu0
        %v1898 = vadd.f32 %v1785, %v1897
        %v1899 = vpop.f32.mrf.mxu0
        %v1900 = vadd.f32 %v1787, %v1899
        %v1901 = vpop.f32.mrf.mxu0
        %v1902 = vadd.f32 %v1789, %v1901
        %1903 = vmatprep.mubr.bf16.mxu0 %v914
        %1904 = vmatmul.mubr.bf16.gmra.mxu0 %v913
        %v1905 = vpop.f32.mrf.mxu0
        %v1906 = vadd.f32 %v1793, %v1905
        %v1907 = vpop.f32.mrf.mxu0
        %v1908 = vadd.f32 %v1795, %v1907
        %v1909 = vpop.f32.mrf.mxu0
        %v1910 = vadd.f32 %v1797, %v1909
        %v1911 = vpop.f32.mrf.mxu0
        %v1912 = vadd.f32 %v1799, %v1911
        %1913 = vmatprep.mubr.bf16.mxu0 %v918
        %1914 = vmatmul.mubr.bf16.gmra.mxu0 %v917
        %v1915 = vpop.f32.mrf.mxu0
        %v1916 = vadd.f32 %v1803, %v1915
        %v1917 = vpop.f32.mrf.mxu0
        %v1918 = vadd.f32 %v1805, %v1917
        %v1919 = vpop.f32.mrf.mxu0
        %v1920 = vadd.f32 %v1807, %v1919
        %v1921 = vpop.f32.mrf.mxu0
        %v1922 = vadd.f32 %v1809, %v1921
        %1923 = vmatprep.mubr.bf16.mxu0 %v922
        %1924 = vmatmul.mubr.bf16.gmra.mxu0 %v921
        %v1925 = vpop.f32.mrf.mxu0
        %v1926 = vadd.f32 %v1813, %v1925
        %v1927 = vpop.f32.mrf.mxu0
        %v1928 = vadd.f32 %v1815, %v1927
        %v1929 = vpop.f32.mrf.mxu0
        %v1930 = vadd.f32 %v1817, %v1929
        %v1931 = vpop.f32.mrf.mxu0
        %v1932 = vadd.f32 %v1819, %v1931
        %1933 = vmatprep.mubr.bf16.mxu0 %v926
        %1934 = vmatmul.mubr.bf16.gmra.mxu0 %v925
        %v1935 = vpop.f32.mrf.mxu0
        %v1936 = vadd.f32 %v1823, %v1935
        %v1937 = vpop.f32.mrf.mxu0
        %v1938 = vadd.f32 %v1825, %v1937
        %v1939 = vpop.f32.mrf.mxu0
        %v1940 = vadd.f32 %v1827, %v1939
        %v1941 = vpop.f32.mrf.mxu0
        %v1942 = vadd.f32 %v1829, %v1941
        %1943 = vdwg.mxu0
        %1944 = vmatprep.subr.bf16.mxu0 %v1493
        %1945 = vmatpush1.bf16.msra.mxu0 %v1492
        %1946 = vmatprep.subr.bf16.mxu0 %v1489
        %1947 = vmatpush1.bf16.msra.mxu0 %v1488
        %1948 = vmatprep.subr.bf16.mxu0 %v1485
        %1949 = vmatpush1.bf16.msra.mxu0 %v1484
        %1950 = vmatprep.subr.bf16.mxu0 %v1481
        %1951 = vmatpush1.bf16.msra.mxu0 %v1480
        %1952 = vmatprep.subr.bf16.mxu0 %v1477
        %1953 = vmatpush1.bf16.msra.mxu0 %v1476
        %1954 = vmatprep.subr.bf16.mxu0 %v1473
        %1955 = vmatpush1.bf16.msra.mxu0 %v1472
        %1956 = vmatprep.subr.bf16.mxu0 %v1469
        %1957 = vmatpush1.bf16.msra.mxu0 %v1468
        %1958 = vmatprep.subr.bf16.mxu0 %v1465
        %1959 = vmatpush1.bf16.msra.mxu0 %v1464
        %1960 = vmatprep.subr.bf16.mxu0 %v1525
        %1961 = vmatpush2.bf16.msra.mxu0 %v1524
        %1962 = vmatprep.subr.bf16.mxu0 %v1521
        %1963 = vmatpush2.bf16.msra.mxu0 %v1520
        %1964 = vmatprep.subr.bf16.mxu0 %v1517
        %1965 = vmatpush2.bf16.msra.mxu0 %v1516
        %1966 = vmatprep.subr.bf16.mxu0 %v1513
        %1967 = vmatpush2.bf16.msra.mxu0 %v1512
        %1968 = vmatprep.subr.bf16.mxu0 %v1509
        %1969 = vmatpush2.bf16.msra.mxu0 %v1508
        %1970 = vmatprep.subr.bf16.mxu0 %v1505
        %1971 = vmatpush2.bf16.msra.mxu0 %v1504
        %1972 = vmatprep.subr.bf16.mxu0 %v1501
        %1973 = vmatpush2.bf16.msra.mxu0 %v1500
        %1974 = vmatprep.subr.bf16.mxu0 %v1497
        %1975 = vmatpush2.bf16.msra.mxu0 %v1496
        %1976 = vmatprep.mubr.bf16.mxu0 %v896
        %1977 = vmatmul.mubr.bf16.gmra.mxu0 %v895
        %v1978 = vpop.f32.mrf.mxu0
        %v1979 = vadd.f32 %v1069, %v1978
        %v1980 = vpop.f32.mrf.mxu0
        %v1981 = vadd.f32 %v1073, %v1980
        %v1982 = vpop.f32.mrf.mxu0
        %v1983 = vadd.f32 %v1069, %v1982
        %v1984 = vpop.f32.mrf.mxu0
        %v1985 = vadd.f32 %v1073, %v1984
        %1986 = vmatprep.mubr.bf16.mxu0 %v900
        %1987 = vmatmul.mubr.bf16.gmra.mxu0 %v899
        %v1988 = vpop.f32.mrf.mxu0
        %v1989 = vadd.f32 %v1069, %v1988
        %v1990 = vpop.f32.mrf.mxu0
        %v1991 = vadd.f32 %v1073, %v1990
        %v1992 = vpop.f32.mrf.mxu0
        %v1993 = vadd.f32 %v1069, %v1992
        %v1994 = vpop.f32.mrf.mxu0
        %v1995 = vadd.f32 %v1073, %v1994
        %1996 = vmatprep.mubr.bf16.mxu0 %v904
        %1997 = vmatmul.mubr.bf16.gmra.mxu0 %v903
        %v1998 = vpop.f32.mrf.mxu0
        %v1999 = vadd.f32 %v1069, %v1998
        %v2000 = vpop.f32.mrf.mxu0
        %v2001 = vadd.f32 %v1073, %v2000
        %v2002 = vpop.f32.mrf.mxu0
        %v2003 = vadd.f32 %v1069, %v2002
        %v2004 = vpop.f32.mrf.mxu0
        %v2005 = vadd.f32 %v1073, %v2004
        %2006 = vmatprep.mubr.bf16.mxu0 %v908
        %2007 = vmatmul.mubr.bf16.gmra.mxu0 %v907
        %v2008 = vpop.f32.mrf.mxu0
        %v2009 = vadd.f32 %v1069, %v2008
        %v2010 = vpop.f32.mrf.mxu0
        %v2011 = vadd.f32 %v1073, %v2010
        %v2012 = vpop.f32.mrf.mxu0
        %v2013 = vadd.f32 %v1069, %v2012
        %v2014 = vpop.f32.mrf.mxu0
        %v2015 = vadd.f32 %v1073, %v2014
        %2016 = vmatprep.mubr.bf16.mxu0 %v912
        %2017 = vmatmul.mubr.bf16.gmra.mxu0 %v911
        %v2018 = vpop.f32.mrf.mxu0
        %v2019 = vadd.f32 %v1069, %v2018
        %v2020 = vpop.f32.mrf.mxu0
        %v2021 = vadd.f32 %v1073, %v2020
        %v2022 = vpop.f32.mrf.mxu0
        %v2023 = vadd.f32 %v1069, %v2022
        %v2024 = vpop.f32.mrf.mxu0
        %v2025 = vadd.f32 %v1073, %v2024
        %2026 = vmatprep.mubr.bf16.mxu0 %v916
        %2027 = vmatmul.mubr.bf16.gmra.mxu0 %v915
        %v2028 = vpop.f32.mrf.mxu0
        %v2029 = vadd.f32 %v1069, %v2028
        %v2030 = vpop.f32.mrf.mxu0
        %v2031 = vadd.f32 %v1073, %v2030
        %v2032 = vpop.f32.mrf.mxu0
        %v2033 = vadd.f32 %v1069, %v2032
        %v2034 = vpop.f32.mrf.mxu0
        %v2035 = vadd.f32 %v1073, %v2034
        %2036 = vmatprep.mubr.bf16.mxu0 %v920
        %2037 = vmatmul.mubr.bf16.gmra.mxu0 %v919
        %v2038 = vpop.f32.mrf.mxu0
        %v2039 = vadd.f32 %v1069, %v2038
        %v2040 = vpop.f32.mrf.mxu0
        %v2041 = vadd.f32 %v1073, %v2040
        %v2042 = vpop.f32.mrf.mxu0
        %v2043 = vadd.f32 %v1069, %v2042
        %v2044 = vpop.f32.mrf.mxu0
        %v2045 = vadd.f32 %v1073, %v2044
        %2046 = vmatprep.mubr.bf16.mxu0 %v924
        %2047 = vmatmul.mubr.bf16.gmra.mxu0 %v923
        %v2048 = vpop.f32.mrf.mxu0
        %v2049 = vadd.f32 %v1069, %v2048
        %v2050 = vpop.f32.mrf.mxu0
        %v2051 = vadd.f32 %v1073, %v2050
        %v2052 = vpop.f32.mrf.mxu0
        %v2053 = vadd.f32 %v1069, %v2052
        %v2054 = vpop.f32.mrf.mxu0
        %v2055 = vadd.f32 %v1073, %v2054
        %2056 = vdwg.mxu0
        %2057 = vmatprep.subr.bf16.mxu0 %v1557
        %2058 = vmatpush1.bf16.msra.mxu0 %v1556
        %2059 = vmatprep.subr.bf16.mxu0 %v1553
        %2060 = vmatpush1.bf16.msra.mxu0 %v1552
        %2061 = vmatprep.subr.bf16.mxu0 %v1549
        %2062 = vmatpush1.bf16.msra.mxu0 %v1548
        %2063 = vmatprep.subr.bf16.mxu0 %v1545
        %2064 = vmatpush1.bf16.msra.mxu0 %v1544
        %2065 = vmatprep.subr.bf16.mxu0 %v1541
        %2066 = vmatpush1.bf16.msra.mxu0 %v1540
        %2067 = vmatprep.subr.bf16.mxu0 %v1537
        %2068 = vmatpush1.bf16.msra.mxu0 %v1536
        %2069 = vmatprep.subr.bf16.mxu0 %v1533
        %2070 = vmatpush1.bf16.msra.mxu0 %v1532
        %2071 = vmatprep.subr.bf16.mxu0 %v1529
        %2072 = vmatpush1.bf16.msra.mxu0 %v1528
        %2073 = vmatprep.subr.bf16.mxu0 %v1589
        %2074 = vmatpush2.bf16.msra.mxu0 %v1588
        %2075 = vmatprep.subr.bf16.mxu0 %v1585
        %2076 = vmatpush2.bf16.msra.mxu0 %v1584
        %2077 = vmatprep.subr.bf16.mxu0 %v1581
        %2078 = vmatpush2.bf16.msra.mxu0 %v1580
        %2079 = vmatprep.subr.bf16.mxu0 %v1577
        %2080 = vmatpush2.bf16.msra.mxu0 %v1576
        %2081 = vmatprep.subr.bf16.mxu0 %v1573
        %2082 = vmatpush2.bf16.msra.mxu0 %v1572
        %2083 = vmatprep.subr.bf16.mxu0 %v1569
        %2084 = vmatpush2.bf16.msra.mxu0 %v1568
        %2085 = vmatprep.subr.bf16.mxu0 %v1565
        %2086 = vmatpush2.bf16.msra.mxu0 %v1564
        %2087 = vmatprep.subr.bf16.mxu0 %v1561
        %2088 = vmatpush2.bf16.msra.mxu0 %v1560
        %2089 = vmatprep.mubr.bf16.mxu0 %v898
        %2090 = vmatmul.mubr.bf16.gmra.mxu0 %v897
        %v2091 = vpop.f32.mrf.mxu0
        %v2092 = vadd.f32 %v1979, %v2091
        %v2093 = vpop.f32.mrf.mxu0
        %v2094 = vadd.f32 %v1981, %v2093
        %v2095 = vpop.f32.mrf.mxu0
        %v2096 = vadd.f32 %v1983, %v2095
        %v2097 = vpop.f32.mrf.mxu0
        %v2098 = vadd.f32 %v1985, %v2097
        %2099 = vmatprep.mubr.bf16.mxu0 %v902
        %2100 = vmatmul.mubr.bf16.gmra.mxu0 %v901
        %v2101 = vpop.f32.mrf.mxu0
        %v2102 = vadd.f32 %v1989, %v2101
        %v2103 = vpop.f32.mrf.mxu0
        %v2104 = vadd.f32 %v1991, %v2103
        %v2105 = vpop.f32.mrf.mxu0
        %v2106 = vadd.f32 %v1993, %v2105
        %v2107 = vpop.f32.mrf.mxu0
        %v2108 = vadd.f32 %v1995, %v2107
        %2109 = vmatprep.mubr.bf16.mxu0 %v906
        %2110 = vmatmul.mubr.bf16.gmra.mxu0 %v905
        %v2111 = vpop.f32.mrf.mxu0
        %v2112 = vadd.f32 %v1999, %v2111
        %v2113 = vpop.f32.mrf.mxu0
        %v2114 = vadd.f32 %v2001, %v2113
        %v2115 = vpop.f32.mrf.mxu0
        %v2116 = vadd.f32 %v2003, %v2115
        %v2117 = vpop.f32.mrf.mxu0
        %v2118 = vadd.f32 %v2005, %v2117
        %2119 = vmatprep.mubr.bf16.mxu0 %v910
        %2120 = vmatmul.mubr.bf16.gmra.mxu0 %v909
        %v2121 = vpop.f32.mrf.mxu0
        %v2122 = vadd.f32 %v2009, %v2121
        %v2123 = vpop.f32.mrf.mxu0
        %v2124 = vadd.f32 %v2011, %v2123
        %v2125 = vpop.f32.mrf.mxu0
        %v2126 = vadd.f32 %v2013, %v2125
        %v2127 = vpop.f32.mrf.mxu0
        %v2128 = vadd.f32 %v2015, %v2127
        %2129 = vmatprep.mubr.bf16.mxu0 %v914
        %2130 = vmatmul.mubr.bf16.gmra.mxu0 %v913
        %v2131 = vpop.f32.mrf.mxu0
        %v2132 = vadd.f32 %v2019, %v2131
        %v2133 = vpop.f32.mrf.mxu0
        %v2134 = vadd.f32 %v2021, %v2133
        %v2135 = vpop.f32.mrf.mxu0
        %v2136 = vadd.f32 %v2023, %v2135
        %v2137 = vpop.f32.mrf.mxu0
        %v2138 = vadd.f32 %v2025, %v2137
        %2139 = vmatprep.mubr.bf16.mxu0 %v918
        %2140 = vmatmul.mubr.bf16.gmra.mxu0 %v917
        %v2141 = vpop.f32.mrf.mxu0
        %v2142 = vadd.f32 %v2029, %v2141
        %v2143 = vpop.f32.mrf.mxu0
        %v2144 = vadd.f32 %v2031, %v2143
        %v2145 = vpop.f32.mrf.mxu0
        %v2146 = vadd.f32 %v2033, %v2145
        %v2147 = vpop.f32.mrf.mxu0
        %v2148 = vadd.f32 %v2035, %v2147
        %2149 = vmatprep.mubr.bf16.mxu0 %v922
        %2150 = vmatmul.mubr.bf16.gmra.mxu0 %v921
        %v2151 = vpop.f32.mrf.mxu0
        %v2152 = vadd.f32 %v2039, %v2151
        %v2153 = vpop.f32.mrf.mxu0
        %v2154 = vadd.f32 %v2041, %v2153
        %v2155 = vpop.f32.mrf.mxu0
        %v2156 = vadd.f32 %v2043, %v2155
        %v2157 = vpop.f32.mrf.mxu0
        %v2158 = vadd.f32 %v2045, %v2157
        %2159 = vmatprep.mubr.bf16.mxu0 %v926
        %2160 = vmatmul.mubr.bf16.gmra.mxu0 %v925
        %v2161 = vpop.f32.mrf.mxu0
        %v2162 = vadd.f32 %v2049, %v2161
        %v2163 = vpop.f32.mrf.mxu0
        %v2164 = vadd.f32 %v2051, %v2163
        %v2165 = vpop.f32.mrf.mxu0
        %v2166 = vadd.f32 %v2053, %v2165
        %v2167 = vpop.f32.mrf.mxu0
        %v2168 = vadd.f32 %v2055, %v2167
        %2169 = vdwg.mxu0
        %v2170 = vmax.f32 %v1866, 0.0
        %v2171 = vmax.f32 %v1868, 0.0
        %v2172 = vmax.f32 %v2092, 0.0
        %v2173 = vmax.f32 %v2094, 0.0
        %v2174 = vmax.f32 %v1870, 0.0
        %v2175 = vmax.f32 %v1872, 0.0
        %v2176 = vmax.f32 %v2096, 0.0
        %v2177 = vmax.f32 %v2098, 0.0
        %v2178 = vmax.f32 %v1876, 0.0
        %v2179 = vmax.f32 %v1878, 0.0
        %v2180 = vmax.f32 %v2102, 0.0
        %v2181 = vmax.f32 %v2104, 0.0
        %v2182 = vmax.f32 %v1880, 0.0
        %v2183 = vmax.f32 %v1882, 0.0
        %v2184 = vmax.f32 %v2106, 0.0
        %v2185 = vmax.f32 %v2108, 0.0
        %v2186 = vmax.f32 %v1886, 0.0
        %v2187 = vmax.f32 %v1888, 0.0
        %v2188 = vmax.f32 %v2112, 0.0
        %v2189 = vmax.f32 %v2114, 0.0
        %v2190 = vmax.f32 %v1890, 0.0
        %v2191 = vmax.f32 %v1892, 0.0
        %v2192 = vmax.f32 %v2116, 0.0
        %v2193 = vmax.f32 %v2118, 0.0
        %v2194 = vmax.f32 %v1896, 0.0
        %v2195 = vmax.f32 %v1898, 0.0
        %v2196 = vmax.f32 %v2122, 0.0
        %v2197 = vmax.f32 %v2124, 0.0
        %v2198 = vmax.f32 %v1900, 0.0
        %v2199 = vmax.f32 %v1902, 0.0
        %v2200 = vmax.f32 %v2126, 0.0
        %v2201 = vmax.f32 %v2128, 0.0
        %v2202 = vmax.f32 %v1906, 0.0
        %v2203 = vmax.f32 %v1908, 0.0
        %v2204 = vmax.f32 %v2132, 0.0
        %v2205 = vmax.f32 %v2134, 0.0
        %v2206 = vmax.f32 %v1910, 0.0
        %v2207 = vmax.f32 %v1912, 0.0
        %v2208 = vmax.f32 %v2136, 0.0
        %v2209 = vmax.f32 %v2138, 0.0
        %v2210 = vmax.f32 %v1916, 0.0
        %v2211 = vmax.f32 %v1918, 0.0
        %v2212 = vmax.f32 %v2142, 0.0
        %v2213 = vmax.f32 %v2144, 0.0
        %v2214 = vmax.f32 %v1920, 0.0
        %v2215 = vmax.f32 %v1922, 0.0
        %v2216 = vmax.f32 %v2146, 0.0
        %v2217 = vmax.f32 %v2148, 0.0
        %v2218 = vmax.f32 %v1926, 0.0
        %v2219 = vmax.f32 %v1928, 0.0
        %v2220 = vmax.f32 %v2152, 0.0
        %v2221 = vmax.f32 %v2154, 0.0
        %v2222 = vmax.f32 %v1930, 0.0
        %v2223 = vmax.f32 %v1932, 0.0
        %v2224 = vmax.f32 %v2156, 0.0
        %v2225 = vmax.f32 %v2158, 0.0
        %v2226 = vmax.f32 %v1936, 0.0
        %v2227 = vmax.f32 %v1938, 0.0
        %v2228 = vmax.f32 %v2162, 0.0
        %v2229 = vmax.f32 %v2164, 0.0
        %v2230 = vmax.f32 %v1940, 0.0
        %v2231 = vmax.f32 %v1942, 0.0
        %v2232 = vmax.f32 %v2166, 0.0
        %v2233 = vmax.f32 %v2168, 0.0
        %v2234 = vpack.c.bf16 %v2174, %v2170
        %v2235 = vpack.c.bf16 %v2175, %v2171
        %v2236 = vpack.c.bf16 %v2176, %v2172
        %v2237 = vpack.c.bf16 %v2177, %v2173
        %v2238 = vpack.c.bf16 %v2182, %v2178
        %v2239 = vpack.c.bf16 %v2183, %v2179
        %v2240 = vpack.c.bf16 %v2184, %v2180
        %v2241 = vpack.c.bf16 %v2185, %v2181
        %v2242 = vpack.c.bf16 %v2190, %v2186
        %v2243 = vpack.c.bf16 %v2191, %v2187
        %v2244 = vpack.c.bf16 %v2192, %v2188
        %v2245 = vpack.c.bf16 %v2193, %v2189
        %v2246 = vpack.c.bf16 %v2198, %v2194
        %v2247 = vpack.c.bf16 %v2199, %v2195
        %v2248 = vpack.c.bf16 %v2200, %v2196
        %v2249 = vpack.c.bf16 %v2201, %v2197
        %v2250 = vpack.c.bf16 %v2206, %v2202
        %v2251 = vpack.c.bf16 %v2207, %v2203
        %v2252 = vpack.c.bf16 %v2208, %v2204
        %v2253 = vpack.c.bf16 %v2209, %v2205
        %v2254 = vpack.c.bf16 %v2214, %v2210
        %v2255 = vpack.c.bf16 %v2215, %v2211
        %v2256 = vpack.c.bf16 %v2216, %v2212
        %v2257 = vpack.c.bf16 %v2217, %v2213
        %v2258 = vpack.c.bf16 %v2222, %v2218
        %v2259 = vpack.c.bf16 %v2223, %v2219
        %v2260 = vpack.c.bf16 %v2224, %v2220
        %v2261 = vpack.c.bf16 %v2225, %v2221
        %v2262 = vpack.c.bf16 %v2230, %v2226
        %v2263 = vpack.c.bf16 %v2231, %v2227
        %v2264 = vpack.c.bf16 %v2232, %v2228
        %v2265 = vpack.c.bf16 %v2233, %v2229
        %s2266 = scalar_lea.vmem [#allocation4], 1024
        %v2267 = vld [vmem:[%s2266] sm:$0xff]
        %v2268 = vld [vmem:[%s2266 + $0x8] sm:$0xff]
        %v2269 = vld [vmem:[%s2266 + $0x10] sm:$0xff]
        %v2270 = vld [vmem:[%s2266 + $0x18] sm:$0xff]
        %v2271 = vld [vmem:[%s2266 + $0x20] sm:$0xff]
        %v2272 = vld [vmem:[%s2266 + $0x28] sm:$0xff]
        %v2273 = vld [vmem:[%s2266 + $0x30] sm:$0xff]
        %v2274 = vld [vmem:[%s2266 + $0x38] sm:$0xff]
        %v2275 = vld [vmem:[%s2266 + $0x40] sm:$0xff]
        %v2276 = vld [vmem:[%s2266 + $0x48] sm:$0xff]
        %v2277 = vld [vmem:[%s2266 + $0x50] sm:$0xff]
        %v2278 = vld [vmem:[%s2266 + $0x58] sm:$0xff]
        %v2279 = vld [vmem:[%s2266 + $0x60] sm:$0xff]
        %v2280 = vld [vmem:[%s2266 + $0x68] sm:$0xff]
        %v2281 = vld [vmem:[%s2266 + $0x70] sm:$0xff]
        %v2282 = vld [vmem:[%s2266 + $0x78] sm:$0xff]
        %v2283 = vld [vmem:[%s2266 + $0x80] sm:$0xff]
        %v2284 = vld [vmem:[%s2266 + $0x88] sm:$0xff]
        %v2285 = vld [vmem:[%s2266 + $0x90] sm:$0xff]
        %v2286 = vld [vmem:[%s2266 + $0x98] sm:$0xff]
        %v2287 = vld [vmem:[%s2266 + $0xa0] sm:$0xff]
        %v2288 = vld [vmem:[%s2266 + $0xa8] sm:$0xff]
        %v2289 = vld [vmem:[%s2266 + $0xb0] sm:$0xff]
        %v2290 = vld [vmem:[%s2266 + $0xb8] sm:$0xff]
        %v2291 = vld [vmem:[%s2266 + $0xc0] sm:$0xff]
        %v2292 = vld [vmem:[%s2266 + $0xc8] sm:$0xff]
        %v2293 = vld [vmem:[%s2266 + $0xd0] sm:$0xff]
        %v2294 = vld [vmem:[%s2266 + $0xd8] sm:$0xff]
        %v2295 = vld [vmem:[%s2266 + $0xe0] sm:$0xff]
        %v2296 = vld [vmem:[%s2266 + $0xe8] sm:$0xff]
        %v2297 = vld [vmem:[%s2266 + $0xf0] sm:$0xff]
        %v2298 = vld [vmem:[%s2266 + $0xf8] sm:$0xff]
        %v2299 = vld [vmem:[%s2266 + $0x100] sm:$0xff]
        %v2300 = vld [vmem:[%s2266 + $0x108] sm:$0xff]
        %v2301 = vld [vmem:[%s2266 + $0x110] sm:$0xff]
        %v2302 = vld [vmem:[%s2266 + $0x118] sm:$0xff]
        %v2303 = vld [vmem:[%s2266 + $0x120] sm:$0xff]
        %v2304 = vld [vmem:[%s2266 + $0x128] sm:$0xff]
        %v2305 = vld [vmem:[%s2266 + $0x130] sm:$0xff]
        %v2306 = vld [vmem:[%s2266 + $0x138] sm:$0xff]
        %v2307 = vld [vmem:[%s2266 + $0x140] sm:$0xff]
        %v2308 = vld [vmem:[%s2266 + $0x148] sm:$0xff]
        %v2309 = vld [vmem:[%s2266 + $0x150] sm:$0xff]
        %v2310 = vld [vmem:[%s2266 + $0x158] sm:$0xff]
        %v2311 = vld [vmem:[%s2266 + $0x160] sm:$0xff]
        %v2312 = vld [vmem:[%s2266 + $0x168] sm:$0xff]
        %v2313 = vld [vmem:[%s2266 + $0x170] sm:$0xff]
        %v2314 = vld [vmem:[%s2266 + $0x178] sm:$0xff]
        %v2315 = vld [vmem:[%s2266 + $0x180] sm:$0xff]
        %v2316 = vld [vmem:[%s2266 + $0x188] sm:$0xff]
        %v2317 = vld [vmem:[%s2266 + $0x190] sm:$0xff]
        %v2318 = vld [vmem:[%s2266 + $0x198] sm:$0xff]
        %v2319 = vld [vmem:[%s2266 + $0x1a0] sm:$0xff]
        %v2320 = vld [vmem:[%s2266 + $0x1a8] sm:$0xff]
        %v2321 = vld [vmem:[%s2266 + $0x1b0] sm:$0xff]
        %v2322 = vld [vmem:[%s2266 + $0x1b8] sm:$0xff]
        %v2323 = vld [vmem:[%s2266 + $0x1c0] sm:$0xff]
        %v2324 = vld [vmem:[%s2266 + $0x1c8] sm:$0xff]
        %v2325 = vld [vmem:[%s2266 + $0x1d0] sm:$0xff]
        %v2326 = vld [vmem:[%s2266 + $0x1d8] sm:$0xff]
        %v2327 = vld [vmem:[%s2266 + $0x1e0] sm:$0xff]
        %v2328 = vld [vmem:[%s2266 + $0x1e8] sm:$0xff]
        %v2329 = vld [vmem:[%s2266 + $0x1f0] sm:$0xff]
        %v2330 = vld [vmem:[%s2266 + $0x1f8] sm:$0xff]
        %v2331 = vld [vmem:[%s2266 + $0x200] sm:$0xff]
        %v2332 = vld [vmem:[%s2266 + $0x208] sm:$0xff]
        %v2333 = vld [vmem:[%s2266 + $0x210] sm:$0xff]
        %v2334 = vld [vmem:[%s2266 + $0x218] sm:$0xff]
        %v2335 = vld [vmem:[%s2266 + $0x220] sm:$0xff]
        %v2336 = vld [vmem:[%s2266 + $0x228] sm:$0xff]
        %v2337 = vld [vmem:[%s2266 + $0x230] sm:$0xff]
        %v2338 = vld [vmem:[%s2266 + $0x238] sm:$0xff]
        %v2339 = vld [vmem:[%s2266 + $0x240] sm:$0xff]
        %v2340 = vld [vmem:[%s2266 + $0x248] sm:$0xff]
        %v2341 = vld [vmem:[%s2266 + $0x250] sm:$0xff]
        %v2342 = vld [vmem:[%s2266 + $0x258] sm:$0xff]
        %v2343 = vld [vmem:[%s2266 + $0x260] sm:$0xff]
        %v2344 = vld [vmem:[%s2266 + $0x268] sm:$0xff]
        %v2345 = vld [vmem:[%s2266 + $0x270] sm:$0xff]
        %v2346 = vld [vmem:[%s2266 + $0x278] sm:$0xff]
        %v2347 = vld [vmem:[%s2266 + $0x280] sm:$0xff]
        %v2348 = vld [vmem:[%s2266 + $0x288] sm:$0xff]
        %v2349 = vld [vmem:[%s2266 + $0x290] sm:$0xff]
        %v2350 = vld [vmem:[%s2266 + $0x298] sm:$0xff]
        %v2351 = vld [vmem:[%s2266 + $0x2a0] sm:$0xff]
        %v2352 = vld [vmem:[%s2266 + $0x2a8] sm:$0xff]
        %v2353 = vld [vmem:[%s2266 + $0x2b0] sm:$0xff]
        %v2354 = vld [vmem:[%s2266 + $0x2b8] sm:$0xff]
        %v2355 = vld [vmem:[%s2266 + $0x2c0] sm:$0xff]
        %v2356 = vld [vmem:[%s2266 + $0x2c8] sm:$0xff]
        %v2357 = vld [vmem:[%s2266 + $0x2d0] sm:$0xff]
        %v2358 = vld [vmem:[%s2266 + $0x2d8] sm:$0xff]
        %v2359 = vld [vmem:[%s2266 + $0x2e0] sm:$0xff]
        %v2360 = vld [vmem:[%s2266 + $0x2e8] sm:$0xff]
        %v2361 = vld [vmem:[%s2266 + $0x2f0] sm:$0xff]
        %v2362 = vld [vmem:[%s2266 + $0x2f8] sm:$0xff]
        %v2363 = vld [vmem:[%s2266 + $0x300] sm:$0xff]
        %v2364 = vld [vmem:[%s2266 + $0x308] sm:$0xff]
        %v2365 = vld [vmem:[%s2266 + $0x310] sm:$0xff]
        %v2366 = vld [vmem:[%s2266 + $0x318] sm:$0xff]
        %v2367 = vld [vmem:[%s2266 + $0x320] sm:$0xff]
        %v2368 = vld [vmem:[%s2266 + $0x328] sm:$0xff]
        %v2369 = vld [vmem:[%s2266 + $0x330] sm:$0xff]
        %v2370 = vld [vmem:[%s2266 + $0x338] sm:$0xff]
        %v2371 = vld [vmem:[%s2266 + $0x340] sm:$0xff]
        %v2372 = vld [vmem:[%s2266 + $0x348] sm:$0xff]
        %v2373 = vld [vmem:[%s2266 + $0x350] sm:$0xff]
        %v2374 = vld [vmem:[%s2266 + $0x358] sm:$0xff]
        %v2375 = vld [vmem:[%s2266 + $0x360] sm:$0xff]
        %v2376 = vld [vmem:[%s2266 + $0x368] sm:$0xff]
        %v2377 = vld [vmem:[%s2266 + $0x370] sm:$0xff]
        %v2378 = vld [vmem:[%s2266 + $0x378] sm:$0xff]
        %v2379 = vld [vmem:[%s2266 + $0x380] sm:$0xff]
        %v2380 = vld [vmem:[%s2266 + $0x388] sm:$0xff]
        %v2381 = vld [vmem:[%s2266 + $0x390] sm:$0xff]
        %v2382 = vld [vmem:[%s2266 + $0x398] sm:$0xff]
        %v2383 = vld [vmem:[%s2266 + $0x3a0] sm:$0xff]
        %v2384 = vld [vmem:[%s2266 + $0x3a8] sm:$0xff]
        %v2385 = vld [vmem:[%s2266 + $0x3b0] sm:$0xff]
        %v2386 = vld [vmem:[%s2266 + $0x3b8] sm:$0xff]
        %v2387 = vld [vmem:[%s2266 + $0x3c0] sm:$0xff]
        %v2388 = vld [vmem:[%s2266 + $0x3c8] sm:$0xff]
        %v2389 = vld [vmem:[%s2266 + $0x3d0] sm:$0xff]
        %v2390 = vld [vmem:[%s2266 + $0x3d8] sm:$0xff]
        %v2391 = vld [vmem:[%s2266 + $0x3e0] sm:$0xff]
        %v2392 = vld [vmem:[%s2266 + $0x3e8] sm:$0xff]
        %v2393 = vld [vmem:[%s2266 + $0x3f0] sm:$0xff]
        %v2394 = vld [vmem:[%s2266 + $0x3f8] sm:$0xff]
        %s2395 = scalar_lea.vmem [#allocation7], 8
        %v2396 = vld [vmem:[%s2395] sm:$0xf]
        %v2398 = vlaneseq
        %v2399 = vshrl.u32 %v2398, 7
        %v2400 = vsub.s32 0, %v2399
        %v2401 = vrot.slane %v2396, %v2400
        %v2402 = vlaneseq
        %v2403 = vshrl.u32 %v2402, 7
        %v2404 = vsub.s32 1, %v2403
        %v2405 = vrot.slane %v2396, %v2404
        %v2406 = vlaneseq
        %v2407 = vshrl.u32 %v2406, 7
        %v2408 = vsub.s32 2, %v2407
        %v2409 = vrot.slane %v2396, %v2408
        %v2410 = vlaneseq
        %v2411 = vshrl.u32 %v2410, 7
        %v2412 = vsub.s32 3, %v2411
        %v2413 = vrot.slane %v2396, %v2412
        %v2546 = vunpack.c.l.b16 %v2267
        %v2547 = vunpack.c.h.b16 %v2267
        %v2548 = vunpack.c.l.b16 %v2268
        %v2549 = vunpack.c.h.b16 %v2268
        %v2550 = vunpack.c.l.b16 %v2269
        %v2551 = vunpack.c.h.b16 %v2269
        %v2552 = vunpack.c.l.b16 %v2270
        %v2553 = vunpack.c.h.b16 %v2270
        %v2554 = vunpack.c.l.b16 %v2271
        %v2555 = vunpack.c.h.b16 %v2271
        %v2556 = vunpack.c.l.b16 %v2272
        %v2557 = vunpack.c.h.b16 %v2272
        %v2558 = vunpack.c.l.b16 %v2273
        %v2559 = vunpack.c.h.b16 %v2273
        %v2560 = vunpack.c.l.b16 %v2274
        %v2561 = vunpack.c.h.b16 %v2274
        %v2562 = vunpack.c.l.b16 %v2275
        %v2563 = vunpack.c.h.b16 %v2275
        %v2564 = vunpack.c.l.b16 %v2276
        %v2565 = vunpack.c.h.b16 %v2276
        %v2566 = vunpack.c.l.b16 %v2277
        %v2567 = vunpack.c.h.b16 %v2277
        %v2568 = vunpack.c.l.b16 %v2278
        %v2569 = vunpack.c.h.b16 %v2278
        %v2570 = vunpack.c.l.b16 %v2279
        %v2571 = vunpack.c.h.b16 %v2279
        %v2572 = vunpack.c.l.b16 %v2280
        %v2573 = vunpack.c.h.b16 %v2280
        %v2574 = vunpack.c.l.b16 %v2281
        %v2575 = vunpack.c.h.b16 %v2281
        %v2576 = vunpack.c.l.b16 %v2282
        %v2577 = vunpack.c.h.b16 %v2282
        %v2578 = vunpack.c.l.b16 %v2283
        %v2579 = vunpack.c.h.b16 %v2283
        %v2580 = vunpack.c.l.b16 %v2284
        %v2581 = vunpack.c.h.b16 %v2284
        %v2582 = vunpack.c.l.b16 %v2285
        %v2583 = vunpack.c.h.b16 %v2285
        %v2584 = vunpack.c.l.b16 %v2286
        %v2585 = vunpack.c.h.b16 %v2286
        %v2586 = vunpack.c.l.b16 %v2287
        %v2587 = vunpack.c.h.b16 %v2287
        %v2588 = vunpack.c.l.b16 %v2288
        %v2589 = vunpack.c.h.b16 %v2288
        %v2590 = vunpack.c.l.b16 %v2289
        %v2591 = vunpack.c.h.b16 %v2289
        %v2592 = vunpack.c.l.b16 %v2290
        %v2593 = vunpack.c.h.b16 %v2290
        %v2594 = vunpack.c.l.b16 %v2291
        %v2595 = vunpack.c.h.b16 %v2291
        %v2596 = vunpack.c.l.b16 %v2292
        %v2597 = vunpack.c.h.b16 %v2292
        %v2598 = vunpack.c.l.b16 %v2293
        %v2599 = vunpack.c.h.b16 %v2293
        %v2600 = vunpack.c.l.b16 %v2294
        %v2601 = vunpack.c.h.b16 %v2294
        %v2602 = vunpack.c.l.b16 %v2295
        %v2603 = vunpack.c.h.b16 %v2295
        %v2604 = vunpack.c.l.b16 %v2296
        %v2605 = vunpack.c.h.b16 %v2296
        %v2606 = vunpack.c.l.b16 %v2297
        %v2607 = vunpack.c.h.b16 %v2297
        %v2608 = vunpack.c.l.b16 %v2298
        %v2609 = vunpack.c.h.b16 %v2298
        %v2610 = vunpack.c.l.b16 %v2299
        %v2611 = vunpack.c.h.b16 %v2299
        %v2612 = vunpack.c.l.b16 %v2300
        %v2613 = vunpack.c.h.b16 %v2300
        %v2614 = vunpack.c.l.b16 %v2301
        %v2615 = vunpack.c.h.b16 %v2301
        %v2616 = vunpack.c.l.b16 %v2302
        %v2617 = vunpack.c.h.b16 %v2302
        %v2618 = vunpack.c.l.b16 %v2303
        %v2619 = vunpack.c.h.b16 %v2303
        %v2620 = vunpack.c.l.b16 %v2304
        %v2621 = vunpack.c.h.b16 %v2304
        %v2622 = vunpack.c.l.b16 %v2305
        %v2623 = vunpack.c.h.b16 %v2305
        %v2624 = vunpack.c.l.b16 %v2306
        %v2625 = vunpack.c.h.b16 %v2306
        %v2626 = vunpack.c.l.b16 %v2307
        %v2627 = vunpack.c.h.b16 %v2307
        %v2628 = vunpack.c.l.b16 %v2308
        %v2629 = vunpack.c.h.b16 %v2308
        %v2630 = vunpack.c.l.b16 %v2309
        %v2631 = vunpack.c.h.b16 %v2309
        %v2632 = vunpack.c.l.b16 %v2310
        %v2633 = vunpack.c.h.b16 %v2310
        %v2634 = vunpack.c.l.b16 %v2311
        %v2635 = vunpack.c.h.b16 %v2311
        %v2636 = vunpack.c.l.b16 %v2312
        %v2637 = vunpack.c.h.b16 %v2312
        %v2638 = vunpack.c.l.b16 %v2313
        %v2639 = vunpack.c.h.b16 %v2313
        %v2640 = vunpack.c.l.b16 %v2314
        %v2641 = vunpack.c.h.b16 %v2314
        %v2642 = vunpack.c.l.b16 %v2315
        %v2643 = vunpack.c.h.b16 %v2315
        %v2644 = vunpack.c.l.b16 %v2316
        %v2645 = vunpack.c.h.b16 %v2316
        %v2646 = vunpack.c.l.b16 %v2317
        %v2647 = vunpack.c.h.b16 %v2317
        %v2648 = vunpack.c.l.b16 %v2318
        %v2649 = vunpack.c.h.b16 %v2318
        %v2650 = vunpack.c.l.b16 %v2319
        %v2651 = vunpack.c.h.b16 %v2319
        %v2652 = vunpack.c.l.b16 %v2320
        %v2653 = vunpack.c.h.b16 %v2320
        %v2654 = vunpack.c.l.b16 %v2321
        %v2655 = vunpack.c.h.b16 %v2321
        %v2656 = vunpack.c.l.b16 %v2322
        %v2657 = vunpack.c.h.b16 %v2322
        %v2658 = vunpack.c.l.b16 %v2323
        %v2659 = vunpack.c.h.b16 %v2323
        %v2660 = vunpack.c.l.b16 %v2324
        %v2661 = vunpack.c.h.b16 %v2324
        %v2662 = vunpack.c.l.b16 %v2325
        %v2663 = vunpack.c.h.b16 %v2325
        %v2664 = vunpack.c.l.b16 %v2326
        %v2665 = vunpack.c.h.b16 %v2326
        %v2666 = vunpack.c.l.b16 %v2327
        %v2667 = vunpack.c.h.b16 %v2327
        %v2668 = vunpack.c.l.b16 %v2328
        %v2669 = vunpack.c.h.b16 %v2328
        %v2670 = vunpack.c.l.b16 %v2329
        %v2671 = vunpack.c.h.b16 %v2329
        %v2672 = vunpack.c.l.b16 %v2330
        %v2673 = vunpack.c.h.b16 %v2330
        %v2674 = vunpack.c.l.b16 %v2331
        %v2675 = vunpack.c.h.b16 %v2331
        %v2676 = vunpack.c.l.b16 %v2332
        %v2677 = vunpack.c.h.b16 %v2332
        %v2678 = vunpack.c.l.b16 %v2333
        %v2679 = vunpack.c.h.b16 %v2333
        %v2680 = vunpack.c.l.b16 %v2334
        %v2681 = vunpack.c.h.b16 %v2334
        %v2682 = vunpack.c.l.b16 %v2335
        %v2683 = vunpack.c.h.b16 %v2335
        %v2684 = vunpack.c.l.b16 %v2336
        %v2685 = vunpack.c.h.b16 %v2336
        %v2686 = vunpack.c.l.b16 %v2337
        %v2687 = vunpack.c.h.b16 %v2337
        %v2688 = vunpack.c.l.b16 %v2338
        %v2689 = vunpack.c.h.b16 %v2338
        %v2690 = vunpack.c.l.b16 %v2339
        %v2691 = vunpack.c.h.b16 %v2339
        %v2692 = vunpack.c.l.b16 %v2340
        %v2693 = vunpack.c.h.b16 %v2340
        %v2694 = vunpack.c.l.b16 %v2341
        %v2695 = vunpack.c.h.b16 %v2341
        %v2696 = vunpack.c.l.b16 %v2342
        %v2697 = vunpack.c.h.b16 %v2342
        %v2698 = vunpack.c.l.b16 %v2343
        %v2699 = vunpack.c.h.b16 %v2343
        %v2700 = vunpack.c.l.b16 %v2344
        %v2701 = vunpack.c.h.b16 %v2344
        %v2702 = vunpack.c.l.b16 %v2345
        %v2703 = vunpack.c.h.b16 %v2345
        %v2704 = vunpack.c.l.b16 %v2346
        %v2705 = vunpack.c.h.b16 %v2346
        %v2706 = vunpack.c.l.b16 %v2347
        %v2707 = vunpack.c.h.b16 %v2347
        %v2708 = vunpack.c.l.b16 %v2348
        %v2709 = vunpack.c.h.b16 %v2348
        %v2710 = vunpack.c.l.b16 %v2349
        %v2711 = vunpack.c.h.b16 %v2349
        %v2712 = vunpack.c.l.b16 %v2350
        %v2713 = vunpack.c.h.b16 %v2350
        %v2714 = vunpack.c.l.b16 %v2351
        %v2715 = vunpack.c.h.b16 %v2351
        %v2716 = vunpack.c.l.b16 %v2352
        %v2717 = vunpack.c.h.b16 %v2352
        %v2718 = vunpack.c.l.b16 %v2353
        %v2719 = vunpack.c.h.b16 %v2353
        %v2720 = vunpack.c.l.b16 %v2354
        %v2721 = vunpack.c.h.b16 %v2354
        %v2722 = vunpack.c.l.b16 %v2355
        %v2723 = vunpack.c.h.b16 %v2355
        %v2724 = vunpack.c.l.b16 %v2356
        %v2725 = vunpack.c.h.b16 %v2356
        %v2726 = vunpack.c.l.b16 %v2357
        %v2727 = vunpack.c.h.b16 %v2357
        %v2728 = vunpack.c.l.b16 %v2358
        %v2729 = vunpack.c.h.b16 %v2358
        %v2730 = vunpack.c.l.b16 %v2359
        %v2731 = vunpack.c.h.b16 %v2359
        %v2732 = vunpack.c.l.b16 %v2360
        %v2733 = vunpack.c.h.b16 %v2360
        %v2734 = vunpack.c.l.b16 %v2361
        %v2735 = vunpack.c.h.b16 %v2361
        %v2736 = vunpack.c.l.b16 %v2362
        %v2737 = vunpack.c.h.b16 %v2362
        %v2738 = vunpack.c.l.b16 %v2363
        %v2739 = vunpack.c.h.b16 %v2363
        %v2740 = vunpack.c.l.b16 %v2364
        %v2741 = vunpack.c.h.b16 %v2364
        %v2742 = vunpack.c.l.b16 %v2365
        %v2743 = vunpack.c.h.b16 %v2365
        %v2744 = vunpack.c.l.b16 %v2366
        %v2745 = vunpack.c.h.b16 %v2366
        %v2746 = vunpack.c.l.b16 %v2367
        %v2747 = vunpack.c.h.b16 %v2367
        %v2748 = vunpack.c.l.b16 %v2368
        %v2749 = vunpack.c.h.b16 %v2368
        %v2750 = vunpack.c.l.b16 %v2369
        %v2751 = vunpack.c.h.b16 %v2369
        %v2752 = vunpack.c.l.b16 %v2370
        %v2753 = vunpack.c.h.b16 %v2370
        %v2754 = vunpack.c.l.b16 %v2371
        %v2755 = vunpack.c.h.b16 %v2371
        %v2756 = vunpack.c.l.b16 %v2372
        %v2757 = vunpack.c.h.b16 %v2372
        %v2758 = vunpack.c.l.b16 %v2373
        %v2759 = vunpack.c.h.b16 %v2373
        %v2760 = vunpack.c.l.b16 %v2374
        %v2761 = vunpack.c.h.b16 %v2374
        %v2762 = vunpack.c.l.b16 %v2375
        %v2763 = vunpack.c.h.b16 %v2375
        %v2764 = vunpack.c.l.b16 %v2376
        %v2765 = vunpack.c.h.b16 %v2376
        %v2766 = vunpack.c.l.b16 %v2377
        %v2767 = vunpack.c.h.b16 %v2377
        %v2768 = vunpack.c.l.b16 %v2378
        %v2769 = vunpack.c.h.b16 %v2378
        %v2770 = vunpack.c.l.b16 %v2379
        %v2771 = vunpack.c.h.b16 %v2379
        %v2772 = vunpack.c.l.b16 %v2380
        %v2773 = vunpack.c.h.b16 %v2380
        %v2774 = vunpack.c.l.b16 %v2381
        %v2775 = vunpack.c.h.b16 %v2381
        %v2776 = vunpack.c.l.b16 %v2382
        %v2777 = vunpack.c.h.b16 %v2382
        %v2778 = vunpack.c.l.b16 %v2383
        %v2779 = vunpack.c.h.b16 %v2383
        %v2780 = vunpack.c.l.b16 %v2384
        %v2781 = vunpack.c.h.b16 %v2384
        %v2782 = vunpack.c.l.b16 %v2385
        %v2783 = vunpack.c.h.b16 %v2385
        %v2784 = vunpack.c.l.b16 %v2386
        %v2785 = vunpack.c.h.b16 %v2386
        %v2786 = vunpack.c.l.b16 %v2387
        %v2787 = vunpack.c.h.b16 %v2387
        %v2788 = vunpack.c.l.b16 %v2388
        %v2789 = vunpack.c.h.b16 %v2388
        %v2790 = vunpack.c.l.b16 %v2389
        %v2791 = vunpack.c.h.b16 %v2389
        %v2792 = vunpack.c.l.b16 %v2390
        %v2793 = vunpack.c.h.b16 %v2390
        %v2794 = vunpack.c.l.b16 %v2391
        %v2795 = vunpack.c.h.b16 %v2391
        %v2796 = vunpack.c.l.b16 %v2392
        %v2797 = vunpack.c.h.b16 %v2392
        %v2798 = vunpack.c.l.b16 %v2393
        %v2799 = vunpack.c.h.b16 %v2393
        %v2800 = vunpack.c.l.b16 %v2394
        %v2801 = vunpack.c.h.b16 %v2394
        %v2802 = vpack.c.b16 %v2550, %v2546
        %v2803 = vpack.c.b16 %v2551, %v2547
        %v2804 = vpack.c.b16 %v2552, %v2548
        %v2805 = vpack.c.b16 %v2553, %v2549
        %v2806 = vpack.c.b16 %v2558, %v2554
        %v2807 = vpack.c.b16 %v2559, %v2555
        %v2808 = vpack.c.b16 %v2560, %v2556
        %v2809 = vpack.c.b16 %v2561, %v2557
        %v2810 = vpack.c.b16 %v2566, %v2562
        %v2811 = vpack.c.b16 %v2567, %v2563
        %v2812 = vpack.c.b16 %v2568, %v2564
        %v2813 = vpack.c.b16 %v2569, %v2565
        %v2814 = vpack.c.b16 %v2574, %v2570
        %v2815 = vpack.c.b16 %v2575, %v2571
        %v2816 = vpack.c.b16 %v2576, %v2572
        %v2817 = vpack.c.b16 %v2577, %v2573
        %v2818 = vpack.c.b16 %v2582, %v2578
        %v2819 = vpack.c.b16 %v2583, %v2579
        %v2820 = vpack.c.b16 %v2584, %v2580
        %v2821 = vpack.c.b16 %v2585, %v2581
        %v2822 = vpack.c.b16 %v2590, %v2586
        %v2823 = vpack.c.b16 %v2591, %v2587
        %v2824 = vpack.c.b16 %v2592, %v2588
        %v2825 = vpack.c.b16 %v2593, %v2589
        %v2826 = vpack.c.b16 %v2598, %v2594
        %v2827 = vpack.c.b16 %v2599, %v2595
        %v2828 = vpack.c.b16 %v2600, %v2596
        %v2829 = vpack.c.b16 %v2601, %v2597
        %v2830 = vpack.c.b16 %v2606, %v2602
        %v2831 = vpack.c.b16 %v2607, %v2603
        %v2832 = vpack.c.b16 %v2608, %v2604
        %v2833 = vpack.c.b16 %v2609, %v2605
        %v2834 = vpack.c.b16 %v2614, %v2610
        %v2835 = vpack.c.b16 %v2615, %v2611
        %v2836 = vpack.c.b16 %v2616, %v2612
        %v2837 = vpack.c.b16 %v2617, %v2613
        %v2838 = vpack.c.b16 %v2622, %v2618
        %v2839 = vpack.c.b16 %v2623, %v2619
        %v2840 = vpack.c.b16 %v2624, %v2620
        %v2841 = vpack.c.b16 %v2625, %v2621
        %v2842 = vpack.c.b16 %v2630, %v2626
        %v2843 = vpack.c.b16 %v2631, %v2627
        %v2844 = vpack.c.b16 %v2632, %v2628
        %v2845 = vpack.c.b16 %v2633, %v2629
        %v2846 = vpack.c.b16 %v2638, %v2634
        %v2847 = vpack.c.b16 %v2639, %v2635
        %v2848 = vpack.c.b16 %v2640, %v2636
        %v2849 = vpack.c.b16 %v2641, %v2637
        %v2850 = vpack.c.b16 %v2646, %v2642
        %v2851 = vpack.c.b16 %v2647, %v2643
        %v2852 = vpack.c.b16 %v2648, %v2644
        %v2853 = vpack.c.b16 %v2649, %v2645
        %v2854 = vpack.c.b16 %v2654, %v2650
        %v2855 = vpack.c.b16 %v2655, %v2651
        %v2856 = vpack.c.b16 %v2656, %v2652
        %v2857 = vpack.c.b16 %v2657, %v2653
        %v2858 = vpack.c.b16 %v2662, %v2658
        %v2859 = vpack.c.b16 %v2663, %v2659
        %v2860 = vpack.c.b16 %v2664, %v2660
        %v2861 = vpack.c.b16 %v2665, %v2661
        %v2862 = vpack.c.b16 %v2670, %v2666
        %v2863 = vpack.c.b16 %v2671, %v2667
        %v2864 = vpack.c.b16 %v2672, %v2668
        %v2865 = vpack.c.b16 %v2673, %v2669
        %v2866 = vpack.c.b16 %v2678, %v2674
        %v2867 = vpack.c.b16 %v2679, %v2675
        %v2868 = vpack.c.b16 %v2680, %v2676
        %v2869 = vpack.c.b16 %v2681, %v2677
        %v2870 = vpack.c.b16 %v2686, %v2682
        %v2871 = vpack.c.b16 %v2687, %v2683
        %v2872 = vpack.c.b16 %v2688, %v2684
        %v2873 = vpack.c.b16 %v2689, %v2685
        %v2874 = vpack.c.b16 %v2694, %v2690
        %v2875 = vpack.c.b16 %v2695, %v2691
        %v2876 = vpack.c.b16 %v2696, %v2692
        %v2877 = vpack.c.b16 %v2697, %v2693
        %v2878 = vpack.c.b16 %v2702, %v2698
        %v2879 = vpack.c.b16 %v2703, %v2699
        %v2880 = vpack.c.b16 %v2704, %v2700
        %v2881 = vpack.c.b16 %v2705, %v2701
        %v2882 = vpack.c.b16 %v2710, %v2706
        %v2883 = vpack.c.b16 %v2711, %v2707
        %v2884 = vpack.c.b16 %v2712, %v2708
        %v2885 = vpack.c.b16 %v2713, %v2709
        %v2886 = vpack.c.b16 %v2718, %v2714
        %v2887 = vpack.c.b16 %v2719, %v2715
        %v2888 = vpack.c.b16 %v2720, %v2716
        %v2889 = vpack.c.b16 %v2721, %v2717
        %v2890 = vpack.c.b16 %v2726, %v2722
        %v2891 = vpack.c.b16 %v2727, %v2723
        %v2892 = vpack.c.b16 %v2728, %v2724
        %v2893 = vpack.c.b16 %v2729, %v2725
        %v2894 = vpack.c.b16 %v2734, %v2730
        %v2895 = vpack.c.b16 %v2735, %v2731
        %v2896 = vpack.c.b16 %v2736, %v2732
        %v2897 = vpack.c.b16 %v2737, %v2733
        %v2898 = vpack.c.b16 %v2742, %v2738
        %v2899 = vpack.c.b16 %v2743, %v2739
        %v2900 = vpack.c.b16 %v2744, %v2740
        %v2901 = vpack.c.b16 %v2745, %v2741
        %v2902 = vpack.c.b16 %v2750, %v2746
        %v2903 = vpack.c.b16 %v2751, %v2747
        %v2904 = vpack.c.b16 %v2752, %v2748
        %v2905 = vpack.c.b16 %v2753, %v2749
        %v2906 = vpack.c.b16 %v2758, %v2754
        %v2907 = vpack.c.b16 %v2759, %v2755
        %v2908 = vpack.c.b16 %v2760, %v2756
        %v2909 = vpack.c.b16 %v2761, %v2757
        %v2910 = vpack.c.b16 %v2766, %v2762
        %v2911 = vpack.c.b16 %v2767, %v2763
        %v2912 = vpack.c.b16 %v2768, %v2764
        %v2913 = vpack.c.b16 %v2769, %v2765
        %v2914 = vpack.c.b16 %v2774, %v2770
        %v2915 = vpack.c.b16 %v2775, %v2771
        %v2916 = vpack.c.b16 %v2776, %v2772
        %v2917 = vpack.c.b16 %v2777, %v2773
        %v2918 = vpack.c.b16 %v2782, %v2778
        %v2919 = vpack.c.b16 %v2783, %v2779
        %v2920 = vpack.c.b16 %v2784, %v2780
        %v2921 = vpack.c.b16 %v2785, %v2781
        %v2922 = vpack.c.b16 %v2790, %v2786
        %v2923 = vpack.c.b16 %v2791, %v2787
        %v2924 = vpack.c.b16 %v2792, %v2788
        %v2925 = vpack.c.b16 %v2793, %v2789
        %v2926 = vpack.c.b16 %v2798, %v2794
        %v2927 = vpack.c.b16 %v2799, %v2795
        %v2928 = vpack.c.b16 %v2800, %v2796
        %v2929 = vpack.c.b16 %v2801, %v2797
        %3058 = vmatprep.subr.bf16.mxu0 %v2831
        %3059 = vmatpush1.bf16.msra.mxu0 %v2830
        %3060 = vmatprep.subr.bf16.mxu0 %v2827
        %3061 = vmatpush1.bf16.msra.mxu0 %v2826
        %3062 = vmatprep.subr.bf16.mxu0 %v2823
        %3063 = vmatpush1.bf16.msra.mxu0 %v2822
        %3064 = vmatprep.subr.bf16.mxu0 %v2819
        %3065 = vmatpush1.bf16.msra.mxu0 %v2818
        %3066 = vmatprep.subr.bf16.mxu0 %v2815
        %3067 = vmatpush1.bf16.msra.mxu0 %v2814
        %3068 = vmatprep.subr.bf16.mxu0 %v2811
        %3069 = vmatpush1.bf16.msra.mxu0 %v2810
        %3070 = vmatprep.subr.bf16.mxu0 %v2807
        %3071 = vmatpush1.bf16.msra.mxu0 %v2806
        %3072 = vmatprep.subr.bf16.mxu0 %v2803
        %3073 = vmatpush1.bf16.msra.mxu0 %v2802
        %3074 = vmatprep.subr.bf16.mxu0 %v2863
        %3075 = vmatpush2.bf16.msra.mxu0 %v2862
        %3076 = vmatprep.subr.bf16.mxu0 %v2859
        %3077 = vmatpush2.bf16.msra.mxu0 %v2858
        %3078 = vmatprep.subr.bf16.mxu0 %v2855
        %3079 = vmatpush2.bf16.msra.mxu0 %v2854
        %3080 = vmatprep.subr.bf16.mxu0 %v2851
        %3081 = vmatpush2.bf16.msra.mxu0 %v2850
        %3082 = vmatprep.subr.bf16.mxu0 %v2847
        %3083 = vmatpush2.bf16.msra.mxu0 %v2846
        %3084 = vmatprep.subr.bf16.mxu0 %v2843
        %3085 = vmatpush2.bf16.msra.mxu0 %v2842
        %3086 = vmatprep.subr.bf16.mxu0 %v2839
        %3087 = vmatpush2.bf16.msra.mxu0 %v2838
        %3088 = vmatprep.subr.bf16.mxu0 %v2835
        %3089 = vmatpush2.bf16.msra.mxu0 %v2834
        %3090 = vmatprep.mubr.bf16.mxu0 %v2235
        %3091 = vmatmul.mubr.bf16.gmra.mxu0 %v2234
        %v3092 = vpop.f32.mrf.mxu0
        %v3093 = vadd.f32 %v2401, %v3092
        %v3094 = vpop.f32.mrf.mxu0
        %v3095 = vadd.f32 %v2405, %v3094
        %v3096 = vpop.f32.mrf.mxu0
        %v3097 = vadd.f32 %v2401, %v3096
        %v3098 = vpop.f32.mrf.mxu0
        %v3099 = vadd.f32 %v2405, %v3098
        %3100 = vmatprep.mubr.bf16.mxu0 %v2239
        %3101 = vmatmul.mubr.bf16.gmra.mxu0 %v2238
        %v3102 = vpop.f32.mrf.mxu0
        %v3103 = vadd.f32 %v2401, %v3102
        %v3104 = vpop.f32.mrf.mxu0
        %v3105 = vadd.f32 %v2405, %v3104
        %v3106 = vpop.f32.mrf.mxu0
        %v3107 = vadd.f32 %v2401, %v3106
        %v3108 = vpop.f32.mrf.mxu0
        %v3109 = vadd.f32 %v2405, %v3108
        %3110 = vmatprep.mubr.bf16.mxu0 %v2243
        %3111 = vmatmul.mubr.bf16.gmra.mxu0 %v2242
        %v3112 = vpop.f32.mrf.mxu0
        %v3113 = vadd.f32 %v2401, %v3112
        %v3114 = vpop.f32.mrf.mxu0
        %v3115 = vadd.f32 %v2405, %v3114
        %v3116 = vpop.f32.mrf.mxu0
        %v3117 = vadd.f32 %v2401, %v3116
        %v3118 = vpop.f32.mrf.mxu0
        %v3119 = vadd.f32 %v2405, %v3118
        %3120 = vmatprep.mubr.bf16.mxu0 %v2247
        %3121 = vmatmul.mubr.bf16.gmra.mxu0 %v2246
        %v3122 = vpop.f32.mrf.mxu0
        %v3123 = vadd.f32 %v2401, %v3122
        %v3124 = vpop.f32.mrf.mxu0
        %v3125 = vadd.f32 %v2405, %v3124
        %v3126 = vpop.f32.mrf.mxu0
        %v3127 = vadd.f32 %v2401, %v3126
        %v3128 = vpop.f32.mrf.mxu0
        %v3129 = vadd.f32 %v2405, %v3128
        %3130 = vmatprep.mubr.bf16.mxu0 %v2251
        %3131 = vmatmul.mubr.bf16.gmra.mxu0 %v2250
        %v3132 = vpop.f32.mrf.mxu0
        %v3133 = vadd.f32 %v2401, %v3132
        %v3134 = vpop.f32.mrf.mxu0
        %v3135 = vadd.f32 %v2405, %v3134
        %v3136 = vpop.f32.mrf.mxu0
        %v3137 = vadd.f32 %v2401, %v3136
        %v3138 = vpop.f32.mrf.mxu0
        %v3139 = vadd.f32 %v2405, %v3138
        %3140 = vmatprep.mubr.bf16.mxu0 %v2255
        %3141 = vmatmul.mubr.bf16.gmra.mxu0 %v2254
        %v3142 = vpop.f32.mrf.mxu0
        %v3143 = vadd.f32 %v2401, %v3142
        %v3144 = vpop.f32.mrf.mxu0
        %v3145 = vadd.f32 %v2405, %v3144
        %v3146 = vpop.f32.mrf.mxu0
        %v3147 = vadd.f32 %v2401, %v3146
        %v3148 = vpop.f32.mrf.mxu0
        %v3149 = vadd.f32 %v2405, %v3148
        %3150 = vmatprep.mubr.bf16.mxu0 %v2259
        %3151 = vmatmul.mubr.bf16.gmra.mxu0 %v2258
        %v3152 = vpop.f32.mrf.mxu0
        %v3153 = vadd.f32 %v2401, %v3152
        %v3154 = vpop.f32.mrf.mxu0
        %v3155 = vadd.f32 %v2405, %v3154
        %v3156 = vpop.f32.mrf.mxu0
        %v3157 = vadd.f32 %v2401, %v3156
        %v3158 = vpop.f32.mrf.mxu0
        %v3159 = vadd.f32 %v2405, %v3158
        %3160 = vmatprep.mubr.bf16.mxu0 %v2263
        %3161 = vmatmul.mubr.bf16.gmra.mxu0 %v2262
        %v3162 = vpop.f32.mrf.mxu0
        %v3163 = vadd.f32 %v2401, %v3162
        %v3164 = vpop.f32.mrf.mxu0
        %v3165 = vadd.f32 %v2405, %v3164
        %v3166 = vpop.f32.mrf.mxu0
        %v3167 = vadd.f32 %v2401, %v3166
        %v3168 = vpop.f32.mrf.mxu0
        %v3169 = vadd.f32 %v2405, %v3168
        %3170 = vdwg.mxu0
        %3171 = vmatprep.subr.bf16.mxu0 %v2895
        %3172 = vmatpush1.bf16.msra.mxu0 %v2894
        %3173 = vmatprep.subr.bf16.mxu0 %v2891
        %3174 = vmatpush1.bf16.msra.mxu0 %v2890
        %3175 = vmatprep.subr.bf16.mxu0 %v2887
        %3176 = vmatpush1.bf16.msra.mxu0 %v2886
        %3177 = vmatprep.subr.bf16.mxu0 %v2883
        %3178 = vmatpush1.bf16.msra.mxu0 %v2882
        %3179 = vmatprep.subr.bf16.mxu0 %v2879
        %3180 = vmatpush1.bf16.msra.mxu0 %v2878
        %3181 = vmatprep.subr.bf16.mxu0 %v2875
        %3182 = vmatpush1.bf16.msra.mxu0 %v2874
        %3183 = vmatprep.subr.bf16.mxu0 %v2871
        %3184 = vmatpush1.bf16.msra.mxu0 %v2870
        %3185 = vmatprep.subr.bf16.mxu0 %v2867
        %3186 = vmatpush1.bf16.msra.mxu0 %v2866
        %3187 = vmatprep.subr.bf16.mxu0 %v2927
        %3188 = vmatpush2.bf16.msra.mxu0 %v2926
        %3189 = vmatprep.subr.bf16.mxu0 %v2923
        %3190 = vmatpush2.bf16.msra.mxu0 %v2922
        %3191 = vmatprep.subr.bf16.mxu0 %v2919
        %3192 = vmatpush2.bf16.msra.mxu0 %v2918
        %3193 = vmatprep.subr.bf16.mxu0 %v2915
        %3194 = vmatpush2.bf16.msra.mxu0 %v2914
        %3195 = vmatprep.subr.bf16.mxu0 %v2911
        %3196 = vmatpush2.bf16.msra.mxu0 %v2910
        %3197 = vmatprep.subr.bf16.mxu0 %v2907
        %3198 = vmatpush2.bf16.msra.mxu0 %v2906
        %3199 = vmatprep.subr.bf16.mxu0 %v2903
        %3200 = vmatpush2.bf16.msra.mxu0 %v2902
        %3201 = vmatprep.subr.bf16.mxu0 %v2899
        %3202 = vmatpush2.bf16.msra.mxu0 %v2898
        %3203 = vmatprep.mubr.bf16.mxu0 %v2237
        %3204 = vmatmul.mubr.bf16.gmra.mxu0 %v2236
        %v3205 = vpop.f32.mrf.mxu0
        %v3206 = vadd.f32 %v3093, %v3205
        %v3207 = vpop.f32.mrf.mxu0
        %v3208 = vadd.f32 %v3095, %v3207
        %v3209 = vpop.f32.mrf.mxu0
        %v3210 = vadd.f32 %v3097, %v3209
        %v3211 = vpop.f32.mrf.mxu0
        %v3212 = vadd.f32 %v3099, %v3211
        %3213 = vmatprep.mubr.bf16.mxu0 %v2241
        %3214 = vmatmul.mubr.bf16.gmra.mxu0 %v2240
        %v3215 = vpop.f32.mrf.mxu0
        %v3216 = vadd.f32 %v3103, %v3215
        %v3217 = vpop.f32.mrf.mxu0
        %v3218 = vadd.f32 %v3105, %v3217
        %v3219 = vpop.f32.mrf.mxu0
        %v3220 = vadd.f32 %v3107, %v3219
        %v3221 = vpop.f32.mrf.mxu0
        %v3222 = vadd.f32 %v3109, %v3221
        %3223 = vmatprep.mubr.bf16.mxu0 %v2245
        %3224 = vmatmul.mubr.bf16.gmra.mxu0 %v2244
        %v3225 = vpop.f32.mrf.mxu0
        %v3226 = vadd.f32 %v3113, %v3225
        %v3227 = vpop.f32.mrf.mxu0
        %v3228 = vadd.f32 %v3115, %v3227
        %v3229 = vpop.f32.mrf.mxu0
        %v3230 = vadd.f32 %v3117, %v3229
        %v3231 = vpop.f32.mrf.mxu0
        %v3232 = vadd.f32 %v3119, %v3231
        %3233 = vmatprep.mubr.bf16.mxu0 %v2249
        %3234 = vmatmul.mubr.bf16.gmra.mxu0 %v2248
        %v3235 = vpop.f32.mrf.mxu0
        %v3236 = vadd.f32 %v3123, %v3235
        %v3237 = vpop.f32.mrf.mxu0
        %v3238 = vadd.f32 %v3125, %v3237
        %v3239 = vpop.f32.mrf.mxu0
        %v3240 = vadd.f32 %v3127, %v3239
        %v3241 = vpop.f32.mrf.mxu0
        %v3242 = vadd.f32 %v3129, %v3241
        %3243 = vmatprep.mubr.bf16.mxu0 %v2253
        %3244 = vmatmul.mubr.bf16.gmra.mxu0 %v2252
        %v3245 = vpop.f32.mrf.mxu0
        %v3246 = vadd.f32 %v3133, %v3245
        %v3247 = vpop.f32.mrf.mxu0
        %v3248 = vadd.f32 %v3135, %v3247
        %v3249 = vpop.f32.mrf.mxu0
        %v3250 = vadd.f32 %v3137, %v3249
        %v3251 = vpop.f32.mrf.mxu0
        %v3252 = vadd.f32 %v3139, %v3251
        %3253 = vmatprep.mubr.bf16.mxu0 %v2257
        %3254 = vmatmul.mubr.bf16.gmra.mxu0 %v2256
        %v3255 = vpop.f32.mrf.mxu0
        %v3256 = vadd.f32 %v3143, %v3255
        %v3257 = vpop.f32.mrf.mxu0
        %v3258 = vadd.f32 %v3145, %v3257
        %v3259 = vpop.f32.mrf.mxu0
        %v3260 = vadd.f32 %v3147, %v3259
        %v3261 = vpop.f32.mrf.mxu0
        %v3262 = vadd.f32 %v3149, %v3261
        %3263 = vmatprep.mubr.bf16.mxu0 %v2261
        %3264 = vmatmul.mubr.bf16.gmra.mxu0 %v2260
        %v3265 = vpop.f32.mrf.mxu0
        %v3266 = vadd.f32 %v3153, %v3265
        %v3267 = vpop.f32.mrf.mxu0
        %v3268 = vadd.f32 %v3155, %v3267
        %v3269 = vpop.f32.mrf.mxu0
        %v3270 = vadd.f32 %v3157, %v3269
        %v3271 = vpop.f32.mrf.mxu0
        %v3272 = vadd.f32 %v3159, %v3271
        %3273 = vmatprep.mubr.bf16.mxu0 %v2265
        %3274 = vmatmul.mubr.bf16.gmra.mxu0 %v2264
        %v3275 = vpop.f32.mrf.mxu0
        %v3276 = vadd.f32 %v3163, %v3275
        %v3277 = vpop.f32.mrf.mxu0
        %v3278 = vadd.f32 %v3165, %v3277
        %v3279 = vpop.f32.mrf.mxu0
        %v3280 = vadd.f32 %v3167, %v3279
        %v3281 = vpop.f32.mrf.mxu0
        %v3282 = vadd.f32 %v3169, %v3281
        %3283 = vdwg.mxu0
        %3284 = vmatprep.subr.bf16.mxu0 %v2833
        %3285 = vmatpush1.bf16.msra.mxu0 %v2832
        %3286 = vmatprep.subr.bf16.mxu0 %v2829
        %3287 = vmatpush1.bf16.msra.mxu0 %v2828
        %3288 = vmatprep.subr.bf16.mxu0 %v2825
        %3289 = vmatpush1.bf16.msra.mxu0 %v2824
        %3290 = vmatprep.subr.bf16.mxu0 %v2821
        %3291 = vmatpush1.bf16.msra.mxu0 %v2820
        %3292 = vmatprep.subr.bf16.mxu0 %v2817
        %3293 = vmatpush1.bf16.msra.mxu0 %v2816
        %3294 = vmatprep.subr.bf16.mxu0 %v2813
        %3295 = vmatpush1.bf16.msra.mxu0 %v2812
        %3296 = vmatprep.subr.bf16.mxu0 %v2809
        %3297 = vmatpush1.bf16.msra.mxu0 %v2808
        %3298 = vmatprep.subr.bf16.mxu0 %v2805
        %3299 = vmatpush1.bf16.msra.mxu0 %v2804
        %3300 = vmatprep.subr.bf16.mxu0 %v2865
        %3301 = vmatpush2.bf16.msra.mxu0 %v2864
        %3302 = vmatprep.subr.bf16.mxu0 %v2861
        %3303 = vmatpush2.bf16.msra.mxu0 %v2860
        %3304 = vmatprep.subr.bf16.mxu0 %v2857
        %3305 = vmatpush2.bf16.msra.mxu0 %v2856
        %3306 = vmatprep.subr.bf16.mxu0 %v2853
        %3307 = vmatpush2.bf16.msra.mxu0 %v2852
        %3308 = vmatprep.subr.bf16.mxu0 %v2849
        %3309 = vmatpush2.bf16.msra.mxu0 %v2848
        %3310 = vmatprep.subr.bf16.mxu0 %v2845
        %3311 = vmatpush2.bf16.msra.mxu0 %v2844
        %3312 = vmatprep.subr.bf16.mxu0 %v2841
        %3313 = vmatpush2.bf16.msra.mxu0 %v2840
        %3314 = vmatprep.subr.bf16.mxu0 %v2837
        %3315 = vmatpush2.bf16.msra.mxu0 %v2836
        %3316 = vmatprep.mubr.bf16.mxu0 %v2235
        %3317 = vmatmul.mubr.bf16.gmra.mxu0 %v2234
        %v3318 = vpop.f32.mrf.mxu0
        %v3319 = vadd.f32 %v2409, %v3318
        %v3320 = vpop.f32.mrf.mxu0
        %v3321 = vadd.f32 %v2413, %v3320
        %v3322 = vpop.f32.mrf.mxu0
        %v3323 = vadd.f32 %v2409, %v3322
        %v3324 = vpop.f32.mrf.mxu0
        %v3325 = vadd.f32 %v2413, %v3324
        %3326 = vmatprep.mubr.bf16.mxu0 %v2239
        %3327 = vmatmul.mubr.bf16.gmra.mxu0 %v2238
        %v3328 = vpop.f32.mrf.mxu0
        %v3329 = vadd.f32 %v2409, %v3328
        %v3330 = vpop.f32.mrf.mxu0
        %v3331 = vadd.f32 %v2413, %v3330
        %v3332 = vpop.f32.mrf.mxu0
        %v3333 = vadd.f32 %v2409, %v3332
        %v3334 = vpop.f32.mrf.mxu0
        %v3335 = vadd.f32 %v2413, %v3334
        %3336 = vmatprep.mubr.bf16.mxu0 %v2243
        %3337 = vmatmul.mubr.bf16.gmra.mxu0 %v2242
        %v3338 = vpop.f32.mrf.mxu0
        %v3339 = vadd.f32 %v2409, %v3338
        %v3340 = vpop.f32.mrf.mxu0
        %v3341 = vadd.f32 %v2413, %v3340
        %v3342 = vpop.f32.mrf.mxu0
        %v3343 = vadd.f32 %v2409, %v3342
        %v3344 = vpop.f32.mrf.mxu0
        %v3345 = vadd.f32 %v2413, %v3344
        %3346 = vmatprep.mubr.bf16.mxu0 %v2247
        %3347 = vmatmul.mubr.bf16.gmra.mxu0 %v2246
        %v3348 = vpop.f32.mrf.mxu0
        %v3349 = vadd.f32 %v2409, %v3348
        %v3350 = vpop.f32.mrf.mxu0
        %v3351 = vadd.f32 %v2413, %v3350
        %v3352 = vpop.f32.mrf.mxu0
        %v3353 = vadd.f32 %v2409, %v3352
        %v3354 = vpop.f32.mrf.mxu0
        %v3355 = vadd.f32 %v2413, %v3354
        %3356 = vmatprep.mubr.bf16.mxu0 %v2251
        %3357 = vmatmul.mubr.bf16.gmra.mxu0 %v2250
        %v3358 = vpop.f32.mrf.mxu0
        %v3359 = vadd.f32 %v2409, %v3358
        %v3360 = vpop.f32.mrf.mxu0
        %v3361 = vadd.f32 %v2413, %v3360
        %v3362 = vpop.f32.mrf.mxu0
        %v3363 = vadd.f32 %v2409, %v3362
        %v3364 = vpop.f32.mrf.mxu0
        %v3365 = vadd.f32 %v2413, %v3364
        %3366 = vmatprep.mubr.bf16.mxu0 %v2255
        %3367 = vmatmul.mubr.bf16.gmra.mxu0 %v2254
        %v3368 = vpop.f32.mrf.mxu0
        %v3369 = vadd.f32 %v2409, %v3368
        %v3370 = vpop.f32.mrf.mxu0
        %v3371 = vadd.f32 %v2413, %v3370
        %v3372 = vpop.f32.mrf.mxu0
        %v3373 = vadd.f32 %v2409, %v3372
        %v3374 = vpop.f32.mrf.mxu0
        %v3375 = vadd.f32 %v2413, %v3374
        %3376 = vmatprep.mubr.bf16.mxu0 %v2259
        %3377 = vmatmul.mubr.bf16.gmra.mxu0 %v2258
        %v3378 = vpop.f32.mrf.mxu0
        %v3379 = vadd.f32 %v2409, %v3378
        %v3380 = vpop.f32.mrf.mxu0
        %v3381 = vadd.f32 %v2413, %v3380
        %v3382 = vpop.f32.mrf.mxu0
        %v3383 = vadd.f32 %v2409, %v3382
        %v3384 = vpop.f32.mrf.mxu0
        %v3385 = vadd.f32 %v2413, %v3384
        %3386 = vmatprep.mubr.bf16.mxu0 %v2263
        %3387 = vmatmul.mubr.bf16.gmra.mxu0 %v2262
        %v3388 = vpop.f32.mrf.mxu0
        %v3389 = vadd.f32 %v2409, %v3388
        %v3390 = vpop.f32.mrf.mxu0
        %v3391 = vadd.f32 %v2413, %v3390
        %v3392 = vpop.f32.mrf.mxu0
        %v3393 = vadd.f32 %v2409, %v3392
        %v3394 = vpop.f32.mrf.mxu0
        %v3395 = vadd.f32 %v2413, %v3394
        %3396 = vdwg.mxu0
        %3397 = vmatprep.subr.bf16.mxu0 %v2897
        %3398 = vmatpush1.bf16.msra.mxu0 %v2896
        %3399 = vmatprep.subr.bf16.mxu0 %v2893
        %3400 = vmatpush1.bf16.msra.mxu0 %v2892
        %3401 = vmatprep.subr.bf16.mxu0 %v2889
        %3402 = vmatpush1.bf16.msra.mxu0 %v2888
        %3403 = vmatprep.subr.bf16.mxu0 %v2885
        %3404 = vmatpush1.bf16.msra.mxu0 %v2884
        %3405 = vmatprep.subr.bf16.mxu0 %v2881
        %3406 = vmatpush1.bf16.msra.mxu0 %v2880
        %3407 = vmatprep.subr.bf16.mxu0 %v2877
        %3408 = vmatpush1.bf16.msra.mxu0 %v2876
        %3409 = vmatprep.subr.bf16.mxu0 %v2873
        %3410 = vmatpush1.bf16.msra.mxu0 %v2872
        %3411 = vmatprep.subr.bf16.mxu0 %v2869
        %3412 = vmatpush1.bf16.msra.mxu0 %v2868
        %3413 = vmatprep.subr.bf16.mxu0 %v2929
        %3414 = vmatpush2.bf16.msra.mxu0 %v2928
        %3415 = vmatprep.subr.bf16.mxu0 %v2925
        %3416 = vmatpush2.bf16.msra.mxu0 %v2924
        %3417 = vmatprep.subr.bf16.mxu0 %v2921
        %3418 = vmatpush2.bf16.msra.mxu0 %v2920
        %3419 = vmatprep.subr.bf16.mxu0 %v2917
        %3420 = vmatpush2.bf16.msra.mxu0 %v2916
        %3421 = vmatprep.subr.bf16.mxu0 %v2913
        %3422 = vmatpush2.bf16.msra.mxu0 %v2912
        %3423 = vmatprep.subr.bf16.mxu0 %v2909
        %3424 = vmatpush2.bf16.msra.mxu0 %v2908
        %3425 = vmatprep.subr.bf16.mxu0 %v2905
        %3426 = vmatpush2.bf16.msra.mxu0 %v2904
        %3427 = vmatprep.subr.bf16.mxu0 %v2901
        %3428 = vmatpush2.bf16.msra.mxu0 %v2900
        %3429 = vmatprep.mubr.bf16.mxu0 %v2237
        %3430 = vmatmul.mubr.bf16.gmra.mxu0 %v2236
        %v3431 = vpop.f32.mrf.mxu0
        %v3432 = vadd.f32 %v3319, %v3431
        %v3433 = vpop.f32.mrf.mxu0
        %v3434 = vadd.f32 %v3321, %v3433
        %v3435 = vpop.f32.mrf.mxu0
        %v3436 = vadd.f32 %v3323, %v3435
        %v3437 = vpop.f32.mrf.mxu0
        %v3438 = vadd.f32 %v3325, %v3437
        %3439 = vmatprep.mubr.bf16.mxu0 %v2241
        %3440 = vmatmul.mubr.bf16.gmra.mxu0 %v2240
        %v3441 = vpop.f32.mrf.mxu0
        %v3442 = vadd.f32 %v3329, %v3441
        %v3443 = vpop.f32.mrf.mxu0
        %v3444 = vadd.f32 %v3331, %v3443
        %v3445 = vpop.f32.mrf.mxu0
        %v3446 = vadd.f32 %v3333, %v3445
        %v3447 = vpop.f32.mrf.mxu0
        %v3448 = vadd.f32 %v3335, %v3447
        %3449 = vmatprep.mubr.bf16.mxu0 %v2245
        %3450 = vmatmul.mubr.bf16.gmra.mxu0 %v2244
        %v3451 = vpop.f32.mrf.mxu0
        %v3452 = vadd.f32 %v3339, %v3451
        %v3453 = vpop.f32.mrf.mxu0
        %v3454 = vadd.f32 %v3341, %v3453
        %v3455 = vpop.f32.mrf.mxu0
        %v3456 = vadd.f32 %v3343, %v3455
        %v3457 = vpop.f32.mrf.mxu0
        %v3458 = vadd.f32 %v3345, %v3457
        %3459 = vmatprep.mubr.bf16.mxu0 %v2249
        %3460 = vmatmul.mubr.bf16.gmra.mxu0 %v2248
        %v3461 = vpop.f32.mrf.mxu0
        %v3462 = vadd.f32 %v3349, %v3461
        %v3463 = vpop.f32.mrf.mxu0
        %v3464 = vadd.f32 %v3351, %v3463
        %v3465 = vpop.f32.mrf.mxu0
        %v3466 = vadd.f32 %v3353, %v3465
        %v3467 = vpop.f32.mrf.mxu0
        %v3468 = vadd.f32 %v3355, %v3467
        %3469 = vmatprep.mubr.bf16.mxu0 %v2253
        %3470 = vmatmul.mubr.bf16.gmra.mxu0 %v2252
        %v3471 = vpop.f32.mrf.mxu0
        %v3472 = vadd.f32 %v3359, %v3471
        %v3473 = vpop.f32.mrf.mxu0
        %v3474 = vadd.f32 %v3361, %v3473
        %v3475 = vpop.f32.mrf.mxu0
        %v3476 = vadd.f32 %v3363, %v3475
        %v3477 = vpop.f32.mrf.mxu0
        %v3478 = vadd.f32 %v3365, %v3477
        %3479 = vmatprep.mubr.bf16.mxu0 %v2257
        %3480 = vmatmul.mubr.bf16.gmra.mxu0 %v2256
        %v3481 = vpop.f32.mrf.mxu0
        %v3482 = vadd.f32 %v3369, %v3481
        %v3483 = vpop.f32.mrf.mxu0
        %v3484 = vadd.f32 %v3371, %v3483
        %v3485 = vpop.f32.mrf.mxu0
        %v3486 = vadd.f32 %v3373, %v3485
        %v3487 = vpop.f32.mrf.mxu0
        %v3488 = vadd.f32 %v3375, %v3487
        %3489 = vmatprep.mubr.bf16.mxu0 %v2261
        %3490 = vmatmul.mubr.bf16.gmra.mxu0 %v2260
        %v3491 = vpop.f32.mrf.mxu0
        %v3492 = vadd.f32 %v3379, %v3491
        %v3493 = vpop.f32.mrf.mxu0
        %v3494 = vadd.f32 %v3381, %v3493
        %v3495 = vpop.f32.mrf.mxu0
        %v3496 = vadd.f32 %v3383, %v3495
        %v3497 = vpop.f32.mrf.mxu0
        %v3498 = vadd.f32 %v3385, %v3497
        %3499 = vmatprep.mubr.bf16.mxu0 %v2265
        %3500 = vmatmul.mubr.bf16.gmra.mxu0 %v2264
        %v3501 = vpop.f32.mrf.mxu0
        %v3502 = vadd.f32 %v3389, %v3501
        %v3503 = vpop.f32.mrf.mxu0
        %v3504 = vadd.f32 %v3391, %v3503
        %v3505 = vpop.f32.mrf.mxu0
        %v3506 = vadd.f32 %v3393, %v3505
        %v3507 = vpop.f32.mrf.mxu0
        %v3508 = vadd.f32 %v3395, %v3507
        %3509 = vdwg.mxu0
        %v3510 = vmax.f32 %v3206, 0.0
        %v3511 = vmax.f32 %v3208, 0.0
        %v3512 = vmax.f32 %v3432, 0.0
        %v3513 = vmax.f32 %v3434, 0.0
        %v3514 = vmax.f32 %v3210, 0.0
        %v3515 = vmax.f32 %v3212, 0.0
        %v3516 = vmax.f32 %v3436, 0.0
        %v3517 = vmax.f32 %v3438, 0.0
        %v3518 = vmax.f32 %v3216, 0.0
        %v3519 = vmax.f32 %v3218, 0.0
        %v3520 = vmax.f32 %v3442, 0.0
        %v3521 = vmax.f32 %v3444, 0.0
        %v3522 = vmax.f32 %v3220, 0.0
        %v3523 = vmax.f32 %v3222, 0.0
        %v3524 = vmax.f32 %v3446, 0.0
        %v3525 = vmax.f32 %v3448, 0.0
        %v3526 = vmax.f32 %v3226, 0.0
        %v3527 = vmax.f32 %v3228, 0.0
        %v3528 = vmax.f32 %v3452, 0.0
        %v3529 = vmax.f32 %v3454, 0.0
        %v3530 = vmax.f32 %v3230, 0.0
        %v3531 = vmax.f32 %v3232, 0.0
        %v3532 = vmax.f32 %v3456, 0.0
        %v3533 = vmax.f32 %v3458, 0.0
        %v3534 = vmax.f32 %v3236, 0.0
        %v3535 = vmax.f32 %v3238, 0.0
        %v3536 = vmax.f32 %v3462, 0.0
        %v3537 = vmax.f32 %v3464, 0.0
        %v3538 = vmax.f32 %v3240, 0.0
        %v3539 = vmax.f32 %v3242, 0.0
        %v3540 = vmax.f32 %v3466, 0.0
        %v3541 = vmax.f32 %v3468, 0.0
        %v3542 = vmax.f32 %v3246, 0.0
        %v3543 = vmax.f32 %v3248, 0.0
        %v3544 = vmax.f32 %v3472, 0.0
        %v3545 = vmax.f32 %v3474, 0.0
        %v3546 = vmax.f32 %v3250, 0.0
        %v3547 = vmax.f32 %v3252, 0.0
        %v3548 = vmax.f32 %v3476, 0.0
        %v3549 = vmax.f32 %v3478, 0.0
        %v3550 = vmax.f32 %v3256, 0.0
        %v3551 = vmax.f32 %v3258, 0.0
        %v3552 = vmax.f32 %v3482, 0.0
        %v3553 = vmax.f32 %v3484, 0.0
        %v3554 = vmax.f32 %v3260, 0.0
        %v3555 = vmax.f32 %v3262, 0.0
        %v3556 = vmax.f32 %v3486, 0.0
        %v3557 = vmax.f32 %v3488, 0.0
        %v3558 = vmax.f32 %v3266, 0.0
        %v3559 = vmax.f32 %v3268, 0.0
        %v3560 = vmax.f32 %v3492, 0.0
        %v3561 = vmax.f32 %v3494, 0.0
        %v3562 = vmax.f32 %v3270, 0.0
        %v3563 = vmax.f32 %v3272, 0.0
        %v3564 = vmax.f32 %v3496, 0.0
        %v3565 = vmax.f32 %v3498, 0.0
        %v3566 = vmax.f32 %v3276, 0.0
        %v3567 = vmax.f32 %v3278, 0.0
        %v3568 = vmax.f32 %v3502, 0.0
        %v3569 = vmax.f32 %v3504, 0.0
        %v3570 = vmax.f32 %v3280, 0.0
        %v3571 = vmax.f32 %v3282, 0.0
        %v3572 = vmax.f32 %v3506, 0.0
        %v3573 = vmax.f32 %v3508, 0.0
        %v3574 = vpack.c.bf16 %v3514, %v3510
        %v3575 = vpack.c.bf16 %v3515, %v3511
        %v3576 = vpack.c.bf16 %v3516, %v3512
        %v3577 = vpack.c.bf16 %v3517, %v3513
        %v3578 = vpack.c.bf16 %v3522, %v3518
        %v3579 = vpack.c.bf16 %v3523, %v3519
        %v3580 = vpack.c.bf16 %v3524, %v3520
        %v3581 = vpack.c.bf16 %v3525, %v3521
        %v3582 = vpack.c.bf16 %v3530, %v3526
        %v3583 = vpack.c.bf16 %v3531, %v3527
        %v3584 = vpack.c.bf16 %v3532, %v3528
        %v3585 = vpack.c.bf16 %v3533, %v3529
        %v3586 = vpack.c.bf16 %v3538, %v3534
        %v3587 = vpack.c.bf16 %v3539, %v3535
        %v3588 = vpack.c.bf16 %v3540, %v3536
        %v3589 = vpack.c.bf16 %v3541, %v3537
        %v3590 = vpack.c.bf16 %v3546, %v3542
        %v3591 = vpack.c.bf16 %v3547, %v3543
        %v3592 = vpack.c.bf16 %v3548, %v3544
        %v3593 = vpack.c.bf16 %v3549, %v3545
        %v3594 = vpack.c.bf16 %v3554, %v3550
        %v3595 = vpack.c.bf16 %v3555, %v3551
        %v3596 = vpack.c.bf16 %v3556, %v3552
        %v3597 = vpack.c.bf16 %v3557, %v3553
        %v3598 = vpack.c.bf16 %v3562, %v3558
        %v3599 = vpack.c.bf16 %v3563, %v3559
        %v3600 = vpack.c.bf16 %v3564, %v3560
        %v3601 = vpack.c.bf16 %v3565, %v3561
        %v3602 = vpack.c.bf16 %v3570, %v3566
        %v3603 = vpack.c.bf16 %v3571, %v3567
        %v3604 = vpack.c.bf16 %v3572, %v3568
        %v3605 = vpack.c.bf16 %v3573, %v3569
        %s3606 = scalar_lea.vmem [#allocation4], 2048
        %v3607 = vld [vmem:[%s3606] sm:$0xff]
        %v3608 = vld [vmem:[%s3606 + $0x8] sm:$0xff]
        %v3609 = vld [vmem:[%s3606 + $0x10] sm:$0xff]
        %v3610 = vld [vmem:[%s3606 + $0x18] sm:$0xff]
        %v3611 = vld [vmem:[%s3606 + $0x20] sm:$0xff]
        %v3612 = vld [vmem:[%s3606 + $0x28] sm:$0xff]
        %v3613 = vld [vmem:[%s3606 + $0x30] sm:$0xff]
        %v3614 = vld [vmem:[%s3606 + $0x38] sm:$0xff]
        %v3615 = vld [vmem:[%s3606 + $0x40] sm:$0xff]
        %v3616 = vld [vmem:[%s3606 + $0x48] sm:$0xff]
        %v3617 = vld [vmem:[%s3606 + $0x50] sm:$0xff]
        %v3618 = vld [vmem:[%s3606 + $0x58] sm:$0xff]
        %v3619 = vld [vmem:[%s3606 + $0x60] sm:$0xff]
        %v3620 = vld [vmem:[%s3606 + $0x68] sm:$0xff]
        %v3621 = vld [vmem:[%s3606 + $0x70] sm:$0xff]
        %v3622 = vld [vmem:[%s3606 + $0x78] sm:$0xff]
        %v3623 = vld [vmem:[%s3606 + $0x80] sm:$0xff]
        %v3624 = vld [vmem:[%s3606 + $0x88] sm:$0xff]
        %v3625 = vld [vmem:[%s3606 + $0x90] sm:$0xff]
        %v3626 = vld [vmem:[%s3606 + $0x98] sm:$0xff]
        %v3627 = vld [vmem:[%s3606 + $0xa0] sm:$0xff]
        %v3628 = vld [vmem:[%s3606 + $0xa8] sm:$0xff]
        %v3629 = vld [vmem:[%s3606 + $0xb0] sm:$0xff]
        %v3630 = vld [vmem:[%s3606 + $0xb8] sm:$0xff]
        %v3631 = vld [vmem:[%s3606 + $0xc0] sm:$0xff]
        %v3632 = vld [vmem:[%s3606 + $0xc8] sm:$0xff]
        %v3633 = vld [vmem:[%s3606 + $0xd0] sm:$0xff]
        %v3634 = vld [vmem:[%s3606 + $0xd8] sm:$0xff]
        %v3635 = vld [vmem:[%s3606 + $0xe0] sm:$0xff]
        %v3636 = vld [vmem:[%s3606 + $0xe8] sm:$0xff]
        %v3637 = vld [vmem:[%s3606 + $0xf0] sm:$0xff]
        %v3638 = vld [vmem:[%s3606 + $0xf8] sm:$0xff]
        %v3639 = vld [vmem:[%s3606 + $0x100] sm:$0xff]
        %v3640 = vld [vmem:[%s3606 + $0x108] sm:$0xff]
        %v3641 = vld [vmem:[%s3606 + $0x110] sm:$0xff]
        %v3642 = vld [vmem:[%s3606 + $0x118] sm:$0xff]
        %v3643 = vld [vmem:[%s3606 + $0x120] sm:$0xff]
        %v3644 = vld [vmem:[%s3606 + $0x128] sm:$0xff]
        %v3645 = vld [vmem:[%s3606 + $0x130] sm:$0xff]
        %v3646 = vld [vmem:[%s3606 + $0x138] sm:$0xff]
        %v3647 = vld [vmem:[%s3606 + $0x140] sm:$0xff]
        %v3648 = vld [vmem:[%s3606 + $0x148] sm:$0xff]
        %v3649 = vld [vmem:[%s3606 + $0x150] sm:$0xff]
        %v3650 = vld [vmem:[%s3606 + $0x158] sm:$0xff]
        %v3651 = vld [vmem:[%s3606 + $0x160] sm:$0xff]
        %v3652 = vld [vmem:[%s3606 + $0x168] sm:$0xff]
        %v3653 = vld [vmem:[%s3606 + $0x170] sm:$0xff]
        %v3654 = vld [vmem:[%s3606 + $0x178] sm:$0xff]
        %v3655 = vld [vmem:[%s3606 + $0x180] sm:$0xff]
        %v3656 = vld [vmem:[%s3606 + $0x188] sm:$0xff]
        %v3657 = vld [vmem:[%s3606 + $0x190] sm:$0xff]
        %v3658 = vld [vmem:[%s3606 + $0x198] sm:$0xff]
        %v3659 = vld [vmem:[%s3606 + $0x1a0] sm:$0xff]
        %v3660 = vld [vmem:[%s3606 + $0x1a8] sm:$0xff]
        %v3661 = vld [vmem:[%s3606 + $0x1b0] sm:$0xff]
        %v3662 = vld [vmem:[%s3606 + $0x1b8] sm:$0xff]
        %v3663 = vld [vmem:[%s3606 + $0x1c0] sm:$0xff]
        %v3664 = vld [vmem:[%s3606 + $0x1c8] sm:$0xff]
        %v3665 = vld [vmem:[%s3606 + $0x1d0] sm:$0xff]
        %v3666 = vld [vmem:[%s3606 + $0x1d8] sm:$0xff]
        %v3667 = vld [vmem:[%s3606 + $0x1e0] sm:$0xff]
        %v3668 = vld [vmem:[%s3606 + $0x1e8] sm:$0xff]
        %v3669 = vld [vmem:[%s3606 + $0x1f0] sm:$0xff]
        %v3670 = vld [vmem:[%s3606 + $0x1f8] sm:$0xff]
        %v3671 = vld [vmem:[%s3606 + $0x200] sm:$0xff]
        %v3672 = vld [vmem:[%s3606 + $0x208] sm:$0xff]
        %v3673 = vld [vmem:[%s3606 + $0x210] sm:$0xff]
        %v3674 = vld [vmem:[%s3606 + $0x218] sm:$0xff]
        %v3675 = vld [vmem:[%s3606 + $0x220] sm:$0xff]
        %v3676 = vld [vmem:[%s3606 + $0x228] sm:$0xff]
        %v3677 = vld [vmem:[%s3606 + $0x230] sm:$0xff]
        %v3678 = vld [vmem:[%s3606 + $0x238] sm:$0xff]
        %v3679 = vld [vmem:[%s3606 + $0x240] sm:$0xff]
        %v3680 = vld [vmem:[%s3606 + $0x248] sm:$0xff]
        %v3681 = vld [vmem:[%s3606 + $0x250] sm:$0xff]
        %v3682 = vld [vmem:[%s3606 + $0x258] sm:$0xff]
        %v3683 = vld [vmem:[%s3606 + $0x260] sm:$0xff]
        %v3684 = vld [vmem:[%s3606 + $0x268] sm:$0xff]
        %v3685 = vld [vmem:[%s3606 + $0x270] sm:$0xff]
        %v3686 = vld [vmem:[%s3606 + $0x278] sm:$0xff]
        %v3687 = vld [vmem:[%s3606 + $0x280] sm:$0xff]
        %v3688 = vld [vmem:[%s3606 + $0x288] sm:$0xff]
        %v3689 = vld [vmem:[%s3606 + $0x290] sm:$0xff]
        %v3690 = vld [vmem:[%s3606 + $0x298] sm:$0xff]
        %v3691 = vld [vmem:[%s3606 + $0x2a0] sm:$0xff]
        %v3692 = vld [vmem:[%s3606 + $0x2a8] sm:$0xff]
        %v3693 = vld [vmem:[%s3606 + $0x2b0] sm:$0xff]
        %v3694 = vld [vmem:[%s3606 + $0x2b8] sm:$0xff]
        %v3695 = vld [vmem:[%s3606 + $0x2c0] sm:$0xff]
        %v3696 = vld [vmem:[%s3606 + $0x2c8] sm:$0xff]
        %v3697 = vld [vmem:[%s3606 + $0x2d0] sm:$0xff]
        %v3698 = vld [vmem:[%s3606 + $0x2d8] sm:$0xff]
        %v3699 = vld [vmem:[%s3606 + $0x2e0] sm:$0xff]
        %v3700 = vld [vmem:[%s3606 + $0x2e8] sm:$0xff]
        %v3701 = vld [vmem:[%s3606 + $0x2f0] sm:$0xff]
        %v3702 = vld [vmem:[%s3606 + $0x2f8] sm:$0xff]
        %v3703 = vld [vmem:[%s3606 + $0x300] sm:$0xff]
        %v3704 = vld [vmem:[%s3606 + $0x308] sm:$0xff]
        %v3705 = vld [vmem:[%s3606 + $0x310] sm:$0xff]
        %v3706 = vld [vmem:[%s3606 + $0x318] sm:$0xff]
        %v3707 = vld [vmem:[%s3606 + $0x320] sm:$0xff]
        %v3708 = vld [vmem:[%s3606 + $0x328] sm:$0xff]
        %v3709 = vld [vmem:[%s3606 + $0x330] sm:$0xff]
        %v3710 = vld [vmem:[%s3606 + $0x338] sm:$0xff]
        %v3711 = vld [vmem:[%s3606 + $0x340] sm:$0xff]
        %v3712 = vld [vmem:[%s3606 + $0x348] sm:$0xff]
        %v3713 = vld [vmem:[%s3606 + $0x350] sm:$0xff]
        %v3714 = vld [vmem:[%s3606 + $0x358] sm:$0xff]
        %v3715 = vld [vmem:[%s3606 + $0x360] sm:$0xff]
        %v3716 = vld [vmem:[%s3606 + $0x368] sm:$0xff]
        %v3717 = vld [vmem:[%s3606 + $0x370] sm:$0xff]
        %v3718 = vld [vmem:[%s3606 + $0x378] sm:$0xff]
        %v3719 = vld [vmem:[%s3606 + $0x380] sm:$0xff]
        %v3720 = vld [vmem:[%s3606 + $0x388] sm:$0xff]
        %v3721 = vld [vmem:[%s3606 + $0x390] sm:$0xff]
        %v3722 = vld [vmem:[%s3606 + $0x398] sm:$0xff]
        %v3723 = vld [vmem:[%s3606 + $0x3a0] sm:$0xff]
        %v3724 = vld [vmem:[%s3606 + $0x3a8] sm:$0xff]
        %v3725 = vld [vmem:[%s3606 + $0x3b0] sm:$0xff]
        %v3726 = vld [vmem:[%s3606 + $0x3b8] sm:$0xff]
        %v3727 = vld [vmem:[%s3606 + $0x3c0] sm:$0xff]
        %v3728 = vld [vmem:[%s3606 + $0x3c8] sm:$0xff]
        %v3729 = vld [vmem:[%s3606 + $0x3d0] sm:$0xff]
        %v3730 = vld [vmem:[%s3606 + $0x3d8] sm:$0xff]
        %v3731 = vld [vmem:[%s3606 + $0x3e0] sm:$0xff]
        %v3732 = vld [vmem:[%s3606 + $0x3e8] sm:$0xff]
        %v3733 = vld [vmem:[%s3606 + $0x3f0] sm:$0xff]
        %v3734 = vld [vmem:[%s3606 + $0x3f8] sm:$0xff]
        %s3735 = scalar_lea.vmem [#allocation7], 12
        %v3736 = vld [vmem:[%s3735] sm:$0xf]
        %v3738 = vlaneseq
        %v3739 = vshrl.u32 %v3738, 7
        %v3740 = vsub.s32 0, %v3739
        %v3741 = vrot.slane %v3736, %v3740
        %v3742 = vlaneseq
        %v3743 = vshrl.u32 %v3742, 7
        %v3744 = vsub.s32 1, %v3743
        %v3745 = vrot.slane %v3736, %v3744
        %v3746 = vlaneseq
        %v3747 = vshrl.u32 %v3746, 7
        %v3748 = vsub.s32 2, %v3747
        %v3749 = vrot.slane %v3736, %v3748
        %v3750 = vlaneseq
        %v3751 = vshrl.u32 %v3750, 7
        %v3752 = vsub.s32 3, %v3751
        %v3753 = vrot.slane %v3736, %v3752
        %v3886 = vunpack.c.l.b16 %v3607
        %v3887 = vunpack.c.h.b16 %v3607
        %v3888 = vunpack.c.l.b16 %v3608
        %v3889 = vunpack.c.h.b16 %v3608
        %v3890 = vunpack.c.l.b16 %v3609
        %v3891 = vunpack.c.h.b16 %v3609
        %v3892 = vunpack.c.l.b16 %v3610
        %v3893 = vunpack.c.h.b16 %v3610
        %v3894 = vunpack.c.l.b16 %v3611
        %v3895 = vunpack.c.h.b16 %v3611
        %v3896 = vunpack.c.l.b16 %v3612
        %v3897 = vunpack.c.h.b16 %v3612
        %v3898 = vunpack.c.l.b16 %v3613
        %v3899 = vunpack.c.h.b16 %v3613
        %v3900 = vunpack.c.l.b16 %v3614
        %v3901 = vunpack.c.h.b16 %v3614
        %v3902 = vunpack.c.l.b16 %v3615
        %v3903 = vunpack.c.h.b16 %v3615
        %v3904 = vunpack.c.l.b16 %v3616
        %v3905 = vunpack.c.h.b16 %v3616
        %v3906 = vunpack.c.l.b16 %v3617
        %v3907 = vunpack.c.h.b16 %v3617
        %v3908 = vunpack.c.l.b16 %v3618
        %v3909 = vunpack.c.h.b16 %v3618
        %v3910 = vunpack.c.l.b16 %v3619
        %v3911 = vunpack.c.h.b16 %v3619
        %v3912 = vunpack.c.l.b16 %v3620
        %v3913 = vunpack.c.h.b16 %v3620
        %v3914 = vunpack.c.l.b16 %v3621
        %v3915 = vunpack.c.h.b16 %v3621
        %v3916 = vunpack.c.l.b16 %v3622
        %v3917 = vunpack.c.h.b16 %v3622
        %v3918 = vunpack.c.l.b16 %v3623
        %v3919 = vunpack.c.h.b16 %v3623
        %v3920 = vunpack.c.l.b16 %v3624
        %v3921 = vunpack.c.h.b16 %v3624
        %v3922 = vunpack.c.l.b16 %v3625
        %v3923 = vunpack.c.h.b16 %v3625
        %v3924 = vunpack.c.l.b16 %v3626
        %v3925 = vunpack.c.h.b16 %v3626
        %v3926 = vunpack.c.l.b16 %v3627
        %v3927 = vunpack.c.h.b16 %v3627
        %v3928 = vunpack.c.l.b16 %v3628
        %v3929 = vunpack.c.h.b16 %v3628
        %v3930 = vunpack.c.l.b16 %v3629
        %v3931 = vunpack.c.h.b16 %v3629
        %v3932 = vunpack.c.l.b16 %v3630
        %v3933 = vunpack.c.h.b16 %v3630
        %v3934 = vunpack.c.l.b16 %v3631
        %v3935 = vunpack.c.h.b16 %v3631
        %v3936 = vunpack.c.l.b16 %v3632
        %v3937 = vunpack.c.h.b16 %v3632
        %v3938 = vunpack.c.l.b16 %v3633
        %v3939 = vunpack.c.h.b16 %v3633
        %v3940 = vunpack.c.l.b16 %v3634
        %v3941 = vunpack.c.h.b16 %v3634
        %v3942 = vunpack.c.l.b16 %v3635
        %v3943 = vunpack.c.h.b16 %v3635
        %v3944 = vunpack.c.l.b16 %v3636
        %v3945 = vunpack.c.h.b16 %v3636
        %v3946 = vunpack.c.l.b16 %v3637
        %v3947 = vunpack.c.h.b16 %v3637
        %v3948 = vunpack.c.l.b16 %v3638
        %v3949 = vunpack.c.h.b16 %v3638
        %v3950 = vunpack.c.l.b16 %v3639
        %v3951 = vunpack.c.h.b16 %v3639
        %v3952 = vunpack.c.l.b16 %v3640
        %v3953 = vunpack.c.h.b16 %v3640
        %v3954 = vunpack.c.l.b16 %v3641
        %v3955 = vunpack.c.h.b16 %v3641
        %v3956 = vunpack.c.l.b16 %v3642
        %v3957 = vunpack.c.h.b16 %v3642
        %v3958 = vunpack.c.l.b16 %v3643
        %v3959 = vunpack.c.h.b16 %v3643
        %v3960 = vunpack.c.l.b16 %v3644
        %v3961 = vunpack.c.h.b16 %v3644
        %v3962 = vunpack.c.l.b16 %v3645
        %v3963 = vunpack.c.h.b16 %v3645
        %v3964 = vunpack.c.l.b16 %v3646
        %v3965 = vunpack.c.h.b16 %v3646
        %v3966 = vunpack.c.l.b16 %v3647
        %v3967 = vunpack.c.h.b16 %v3647
        %v3968 = vunpack.c.l.b16 %v3648
        %v3969 = vunpack.c.h.b16 %v3648
        %v3970 = vunpack.c.l.b16 %v3649
        %v3971 = vunpack.c.h.b16 %v3649
        %v3972 = vunpack.c.l.b16 %v3650
        %v3973 = vunpack.c.h.b16 %v3650
        %v3974 = vunpack.c.l.b16 %v3651
        %v3975 = vunpack.c.h.b16 %v3651
        %v3976 = vunpack.c.l.b16 %v3652
        %v3977 = vunpack.c.h.b16 %v3652
        %v3978 = vunpack.c.l.b16 %v3653
        %v3979 = vunpack.c.h.b16 %v3653
        %v3980 = vunpack.c.l.b16 %v3654
        %v3981 = vunpack.c.h.b16 %v3654
        %v3982 = vunpack.c.l.b16 %v3655
        %v3983 = vunpack.c.h.b16 %v3655
        %v3984 = vunpack.c.l.b16 %v3656
        %v3985 = vunpack.c.h.b16 %v3656
        %v3986 = vunpack.c.l.b16 %v3657
        %v3987 = vunpack.c.h.b16 %v3657
        %v3988 = vunpack.c.l.b16 %v3658
        %v3989 = vunpack.c.h.b16 %v3658
        %v3990 = vunpack.c.l.b16 %v3659
        %v3991 = vunpack.c.h.b16 %v3659
        %v3992 = vunpack.c.l.b16 %v3660
        %v3993 = vunpack.c.h.b16 %v3660
        %v3994 = vunpack.c.l.b16 %v3661
        %v3995 = vunpack.c.h.b16 %v3661
        %v3996 = vunpack.c.l.b16 %v3662
        %v3997 = vunpack.c.h.b16 %v3662
        %v3998 = vunpack.c.l.b16 %v3663
        %v3999 = vunpack.c.h.b16 %v3663
        %v4000 = vunpack.c.l.b16 %v3664
        %v4001 = vunpack.c.h.b16 %v3664
        %v4002 = vunpack.c.l.b16 %v3665
        %v4003 = vunpack.c.h.b16 %v3665
        %v4004 = vunpack.c.l.b16 %v3666
        %v4005 = vunpack.c.h.b16 %v3666
        %v4006 = vunpack.c.l.b16 %v3667
        %v4007 = vunpack.c.h.b16 %v3667
        %v4008 = vunpack.c.l.b16 %v3668
        %v4009 = vunpack.c.h.b16 %v3668
        %v4010 = vunpack.c.l.b16 %v3669
        %v4011 = vunpack.c.h.b16 %v3669
        %v4012 = vunpack.c.l.b16 %v3670
        %v4013 = vunpack.c.h.b16 %v3670
        %v4014 = vunpack.c.l.b16 %v3671
        %v4015 = vunpack.c.h.b16 %v3671
        %v4016 = vunpack.c.l.b16 %v3672
        %v4017 = vunpack.c.h.b16 %v3672
        %v4018 = vunpack.c.l.b16 %v3673
        %v4019 = vunpack.c.h.b16 %v3673
        %v4020 = vunpack.c.l.b16 %v3674
        %v4021 = vunpack.c.h.b16 %v3674
        %v4022 = vunpack.c.l.b16 %v3675
        %v4023 = vunpack.c.h.b16 %v3675
        %v4024 = vunpack.c.l.b16 %v3676
        %v4025 = vunpack.c.h.b16 %v3676
        %v4026 = vunpack.c.l.b16 %v3677
        %v4027 = vunpack.c.h.b16 %v3677
        %v4028 = vunpack.c.l.b16 %v3678
        %v4029 = vunpack.c.h.b16 %v3678
        %v4030 = vunpack.c.l.b16 %v3679
        %v4031 = vunpack.c.h.b16 %v3679
        %v4032 = vunpack.c.l.b16 %v3680
        %v4033 = vunpack.c.h.b16 %v3680
        %v4034 = vunpack.c.l.b16 %v3681
        %v4035 = vunpack.c.h.b16 %v3681
        %v4036 = vunpack.c.l.b16 %v3682
        %v4037 = vunpack.c.h.b16 %v3682
        %v4038 = vunpack.c.l.b16 %v3683
        %v4039 = vunpack.c.h.b16 %v3683
        %v4040 = vunpack.c.l.b16 %v3684
        %v4041 = vunpack.c.h.b16 %v3684
        %v4042 = vunpack.c.l.b16 %v3685
        %v4043 = vunpack.c.h.b16 %v3685
        %v4044 = vunpack.c.l.b16 %v3686
        %v4045 = vunpack.c.h.b16 %v3686
        %v4046 = vunpack.c.l.b16 %v3687
        %v4047 = vunpack.c.h.b16 %v3687
        %v4048 = vunpack.c.l.b16 %v3688
        %v4049 = vunpack.c.h.b16 %v3688
        %v4050 = vunpack.c.l.b16 %v3689
        %v4051 = vunpack.c.h.b16 %v3689
        %v4052 = vunpack.c.l.b16 %v3690
        %v4053 = vunpack.c.h.b16 %v3690
        %v4054 = vunpack.c.l.b16 %v3691
        %v4055 = vunpack.c.h.b16 %v3691
        %v4056 = vunpack.c.l.b16 %v3692
        %v4057 = vunpack.c.h.b16 %v3692
        %v4058 = vunpack.c.l.b16 %v3693
        %v4059 = vunpack.c.h.b16 %v3693
        %v4060 = vunpack.c.l.b16 %v3694
        %v4061 = vunpack.c.h.b16 %v3694
        %v4062 = vunpack.c.l.b16 %v3695
        %v4063 = vunpack.c.h.b16 %v3695
        %v4064 = vunpack.c.l.b16 %v3696
        %v4065 = vunpack.c.h.b16 %v3696
        %v4066 = vunpack.c.l.b16 %v3697
        %v4067 = vunpack.c.h.b16 %v3697
        %v4068 = vunpack.c.l.b16 %v3698
        %v4069 = vunpack.c.h.b16 %v3698
        %v4070 = vunpack.c.l.b16 %v3699
        %v4071 = vunpack.c.h.b16 %v3699
        %v4072 = vunpack.c.l.b16 %v3700
        %v4073 = vunpack.c.h.b16 %v3700
        %v4074 = vunpack.c.l.b16 %v3701
        %v4075 = vunpack.c.h.b16 %v3701
        %v4076 = vunpack.c.l.b16 %v3702
        %v4077 = vunpack.c.h.b16 %v3702
        %v4078 = vunpack.c.l.b16 %v3703
        %v4079 = vunpack.c.h.b16 %v3703
        %v4080 = vunpack.c.l.b16 %v3704
        %v4081 = vunpack.c.h.b16 %v3704
        %v4082 = vunpack.c.l.b16 %v3705
        %v4083 = vunpack.c.h.b16 %v3705
        %v4084 = vunpack.c.l.b16 %v3706
        %v4085 = vunpack.c.h.b16 %v3706
        %v4086 = vunpack.c.l.b16 %v3707
        %v4087 = vunpack.c.h.b16 %v3707
        %v4088 = vunpack.c.l.b16 %v3708
        %v4089 = vunpack.c.h.b16 %v3708
        %v4090 = vunpack.c.l.b16 %v3709
        %v4091 = vunpack.c.h.b16 %v3709
        %v4092 = vunpack.c.l.b16 %v3710
        %v4093 = vunpack.c.h.b16 %v3710
        %v4094 = vunpack.c.l.b16 %v3711
        %v4095 = vunpack.c.h.b16 %v3711
        %v4096 = vunpack.c.l.b16 %v3712
        %v4097 = vunpack.c.h.b16 %v3712
        %v4098 = vunpack.c.l.b16 %v3713
        %v4099 = vunpack.c.h.b16 %v3713
        %v4100 = vunpack.c.l.b16 %v3714
        %v4101 = vunpack.c.h.b16 %v3714
        %v4102 = vunpack.c.l.b16 %v3715
        %v4103 = vunpack.c.h.b16 %v3715
        %v4104 = vunpack.c.l.b16 %v3716
        %v4105 = vunpack.c.h.b16 %v3716
        %v4106 = vunpack.c.l.b16 %v3717
        %v4107 = vunpack.c.h.b16 %v3717
        %v4108 = vunpack.c.l.b16 %v3718
        %v4109 = vunpack.c.h.b16 %v3718
        %v4110 = vunpack.c.l.b16 %v3719
        %v4111 = vunpack.c.h.b16 %v3719
        %v4112 = vunpack.c.l.b16 %v3720
        %v4113 = vunpack.c.h.b16 %v3720
        %v4114 = vunpack.c.l.b16 %v3721
        %v4115 = vunpack.c.h.b16 %v3721
        %v4116 = vunpack.c.l.b16 %v3722
        %v4117 = vunpack.c.h.b16 %v3722
        %v4118 = vunpack.c.l.b16 %v3723
        %v4119 = vunpack.c.h.b16 %v3723
        %v4120 = vunpack.c.l.b16 %v3724
        %v4121 = vunpack.c.h.b16 %v3724
        %v4122 = vunpack.c.l.b16 %v3725
        %v4123 = vunpack.c.h.b16 %v3725
        %v4124 = vunpack.c.l.b16 %v3726
        %v4125 = vunpack.c.h.b16 %v3726
        %v4126 = vunpack.c.l.b16 %v3727
        %v4127 = vunpack.c.h.b16 %v3727
        %v4128 = vunpack.c.l.b16 %v3728
        %v4129 = vunpack.c.h.b16 %v3728
        %v4130 = vunpack.c.l.b16 %v3729
        %v4131 = vunpack.c.h.b16 %v3729
        %v4132 = vunpack.c.l.b16 %v3730
        %v4133 = vunpack.c.h.b16 %v3730
        %v4134 = vunpack.c.l.b16 %v3731
        %v4135 = vunpack.c.h.b16 %v3731
        %v4136 = vunpack.c.l.b16 %v3732
        %v4137 = vunpack.c.h.b16 %v3732
        %v4138 = vunpack.c.l.b16 %v3733
        %v4139 = vunpack.c.h.b16 %v3733
        %v4140 = vunpack.c.l.b16 %v3734
        %v4141 = vunpack.c.h.b16 %v3734
        %v4142 = vpack.c.b16 %v3890, %v3886
        %v4143 = vpack.c.b16 %v3891, %v3887
        %v4144 = vpack.c.b16 %v3892, %v3888
        %v4145 = vpack.c.b16 %v3893, %v3889
        %v4146 = vpack.c.b16 %v3898, %v3894
        %v4147 = vpack.c.b16 %v3899, %v3895
        %v4148 = vpack.c.b16 %v3900, %v3896
        %v4149 = vpack.c.b16 %v3901, %v3897
        %v4150 = vpack.c.b16 %v3906, %v3902
        %v4151 = vpack.c.b16 %v3907, %v3903
        %v4152 = vpack.c.b16 %v3908, %v3904
        %v4153 = vpack.c.b16 %v3909, %v3905
        %v4154 = vpack.c.b16 %v3914, %v3910
        %v4155 = vpack.c.b16 %v3915, %v3911
        %v4156 = vpack.c.b16 %v3916, %v3912
        %v4157 = vpack.c.b16 %v3917, %v3913
        %v4158 = vpack.c.b16 %v3922, %v3918
        %v4159 = vpack.c.b16 %v3923, %v3919
        %v4160 = vpack.c.b16 %v3924, %v3920
        %v4161 = vpack.c.b16 %v3925, %v3921
        %v4162 = vpack.c.b16 %v3930, %v3926
        %v4163 = vpack.c.b16 %v3931, %v3927
        %v4164 = vpack.c.b16 %v3932, %v3928
        %v4165 = vpack.c.b16 %v3933, %v3929
        %v4166 = vpack.c.b16 %v3938, %v3934
        %v4167 = vpack.c.b16 %v3939, %v3935
        %v4168 = vpack.c.b16 %v3940, %v3936
        %v4169 = vpack.c.b16 %v3941, %v3937
        %v4170 = vpack.c.b16 %v3946, %v3942
        %v4171 = vpack.c.b16 %v3947, %v3943
        %v4172 = vpack.c.b16 %v3948, %v3944
        %v4173 = vpack.c.b16 %v3949, %v3945
        %v4174 = vpack.c.b16 %v3954, %v3950
        %v4175 = vpack.c.b16 %v3955, %v3951
        %v4176 = vpack.c.b16 %v3956, %v3952
        %v4177 = vpack.c.b16 %v3957, %v3953
        %v4178 = vpack.c.b16 %v3962, %v3958
        %v4179 = vpack.c.b16 %v3963, %v3959
        %v4180 = vpack.c.b16 %v3964, %v3960
        %v4181 = vpack.c.b16 %v3965, %v3961
        %v4182 = vpack.c.b16 %v3970, %v3966
        %v4183 = vpack.c.b16 %v3971, %v3967
        %v4184 = vpack.c.b16 %v3972, %v3968
        %v4185 = vpack.c.b16 %v3973, %v3969
        %v4186 = vpack.c.b16 %v3978, %v3974
        %v4187 = vpack.c.b16 %v3979, %v3975
        %v4188 = vpack.c.b16 %v3980, %v3976
        %v4189 = vpack.c.b16 %v3981, %v3977
        %v4190 = vpack.c.b16 %v3986, %v3982
        %v4191 = vpack.c.b16 %v3987, %v3983
        %v4192 = vpack.c.b16 %v3988, %v3984
        %v4193 = vpack.c.b16 %v3989, %v3985
        %v4194 = vpack.c.b16 %v3994, %v3990
        %v4195 = vpack.c.b16 %v3995, %v3991
        %v4196 = vpack.c.b16 %v3996, %v3992
        %v4197 = vpack.c.b16 %v3997, %v3993
        %v4198 = vpack.c.b16 %v4002, %v3998
        %v4199 = vpack.c.b16 %v4003, %v3999
        %v4200 = vpack.c.b16 %v4004, %v4000
        %v4201 = vpack.c.b16 %v4005, %v4001
        %v4202 = vpack.c.b16 %v4010, %v4006
        %v4203 = vpack.c.b16 %v4011, %v4007
        %v4204 = vpack.c.b16 %v4012, %v4008
        %v4205 = vpack.c.b16 %v4013, %v4009
        %v4206 = vpack.c.b16 %v4018, %v4014
        %v4207 = vpack.c.b16 %v4019, %v4015
        %v4208 = vpack.c.b16 %v4020, %v4016
        %v4209 = vpack.c.b16 %v4021, %v4017
        %v4210 = vpack.c.b16 %v4026, %v4022
        %v4211 = vpack.c.b16 %v4027, %v4023
        %v4212 = vpack.c.b16 %v4028, %v4024
        %v4213 = vpack.c.b16 %v4029, %v4025
        %v4214 = vpack.c.b16 %v4034, %v4030
        %v4215 = vpack.c.b16 %v4035, %v4031
        %v4216 = vpack.c.b16 %v4036, %v4032
        %v4217 = vpack.c.b16 %v4037, %v4033
        %v4218 = vpack.c.b16 %v4042, %v4038
        %v4219 = vpack.c.b16 %v4043, %v4039
        %v4220 = vpack.c.b16 %v4044, %v4040
        %v4221 = vpack.c.b16 %v4045, %v4041
        %v4222 = vpack.c.b16 %v4050, %v4046
        %v4223 = vpack.c.b16 %v4051, %v4047
        %v4224 = vpack.c.b16 %v4052, %v4048
        %v4225 = vpack.c.b16 %v4053, %v4049
        %v4226 = vpack.c.b16 %v4058, %v4054
        %v4227 = vpack.c.b16 %v4059, %v4055
        %v4228 = vpack.c.b16 %v4060, %v4056
        %v4229 = vpack.c.b16 %v4061, %v4057
        %v4230 = vpack.c.b16 %v4066, %v4062
        %v4231 = vpack.c.b16 %v4067, %v4063
        %v4232 = vpack.c.b16 %v4068, %v4064
        %v4233 = vpack.c.b16 %v4069, %v4065
        %v4234 = vpack.c.b16 %v4074, %v4070
        %v4235 = vpack.c.b16 %v4075, %v4071
        %v4236 = vpack.c.b16 %v4076, %v4072
        %v4237 = vpack.c.b16 %v4077, %v4073
        %v4238 = vpack.c.b16 %v4082, %v4078
        %v4239 = vpack.c.b16 %v4083, %v4079
        %v4240 = vpack.c.b16 %v4084, %v4080
        %v4241 = vpack.c.b16 %v4085, %v4081
        %v4242 = vpack.c.b16 %v4090, %v4086
        %v4243 = vpack.c.b16 %v4091, %v4087
        %v4244 = vpack.c.b16 %v4092, %v4088
        %v4245 = vpack.c.b16 %v4093, %v4089
        %v4246 = vpack.c.b16 %v4098, %v4094
        %v4247 = vpack.c.b16 %v4099, %v4095
        %v4248 = vpack.c.b16 %v4100, %v4096
        %v4249 = vpack.c.b16 %v4101, %v4097
        %v4250 = vpack.c.b16 %v4106, %v4102
        %v4251 = vpack.c.b16 %v4107, %v4103
        %v4252 = vpack.c.b16 %v4108, %v4104
        %v4253 = vpack.c.b16 %v4109, %v4105
        %v4254 = vpack.c.b16 %v4114, %v4110
        %v4255 = vpack.c.b16 %v4115, %v4111
        %v4256 = vpack.c.b16 %v4116, %v4112
        %v4257 = vpack.c.b16 %v4117, %v4113
        %v4258 = vpack.c.b16 %v4122, %v4118
        %v4259 = vpack.c.b16 %v4123, %v4119
        %v4260 = vpack.c.b16 %v4124, %v4120
        %v4261 = vpack.c.b16 %v4125, %v4121
        %v4262 = vpack.c.b16 %v4130, %v4126
        %v4263 = vpack.c.b16 %v4131, %v4127
        %v4264 = vpack.c.b16 %v4132, %v4128
        %v4265 = vpack.c.b16 %v4133, %v4129
        %v4266 = vpack.c.b16 %v4138, %v4134
        %v4267 = vpack.c.b16 %v4139, %v4135
        %v4268 = vpack.c.b16 %v4140, %v4136
        %v4269 = vpack.c.b16 %v4141, %v4137
        %4398 = vmatprep.subr.bf16.mxu0 %v4171
        %4399 = vmatpush1.bf16.msra.mxu0 %v4170
        %4400 = vmatprep.subr.bf16.mxu0 %v4167
        %4401 = vmatpush1.bf16.msra.mxu0 %v4166
        %4402 = vmatprep.subr.bf16.mxu0 %v4163
        %4403 = vmatpush1.bf16.msra.mxu0 %v4162
        %4404 = vmatprep.subr.bf16.mxu0 %v4159
        %4405 = vmatpush1.bf16.msra.mxu0 %v4158
        %4406 = vmatprep.subr.bf16.mxu0 %v4155
        %4407 = vmatpush1.bf16.msra.mxu0 %v4154
        %4408 = vmatprep.subr.bf16.mxu0 %v4151
        %4409 = vmatpush1.bf16.msra.mxu0 %v4150
        %4410 = vmatprep.subr.bf16.mxu0 %v4147
        %4411 = vmatpush1.bf16.msra.mxu0 %v4146
        %4412 = vmatprep.subr.bf16.mxu0 %v4143
        %4413 = vmatpush1.bf16.msra.mxu0 %v4142
        %4414 = vmatprep.subr.bf16.mxu0 %v4203
        %4415 = vmatpush2.bf16.msra.mxu0 %v4202
        %4416 = vmatprep.subr.bf16.mxu0 %v4199
        %4417 = vmatpush2.bf16.msra.mxu0 %v4198
        %4418 = vmatprep.subr.bf16.mxu0 %v4195
        %4419 = vmatpush2.bf16.msra.mxu0 %v4194
        %4420 = vmatprep.subr.bf16.mxu0 %v4191
        %4421 = vmatpush2.bf16.msra.mxu0 %v4190
        %4422 = vmatprep.subr.bf16.mxu0 %v4187
        %4423 = vmatpush2.bf16.msra.mxu0 %v4186
        %4424 = vmatprep.subr.bf16.mxu0 %v4183
        %4425 = vmatpush2.bf16.msra.mxu0 %v4182
        %4426 = vmatprep.subr.bf16.mxu0 %v4179
        %4427 = vmatpush2.bf16.msra.mxu0 %v4178
        %4428 = vmatprep.subr.bf16.mxu0 %v4175
        %4429 = vmatpush2.bf16.msra.mxu0 %v4174
        %4430 = vmatprep.mubr.bf16.mxu0 %v3575
        %4431 = vmatmul.mubr.bf16.gmra.mxu0 %v3574
        %v4432 = vpop.f32.mrf.mxu0
        %v4433 = vadd.f32 %v3741, %v4432
        %v4434 = vpop.f32.mrf.mxu0
        %v4435 = vadd.f32 %v3745, %v4434
        %v4436 = vpop.f32.mrf.mxu0
        %v4437 = vadd.f32 %v3741, %v4436
        %v4438 = vpop.f32.mrf.mxu0
        %v4439 = vadd.f32 %v3745, %v4438
        %4440 = vmatprep.mubr.bf16.mxu0 %v3579
        %4441 = vmatmul.mubr.bf16.gmra.mxu0 %v3578
        %v4442 = vpop.f32.mrf.mxu0
        %v4443 = vadd.f32 %v3741, %v4442
        %v4444 = vpop.f32.mrf.mxu0
        %v4445 = vadd.f32 %v3745, %v4444
        %v4446 = vpop.f32.mrf.mxu0
        %v4447 = vadd.f32 %v3741, %v4446
        %v4448 = vpop.f32.mrf.mxu0
        %v4449 = vadd.f32 %v3745, %v4448
        %4450 = vmatprep.mubr.bf16.mxu0 %v3583
        %4451 = vmatmul.mubr.bf16.gmra.mxu0 %v3582
        %v4452 = vpop.f32.mrf.mxu0
        %v4453 = vadd.f32 %v3741, %v4452
        %v4454 = vpop.f32.mrf.mxu0
        %v4455 = vadd.f32 %v3745, %v4454
        %v4456 = vpop.f32.mrf.mxu0
        %v4457 = vadd.f32 %v3741, %v4456
        %v4458 = vpop.f32.mrf.mxu0
        %v4459 = vadd.f32 %v3745, %v4458
        %4460 = vmatprep.mubr.bf16.mxu0 %v3587
        %4461 = vmatmul.mubr.bf16.gmra.mxu0 %v3586
        %v4462 = vpop.f32.mrf.mxu0
        %v4463 = vadd.f32 %v3741, %v4462
        %v4464 = vpop.f32.mrf.mxu0
        %v4465 = vadd.f32 %v3745, %v4464
        %v4466 = vpop.f32.mrf.mxu0
        %v4467 = vadd.f32 %v3741, %v4466
        %v4468 = vpop.f32.mrf.mxu0
        %v4469 = vadd.f32 %v3745, %v4468
        %4470 = vmatprep.mubr.bf16.mxu0 %v3591
        %4471 = vmatmul.mubr.bf16.gmra.mxu0 %v3590
        %v4472 = vpop.f32.mrf.mxu0
        %v4473 = vadd.f32 %v3741, %v4472
        %v4474 = vpop.f32.mrf.mxu0
        %v4475 = vadd.f32 %v3745, %v4474
        %v4476 = vpop.f32.mrf.mxu0
        %v4477 = vadd.f32 %v3741, %v4476
        %v4478 = vpop.f32.mrf.mxu0
        %v4479 = vadd.f32 %v3745, %v4478
        %4480 = vmatprep.mubr.bf16.mxu0 %v3595
        %4481 = vmatmul.mubr.bf16.gmra.mxu0 %v3594
        %v4482 = vpop.f32.mrf.mxu0
        %v4483 = vadd.f32 %v3741, %v4482
        %v4484 = vpop.f32.mrf.mxu0
        %v4485 = vadd.f32 %v3745, %v4484
        %v4486 = vpop.f32.mrf.mxu0
        %v4487 = vadd.f32 %v3741, %v4486
        %v4488 = vpop.f32.mrf.mxu0
        %v4489 = vadd.f32 %v3745, %v4488
        %4490 = vmatprep.mubr.bf16.mxu0 %v3599
        %4491 = vmatmul.mubr.bf16.gmra.mxu0 %v3598
        %v4492 = vpop.f32.mrf.mxu0
        %v4493 = vadd.f32 %v3741, %v4492
        %v4494 = vpop.f32.mrf.mxu0
        %v4495 = vadd.f32 %v3745, %v4494
        %v4496 = vpop.f32.mrf.mxu0
        %v4497 = vadd.f32 %v3741, %v4496
        %v4498 = vpop.f32.mrf.mxu0
        %v4499 = vadd.f32 %v3745, %v4498
        %4500 = vmatprep.mubr.bf16.mxu0 %v3603
        %4501 = vmatmul.mubr.bf16.gmra.mxu0 %v3602
        %v4502 = vpop.f32.mrf.mxu0
        %v4503 = vadd.f32 %v3741, %v4502
        %v4504 = vpop.f32.mrf.mxu0
        %v4505 = vadd.f32 %v3745, %v4504
        %v4506 = vpop.f32.mrf.mxu0
        %v4507 = vadd.f32 %v3741, %v4506
        %v4508 = vpop.f32.mrf.mxu0
        %v4509 = vadd.f32 %v3745, %v4508
        %4510 = vdwg.mxu0
        %4511 = vmatprep.subr.bf16.mxu0 %v4235
        %4512 = vmatpush1.bf16.msra.mxu0 %v4234
        %4513 = vmatprep.subr.bf16.mxu0 %v4231
        %4514 = vmatpush1.bf16.msra.mxu0 %v4230
        %4515 = vmatprep.subr.bf16.mxu0 %v4227
        %4516 = vmatpush1.bf16.msra.mxu0 %v4226
        %4517 = vmatprep.subr.bf16.mxu0 %v4223
        %4518 = vmatpush1.bf16.msra.mxu0 %v4222
        %4519 = vmatprep.subr.bf16.mxu0 %v4219
        %4520 = vmatpush1.bf16.msra.mxu0 %v4218
        %4521 = vmatprep.subr.bf16.mxu0 %v4215
        %4522 = vmatpush1.bf16.msra.mxu0 %v4214
        %4523 = vmatprep.subr.bf16.mxu0 %v4211
        %4524 = vmatpush1.bf16.msra.mxu0 %v4210
        %4525 = vmatprep.subr.bf16.mxu0 %v4207
        %4526 = vmatpush1.bf16.msra.mxu0 %v4206
        %4527 = vmatprep.subr.bf16.mxu0 %v4267
        %4528 = vmatpush2.bf16.msra.mxu0 %v4266
        %4529 = vmatprep.subr.bf16.mxu0 %v4263
        %4530 = vmatpush2.bf16.msra.mxu0 %v4262
        %4531 = vmatprep.subr.bf16.mxu0 %v4259
        %4532 = vmatpush2.bf16.msra.mxu0 %v4258
        %4533 = vmatprep.subr.bf16.mxu0 %v4255
        %4534 = vmatpush2.bf16.msra.mxu0 %v4254
        %4535 = vmatprep.subr.bf16.mxu0 %v4251
        %4536 = vmatpush2.bf16.msra.mxu0 %v4250
        %4537 = vmatprep.subr.bf16.mxu0 %v4247
        %4538 = vmatpush2.bf16.msra.mxu0 %v4246
        %4539 = vmatprep.subr.bf16.mxu0 %v4243
        %4540 = vmatpush2.bf16.msra.mxu0 %v4242
        %4541 = vmatprep.subr.bf16.mxu0 %v4239
        %4542 = vmatpush2.bf16.msra.mxu0 %v4238
        %4543 = vmatprep.mubr.bf16.mxu0 %v3577
        %4544 = vmatmul.mubr.bf16.gmra.mxu0 %v3576
        %v4545 = vpop.f32.mrf.mxu0
        %v4546 = vadd.f32 %v4433, %v4545
        %v4547 = vpop.f32.mrf.mxu0
        %v4548 = vadd.f32 %v4435, %v4547
        %v4549 = vpop.f32.mrf.mxu0
        %v4550 = vadd.f32 %v4437, %v4549
        %v4551 = vpop.f32.mrf.mxu0
        %v4552 = vadd.f32 %v4439, %v4551
        %4553 = vmatprep.mubr.bf16.mxu0 %v3581
        %4554 = vmatmul.mubr.bf16.gmra.mxu0 %v3580
        %v4555 = vpop.f32.mrf.mxu0
        %v4556 = vadd.f32 %v4443, %v4555
        %v4557 = vpop.f32.mrf.mxu0
        %v4558 = vadd.f32 %v4445, %v4557
        %v4559 = vpop.f32.mrf.mxu0
        %v4560 = vadd.f32 %v4447, %v4559
        %v4561 = vpop.f32.mrf.mxu0
        %v4562 = vadd.f32 %v4449, %v4561
        %4563 = vmatprep.mubr.bf16.mxu0 %v3585
        %4564 = vmatmul.mubr.bf16.gmra.mxu0 %v3584
        %v4565 = vpop.f32.mrf.mxu0
        %v4566 = vadd.f32 %v4453, %v4565
        %v4567 = vpop.f32.mrf.mxu0
        %v4568 = vadd.f32 %v4455, %v4567
        %v4569 = vpop.f32.mrf.mxu0
        %v4570 = vadd.f32 %v4457, %v4569
        %v4571 = vpop.f32.mrf.mxu0
        %v4572 = vadd.f32 %v4459, %v4571
        %4573 = vmatprep.mubr.bf16.mxu0 %v3589
        %4574 = vmatmul.mubr.bf16.gmra.mxu0 %v3588
        %v4575 = vpop.f32.mrf.mxu0
        %v4576 = vadd.f32 %v4463, %v4575
        %v4577 = vpop.f32.mrf.mxu0
        %v4578 = vadd.f32 %v4465, %v4577
        %v4579 = vpop.f32.mrf.mxu0
        %v4580 = vadd.f32 %v4467, %v4579
        %v4581 = vpop.f32.mrf.mxu0
        %v4582 = vadd.f32 %v4469, %v4581
        %4583 = vmatprep.mubr.bf16.mxu0 %v3593
        %4584 = vmatmul.mubr.bf16.gmra.mxu0 %v3592
        %v4585 = vpop.f32.mrf.mxu0
        %v4586 = vadd.f32 %v4473, %v4585
        %v4587 = vpop.f32.mrf.mxu0
        %v4588 = vadd.f32 %v4475, %v4587
        %v4589 = vpop.f32.mrf.mxu0
        %v4590 = vadd.f32 %v4477, %v4589
        %v4591 = vpop.f32.mrf.mxu0
        %v4592 = vadd.f32 %v4479, %v4591
        %4593 = vmatprep.mubr.bf16.mxu0 %v3597
        %4594 = vmatmul.mubr.bf16.gmra.mxu0 %v3596
        %v4595 = vpop.f32.mrf.mxu0
        %v4596 = vadd.f32 %v4483, %v4595
        %v4597 = vpop.f32.mrf.mxu0
        %v4598 = vadd.f32 %v4485, %v4597
        %v4599 = vpop.f32.mrf.mxu0
        %v4600 = vadd.f32 %v4487, %v4599
        %v4601 = vpop.f32.mrf.mxu0
        %v4602 = vadd.f32 %v4489, %v4601
        %4603 = vmatprep.mubr.bf16.mxu0 %v3601
        %4604 = vmatmul.mubr.bf16.gmra.mxu0 %v3600
        %v4605 = vpop.f32.mrf.mxu0
        %v4606 = vadd.f32 %v4493, %v4605
        %v4607 = vpop.f32.mrf.mxu0
        %v4608 = vadd.f32 %v4495, %v4607
        %v4609 = vpop.f32.mrf.mxu0
        %v4610 = vadd.f32 %v4497, %v4609
        %v4611 = vpop.f32.mrf.mxu0
        %v4612 = vadd.f32 %v4499, %v4611
        %4613 = vmatprep.mubr.bf16.mxu0 %v3605
        %4614 = vmatmul.mubr.bf16.gmra.mxu0 %v3604
        %v4615 = vpop.f32.mrf.mxu0
        %v4616 = vadd.f32 %v4503, %v4615
        %v4617 = vpop.f32.mrf.mxu0
        %v4618 = vadd.f32 %v4505, %v4617
        %v4619 = vpop.f32.mrf.mxu0
        %v4620 = vadd.f32 %v4507, %v4619
        %v4621 = vpop.f32.mrf.mxu0
        %v4622 = vadd.f32 %v4509, %v4621
        %4623 = vdwg.mxu0
        %4624 = vmatprep.subr.bf16.mxu0 %v4173
        %4625 = vmatpush1.bf16.msra.mxu0 %v4172
        %4626 = vmatprep.subr.bf16.mxu0 %v4169
        %4627 = vmatpush1.bf16.msra.mxu0 %v4168
        %4628 = vmatprep.subr.bf16.mxu0 %v4165
        %4629 = vmatpush1.bf16.msra.mxu0 %v4164
        %4630 = vmatprep.subr.bf16.mxu0 %v4161
        %4631 = vmatpush1.bf16.msra.mxu0 %v4160
        %4632 = vmatprep.subr.bf16.mxu0 %v4157
        %4633 = vmatpush1.bf16.msra.mxu0 %v4156
        %4634 = vmatprep.subr.bf16.mxu0 %v4153
        %4635 = vmatpush1.bf16.msra.mxu0 %v4152
        %4636 = vmatprep.subr.bf16.mxu0 %v4149
        %4637 = vmatpush1.bf16.msra.mxu0 %v4148
        %4638 = vmatprep.subr.bf16.mxu0 %v4145
        %4639 = vmatpush1.bf16.msra.mxu0 %v4144
        %4640 = vmatprep.subr.bf16.mxu0 %v4205
        %4641 = vmatpush2.bf16.msra.mxu0 %v4204
        %4642 = vmatprep.subr.bf16.mxu0 %v4201
        %4643 = vmatpush2.bf16.msra.mxu0 %v4200
        %4644 = vmatprep.subr.bf16.mxu0 %v4197
        %4645 = vmatpush2.bf16.msra.mxu0 %v4196
        %4646 = vmatprep.subr.bf16.mxu0 %v4193
        %4647 = vmatpush2.bf16.msra.mxu0 %v4192
        %4648 = vmatprep.subr.bf16.mxu0 %v4189
        %4649 = vmatpush2.bf16.msra.mxu0 %v4188
        %4650 = vmatprep.subr.bf16.mxu0 %v4185
        %4651 = vmatpush2.bf16.msra.mxu0 %v4184
        %4652 = vmatprep.subr.bf16.mxu0 %v4181
        %4653 = vmatpush2.bf16.msra.mxu0 %v4180
        %4654 = vmatprep.subr.bf16.mxu0 %v4177
        %4655 = vmatpush2.bf16.msra.mxu0 %v4176
        %4656 = vmatprep.mubr.bf16.mxu0 %v3575
        %4657 = vmatmul.mubr.bf16.gmra.mxu0 %v3574
        %v4658 = vpop.f32.mrf.mxu0
        %v4659 = vadd.f32 %v3749, %v4658
        %v4660 = vpop.f32.mrf.mxu0
        %v4661 = vadd.f32 %v3753, %v4660
        %v4662 = vpop.f32.mrf.mxu0
        %v4663 = vadd.f32 %v3749, %v4662
        %v4664 = vpop.f32.mrf.mxu0
        %v4665 = vadd.f32 %v3753, %v4664
        %4666 = vmatprep.mubr.bf16.mxu0 %v3579
        %4667 = vmatmul.mubr.bf16.gmra.mxu0 %v3578
        %v4668 = vpop.f32.mrf.mxu0
        %v4669 = vadd.f32 %v3749, %v4668
        %v4670 = vpop.f32.mrf.mxu0
        %v4671 = vadd.f32 %v3753, %v4670
        %v4672 = vpop.f32.mrf.mxu0
        %v4673 = vadd.f32 %v3749, %v4672
        %v4674 = vpop.f32.mrf.mxu0
        %v4675 = vadd.f32 %v3753, %v4674
        %4676 = vmatprep.mubr.bf16.mxu0 %v3583
        %4677 = vmatmul.mubr.bf16.gmra.mxu0 %v3582
        %v4678 = vpop.f32.mrf.mxu0
        %v4679 = vadd.f32 %v3749, %v4678
        %v4680 = vpop.f32.mrf.mxu0
        %v4681 = vadd.f32 %v3753, %v4680
        %v4682 = vpop.f32.mrf.mxu0
        %v4683 = vadd.f32 %v3749, %v4682
        %v4684 = vpop.f32.mrf.mxu0
        %v4685 = vadd.f32 %v3753, %v4684
        %4686 = vmatprep.mubr.bf16.mxu0 %v3587
        %4687 = vmatmul.mubr.bf16.gmra.mxu0 %v3586
        %v4688 = vpop.f32.mrf.mxu0
        %v4689 = vadd.f32 %v3749, %v4688
        %v4690 = vpop.f32.mrf.mxu0
        %v4691 = vadd.f32 %v3753, %v4690
        %v4692 = vpop.f32.mrf.mxu0
        %v4693 = vadd.f32 %v3749, %v4692
        %v4694 = vpop.f32.mrf.mxu0
        %v4695 = vadd.f32 %v3753, %v4694
        %4696 = vmatprep.mubr.bf16.mxu0 %v3591
        %4697 = vmatmul.mubr.bf16.gmra.mxu0 %v3590
        %v4698 = vpop.f32.mrf.mxu0
        %v4699 = vadd.f32 %v3749, %v4698
        %v4700 = vpop.f32.mrf.mxu0
        %v4701 = vadd.f32 %v3753, %v4700
        %v4702 = vpop.f32.mrf.mxu0
        %v4703 = vadd.f32 %v3749, %v4702
        %v4704 = vpop.f32.mrf.mxu0
        %v4705 = vadd.f32 %v3753, %v4704
        %4706 = vmatprep.mubr.bf16.mxu0 %v3595
        %4707 = vmatmul.mubr.bf16.gmra.mxu0 %v3594
        %v4708 = vpop.f32.mrf.mxu0
        %v4709 = vadd.f32 %v3749, %v4708
        %v4710 = vpop.f32.mrf.mxu0
        %v4711 = vadd.f32 %v3753, %v4710
        %v4712 = vpop.f32.mrf.mxu0
        %v4713 = vadd.f32 %v3749, %v4712
        %v4714 = vpop.f32.mrf.mxu0
        %v4715 = vadd.f32 %v3753, %v4714
        %4716 = vmatprep.mubr.bf16.mxu0 %v3599
        %4717 = vmatmul.mubr.bf16.gmra.mxu0 %v3598
        %v4718 = vpop.f32.mrf.mxu0
        %v4719 = vadd.f32 %v3749, %v4718
        %v4720 = vpop.f32.mrf.mxu0
        %v4721 = vadd.f32 %v3753, %v4720
        %v4722 = vpop.f32.mrf.mxu0
        %v4723 = vadd.f32 %v3749, %v4722
        %v4724 = vpop.f32.mrf.mxu0
        %v4725 = vadd.f32 %v3753, %v4724
        %4726 = vmatprep.mubr.bf16.mxu0 %v3603
        %4727 = vmatmul.mubr.bf16.gmra.mxu0 %v3602
        %v4728 = vpop.f32.mrf.mxu0
        %v4729 = vadd.f32 %v3749, %v4728
        %v4730 = vpop.f32.mrf.mxu0
        %v4731 = vadd.f32 %v3753, %v4730
        %v4732 = vpop.f32.mrf.mxu0
        %v4733 = vadd.f32 %v3749, %v4732
        %v4734 = vpop.f32.mrf.mxu0
        %v4735 = vadd.f32 %v3753, %v4734
        %4736 = vdwg.mxu0
        %4737 = vmatprep.subr.bf16.mxu0 %v4237
        %4738 = vmatpush1.bf16.msra.mxu0 %v4236
        %4739 = vmatprep.subr.bf16.mxu0 %v4233
        %4740 = vmatpush1.bf16.msra.mxu0 %v4232
        %4741 = vmatprep.subr.bf16.mxu0 %v4229
        %4742 = vmatpush1.bf16.msra.mxu0 %v4228
        %4743 = vmatprep.subr.bf16.mxu0 %v4225
        %4744 = vmatpush1.bf16.msra.mxu0 %v4224
        %4745 = vmatprep.subr.bf16.mxu0 %v4221
        %4746 = vmatpush1.bf16.msra.mxu0 %v4220
        %4747 = vmatprep.subr.bf16.mxu0 %v4217
        %4748 = vmatpush1.bf16.msra.mxu0 %v4216
        %4749 = vmatprep.subr.bf16.mxu0 %v4213
        %4750 = vmatpush1.bf16.msra.mxu0 %v4212
        %4751 = vmatprep.subr.bf16.mxu0 %v4209
        %4752 = vmatpush1.bf16.msra.mxu0 %v4208
        %4753 = vmatprep.subr.bf16.mxu0 %v4269
        %4754 = vmatpush2.bf16.msra.mxu0 %v4268
        %4755 = vmatprep.subr.bf16.mxu0 %v4265
        %4756 = vmatpush2.bf16.msra.mxu0 %v4264
        %4757 = vmatprep.subr.bf16.mxu0 %v4261
        %4758 = vmatpush2.bf16.msra.mxu0 %v4260
        %4759 = vmatprep.subr.bf16.mxu0 %v4257
        %4760 = vmatpush2.bf16.msra.mxu0 %v4256
        %4761 = vmatprep.subr.bf16.mxu0 %v4253
        %4762 = vmatpush2.bf16.msra.mxu0 %v4252
        %4763 = vmatprep.subr.bf16.mxu0 %v4249
        %4764 = vmatpush2.bf16.msra.mxu0 %v4248
        %4765 = vmatprep.subr.bf16.mxu0 %v4245
        %4766 = vmatpush2.bf16.msra.mxu0 %v4244
        %4767 = vmatprep.subr.bf16.mxu0 %v4241
        %4768 = vmatpush2.bf16.msra.mxu0 %v4240
        %4769 = vmatprep.mubr.bf16.mxu0 %v3577
        %4770 = vmatmul.mubr.bf16.gmra.mxu0 %v3576
        %v4771 = vpop.f32.mrf.mxu0
        %v4772 = vadd.f32 %v4659, %v4771
        %v4773 = vpop.f32.mrf.mxu0
        %v4774 = vadd.f32 %v4661, %v4773
        %v4775 = vpop.f32.mrf.mxu0
        %v4776 = vadd.f32 %v4663, %v4775
        %v4777 = vpop.f32.mrf.mxu0
        %v4778 = vadd.f32 %v4665, %v4777
        %4779 = vmatprep.mubr.bf16.mxu0 %v3581
        %4780 = vmatmul.mubr.bf16.gmra.mxu0 %v3580
        %v4781 = vpop.f32.mrf.mxu0
        %v4782 = vadd.f32 %v4669, %v4781
        %v4783 = vpop.f32.mrf.mxu0
        %v4784 = vadd.f32 %v4671, %v4783
        %v4785 = vpop.f32.mrf.mxu0
        %v4786 = vadd.f32 %v4673, %v4785
        %v4787 = vpop.f32.mrf.mxu0
        %v4788 = vadd.f32 %v4675, %v4787
        %4789 = vmatprep.mubr.bf16.mxu0 %v3585
        %4790 = vmatmul.mubr.bf16.gmra.mxu0 %v3584
        %v4791 = vpop.f32.mrf.mxu0
        %v4792 = vadd.f32 %v4679, %v4791
        %v4793 = vpop.f32.mrf.mxu0
        %v4794 = vadd.f32 %v4681, %v4793
        %v4795 = vpop.f32.mrf.mxu0
        %v4796 = vadd.f32 %v4683, %v4795
        %v4797 = vpop.f32.mrf.mxu0
        %v4798 = vadd.f32 %v4685, %v4797
        %4799 = vmatprep.mubr.bf16.mxu0 %v3589
        %4800 = vmatmul.mubr.bf16.gmra.mxu0 %v3588
        %v4801 = vpop.f32.mrf.mxu0
        %v4802 = vadd.f32 %v4689, %v4801
        %v4803 = vpop.f32.mrf.mxu0
        %v4804 = vadd.f32 %v4691, %v4803
        %v4805 = vpop.f32.mrf.mxu0
        %v4806 = vadd.f32 %v4693, %v4805
        %v4807 = vpop.f32.mrf.mxu0
        %v4808 = vadd.f32 %v4695, %v4807
        %4809 = vmatprep.mubr.bf16.mxu0 %v3593
        %4810 = vmatmul.mubr.bf16.gmra.mxu0 %v3592
        %v4811 = vpop.f32.mrf.mxu0
        %v4812 = vadd.f32 %v4699, %v4811
        %v4813 = vpop.f32.mrf.mxu0
        %v4814 = vadd.f32 %v4701, %v4813
        %v4815 = vpop.f32.mrf.mxu0
        %v4816 = vadd.f32 %v4703, %v4815
        %v4817 = vpop.f32.mrf.mxu0
        %v4818 = vadd.f32 %v4705, %v4817
        %4819 = vmatprep.mubr.bf16.mxu0 %v3597
        %4820 = vmatmul.mubr.bf16.gmra.mxu0 %v3596
        %v4821 = vpop.f32.mrf.mxu0
        %v4822 = vadd.f32 %v4709, %v4821
        %v4823 = vpop.f32.mrf.mxu0
        %v4824 = vadd.f32 %v4711, %v4823
        %v4825 = vpop.f32.mrf.mxu0
        %v4826 = vadd.f32 %v4713, %v4825
        %v4827 = vpop.f32.mrf.mxu0
        %v4828 = vadd.f32 %v4715, %v4827
        %4829 = vmatprep.mubr.bf16.mxu0 %v3601
        %4830 = vmatmul.mubr.bf16.gmra.mxu0 %v3600
        %v4831 = vpop.f32.mrf.mxu0
        %v4832 = vadd.f32 %v4719, %v4831
        %v4833 = vpop.f32.mrf.mxu0
        %v4834 = vadd.f32 %v4721, %v4833
        %v4835 = vpop.f32.mrf.mxu0
        %v4836 = vadd.f32 %v4723, %v4835
        %v4837 = vpop.f32.mrf.mxu0
        %v4838 = vadd.f32 %v4725, %v4837
        %4839 = vmatprep.mubr.bf16.mxu0 %v3605
        %4840 = vmatmul.mubr.bf16.gmra.mxu0 %v3604
        %v4841 = vpop.f32.mrf.mxu0
        %v4842 = vadd.f32 %v4729, %v4841
        %v4843 = vpop.f32.mrf.mxu0
        %v4844 = vadd.f32 %v4731, %v4843
        %v4845 = vpop.f32.mrf.mxu0
        %v4846 = vadd.f32 %v4733, %v4845
        %v4847 = vpop.f32.mrf.mxu0
        %v4848 = vadd.f32 %v4735, %v4847
        %4849 = vdwg.mxu0
        %v4850 = vmax.f32 %v4546, 0.0
        %v4851 = vmax.f32 %v4548, 0.0
        %v4852 = vmax.f32 %v4772, 0.0
        %v4853 = vmax.f32 %v4774, 0.0
        %v4854 = vmax.f32 %v4550, 0.0
        %v4855 = vmax.f32 %v4552, 0.0
        %v4856 = vmax.f32 %v4776, 0.0
        %v4857 = vmax.f32 %v4778, 0.0
        %v4858 = vmax.f32 %v4556, 0.0
        %v4859 = vmax.f32 %v4558, 0.0
        %v4860 = vmax.f32 %v4782, 0.0
        %v4861 = vmax.f32 %v4784, 0.0
        %v4862 = vmax.f32 %v4560, 0.0
        %v4863 = vmax.f32 %v4562, 0.0
        %v4864 = vmax.f32 %v4786, 0.0
        %v4865 = vmax.f32 %v4788, 0.0
        %v4866 = vmax.f32 %v4566, 0.0
        %v4867 = vmax.f32 %v4568, 0.0
        %v4868 = vmax.f32 %v4792, 0.0
        %v4869 = vmax.f32 %v4794, 0.0
        %v4870 = vmax.f32 %v4570, 0.0
        %v4871 = vmax.f32 %v4572, 0.0
        %v4872 = vmax.f32 %v4796, 0.0
        %v4873 = vmax.f32 %v4798, 0.0
        %v4874 = vmax.f32 %v4576, 0.0
        %v4875 = vmax.f32 %v4578, 0.0
        %v4876 = vmax.f32 %v4802, 0.0
        %v4877 = vmax.f32 %v4804, 0.0
        %v4878 = vmax.f32 %v4580, 0.0
        %v4879 = vmax.f32 %v4582, 0.0
        %v4880 = vmax.f32 %v4806, 0.0
        %v4881 = vmax.f32 %v4808, 0.0
        %v4882 = vmax.f32 %v4586, 0.0
        %v4883 = vmax.f32 %v4588, 0.0
        %v4884 = vmax.f32 %v4812, 0.0
        %v4885 = vmax.f32 %v4814, 0.0
        %v4886 = vmax.f32 %v4590, 0.0
        %v4887 = vmax.f32 %v4592, 0.0
        %v4888 = vmax.f32 %v4816, 0.0
        %v4889 = vmax.f32 %v4818, 0.0
        %v4890 = vmax.f32 %v4596, 0.0
        %v4891 = vmax.f32 %v4598, 0.0
        %v4892 = vmax.f32 %v4822, 0.0
        %v4893 = vmax.f32 %v4824, 0.0
        %v4894 = vmax.f32 %v4600, 0.0
        %v4895 = vmax.f32 %v4602, 0.0
        %v4896 = vmax.f32 %v4826, 0.0
        %v4897 = vmax.f32 %v4828, 0.0
        %v4898 = vmax.f32 %v4606, 0.0
        %v4899 = vmax.f32 %v4608, 0.0
        %v4900 = vmax.f32 %v4832, 0.0
        %v4901 = vmax.f32 %v4834, 0.0
        %v4902 = vmax.f32 %v4610, 0.0
        %v4903 = vmax.f32 %v4612, 0.0
        %v4904 = vmax.f32 %v4836, 0.0
        %v4905 = vmax.f32 %v4838, 0.0
        %v4906 = vmax.f32 %v4616, 0.0
        %v4907 = vmax.f32 %v4618, 0.0
        %v4908 = vmax.f32 %v4842, 0.0
        %v4909 = vmax.f32 %v4844, 0.0
        %v4910 = vmax.f32 %v4620, 0.0
        %v4911 = vmax.f32 %v4622, 0.0
        %v4912 = vmax.f32 %v4846, 0.0
        %v4913 = vmax.f32 %v4848, 0.0
        %v4914 = vpack.c.bf16 %v4854, %v4850
        %v4915 = vpack.c.bf16 %v4855, %v4851
        %v4916 = vpack.c.bf16 %v4856, %v4852
        %v4917 = vpack.c.bf16 %v4857, %v4853
        %v4918 = vpack.c.bf16 %v4862, %v4858
        %v4919 = vpack.c.bf16 %v4863, %v4859
        %v4920 = vpack.c.bf16 %v4864, %v4860
        %v4921 = vpack.c.bf16 %v4865, %v4861
        %v4922 = vpack.c.bf16 %v4870, %v4866
        %v4923 = vpack.c.bf16 %v4871, %v4867
        %v4924 = vpack.c.bf16 %v4872, %v4868
        %v4925 = vpack.c.bf16 %v4873, %v4869
        %v4926 = vpack.c.bf16 %v4878, %v4874
        %v4927 = vpack.c.bf16 %v4879, %v4875
        %v4928 = vpack.c.bf16 %v4880, %v4876
        %v4929 = vpack.c.bf16 %v4881, %v4877
        %v4930 = vpack.c.bf16 %v4886, %v4882
        %v4931 = vpack.c.bf16 %v4887, %v4883
        %v4932 = vpack.c.bf16 %v4888, %v4884
        %v4933 = vpack.c.bf16 %v4889, %v4885
        %v4934 = vpack.c.bf16 %v4894, %v4890
        %v4935 = vpack.c.bf16 %v4895, %v4891
        %v4936 = vpack.c.bf16 %v4896, %v4892
        %v4937 = vpack.c.bf16 %v4897, %v4893
        %v4938 = vpack.c.bf16 %v4902, %v4898
        %v4939 = vpack.c.bf16 %v4903, %v4899
        %v4940 = vpack.c.bf16 %v4904, %v4900
        %v4941 = vpack.c.bf16 %v4905, %v4901
        %v4942 = vpack.c.bf16 %v4910, %v4906
        %v4943 = vpack.c.bf16 %v4911, %v4907
        %v4944 = vpack.c.bf16 %v4912, %v4908
        %v4945 = vpack.c.bf16 %v4913, %v4909
        %v4946 = vld [vmem:[#allocation6] sm:$0xf]
        %v4947 = vld [vmem:[#allocation6 + $0x4] sm:$0xf]
        %v4948 = vld [vmem:[#allocation6 + $0x8] sm:$0xf]
        %v4949 = vld [vmem:[#allocation6 + $0xc] sm:$0xf]
        %v4950 = vld [vmem:[#allocation6 + $0x10] sm:$0xf]
        %v4951 = vld [vmem:[#allocation6 + $0x14] sm:$0xf]
        %v4952 = vld [vmem:[#allocation6 + $0x18] sm:$0xf]
        %v4953 = vld [vmem:[#allocation6 + $0x1c] sm:$0xf]
        %v4954 = vld [vmem:[#allocation6 + $0x20] sm:$0xf]
        %v4955 = vld [vmem:[#allocation6 + $0x24] sm:$0xf]
        %v4956 = vld [vmem:[#allocation6 + $0x28] sm:$0xf]
        %v4957 = vld [vmem:[#allocation6 + $0x2c] sm:$0xf]
        %v4958 = vld [vmem:[#allocation6 + $0x30] sm:$0xf]
        %v4959 = vld [vmem:[#allocation6 + $0x34] sm:$0xf]
        %v4960 = vld [vmem:[#allocation6 + $0x38] sm:$0xf]
        %v4961 = vld [vmem:[#allocation6 + $0x3c] sm:$0xf]
        %v4962 = vld [vmem:[#allocation6 + $0x40] sm:$0xf]
        %v4963 = vld [vmem:[#allocation6 + $0x44] sm:$0xf]
        %v4964 = vld [vmem:[#allocation6 + $0x48] sm:$0xf]
        %v4965 = vld [vmem:[#allocation6 + $0x4c] sm:$0xf]
        %v4966 = vld [vmem:[#allocation6 + $0x50] sm:$0xf]
        %v4967 = vld [vmem:[#allocation6 + $0x54] sm:$0xf]
        %v4968 = vld [vmem:[#allocation6 + $0x58] sm:$0xf]
        %v4969 = vld [vmem:[#allocation6 + $0x5c] sm:$0xf]
        %v4970 = vld [vmem:[#allocation6 + $0x60] sm:$0xf]
        %v4971 = vld [vmem:[#allocation6 + $0x64] sm:$0xf]
        %v4972 = vld [vmem:[#allocation6 + $0x68] sm:$0xf]
        %v4973 = vld [vmem:[#allocation6 + $0x6c] sm:$0xf]
        %v4974 = vld [vmem:[#allocation6 + $0x70] sm:$0xf]
        %v4975 = vld [vmem:[#allocation6 + $0x74] sm:$0xf]
        %v4976 = vld [vmem:[#allocation6 + $0x78] sm:$0xf]
        %v4977 = vld [vmem:[#allocation6 + $0x7c] sm:$0xf]
        %v4978 = vld [vmem:[#allocation6 + $0x80] sm:$0xf]
        %v4979 = vld [vmem:[#allocation6 + $0x84] sm:$0xf]
        %v4980 = vld [vmem:[#allocation6 + $0x88] sm:$0xf]
        %v4981 = vld [vmem:[#allocation6 + $0x8c] sm:$0xf]
        %v4982 = vld [vmem:[#allocation6 + $0x90] sm:$0xf]
        %v4983 = vld [vmem:[#allocation6 + $0x94] sm:$0xf]
        %v4984 = vld [vmem:[#allocation6 + $0x98] sm:$0xf]
        %v4985 = vld [vmem:[#allocation6 + $0x9c] sm:$0xf]
        %v4986 = vld [vmem:[#allocation6 + $0xa0] sm:$0xf]
        %v4987 = vld [vmem:[#allocation6 + $0xa4] sm:$0xf]
        %v4988 = vld [vmem:[#allocation6 + $0xa8] sm:$0xf]
        %v4989 = vld [vmem:[#allocation6 + $0xac] sm:$0xf]
        %v4990 = vld [vmem:[#allocation6 + $0xb0] sm:$0xf]
        %v4991 = vld [vmem:[#allocation6 + $0xb4] sm:$0xf]
        %v4992 = vld [vmem:[#allocation6 + $0xb8] sm:$0xf]
        %v4993 = vld [vmem:[#allocation6 + $0xbc] sm:$0xf]
        %v4994 = vld [vmem:[#allocation6 + $0xc0] sm:$0xf]
        %v4995 = vld [vmem:[#allocation6 + $0xc4] sm:$0xf]
        %v4996 = vld [vmem:[#allocation6 + $0xc8] sm:$0xf]
        %v4997 = vld [vmem:[#allocation6 + $0xcc] sm:$0xf]
        %v4998 = vld [vmem:[#allocation6 + $0xd0] sm:$0xf]
        %v4999 = vld [vmem:[#allocation6 + $0xd4] sm:$0xf]
        %v5000 = vld [vmem:[#allocation6 + $0xd8] sm:$0xf]
        %v5001 = vld [vmem:[#allocation6 + $0xdc] sm:$0xf]
        %v5002 = vld [vmem:[#allocation6 + $0xe0] sm:$0xf]
        %v5003 = vld [vmem:[#allocation6 + $0xe4] sm:$0xf]
        %v5004 = vld [vmem:[#allocation6 + $0xe8] sm:$0xf]
        %v5005 = vld [vmem:[#allocation6 + $0xec] sm:$0xf]
        %v5006 = vld [vmem:[#allocation6 + $0xf0] sm:$0xf]
        %v5007 = vld [vmem:[#allocation6 + $0xf4] sm:$0xf]
        %v5008 = vld [vmem:[#allocation6 + $0xf8] sm:$0xf]
        %v5009 = vld [vmem:[#allocation6 + $0xfc] sm:$0xf]
        %v5010 = vld [vmem:[#allocation9] sm:$0x1]
        %v5012 = vlaneseq
        %v5013 = vshrl.u32 %v5012, 7
        %v5014 = vsub.s32 0, %v5013
        %v5015 = vrot.slane %v5010, %v5014
        %v5081 = vunpack.c.l.b16 %v4946
        %v5082 = vunpack.c.l.b16 %v4947
        %v5083 = vunpack.c.l.b16 %v4948
        %v5084 = vunpack.c.l.b16 %v4949
        %v5085 = vunpack.c.l.b16 %v4950
        %v5086 = vunpack.c.l.b16 %v4951
        %v5087 = vunpack.c.l.b16 %v4952
        %v5088 = vunpack.c.l.b16 %v4953
        %v5089 = vunpack.c.l.b16 %v4954
        %v5090 = vunpack.c.l.b16 %v4955
        %v5091 = vunpack.c.l.b16 %v4956
        %v5092 = vunpack.c.l.b16 %v4957
        %v5093 = vunpack.c.l.b16 %v4958
        %v5094 = vunpack.c.l.b16 %v4959
        %v5095 = vunpack.c.l.b16 %v4960
        %v5096 = vunpack.c.l.b16 %v4961
        %v5097 = vunpack.c.l.b16 %v4962
        %v5098 = vunpack.c.l.b16 %v4963
        %v5099 = vunpack.c.l.b16 %v4964
        %v5100 = vunpack.c.l.b16 %v4965
        %v5101 = vunpack.c.l.b16 %v4966
        %v5102 = vunpack.c.l.b16 %v4967
        %v5103 = vunpack.c.l.b16 %v4968
        %v5104 = vunpack.c.l.b16 %v4969
        %v5105 = vunpack.c.l.b16 %v4970
        %v5106 = vunpack.c.l.b16 %v4971
        %v5107 = vunpack.c.l.b16 %v4972
        %v5108 = vunpack.c.l.b16 %v4973
        %v5109 = vunpack.c.l.b16 %v4974
        %v5110 = vunpack.c.l.b16 %v4975
        %v5111 = vunpack.c.l.b16 %v4976
        %v5112 = vunpack.c.l.b16 %v4977
        %v5113 = vunpack.c.l.b16 %v4978
        %v5114 = vunpack.c.l.b16 %v4979
        %v5115 = vunpack.c.l.b16 %v4980
        %v5116 = vunpack.c.l.b16 %v4981
        %v5117 = vunpack.c.l.b16 %v4982
        %v5118 = vunpack.c.l.b16 %v4983
        %v5119 = vunpack.c.l.b16 %v4984
        %v5120 = vunpack.c.l.b16 %v4985
        %v5121 = vunpack.c.l.b16 %v4986
        %v5122 = vunpack.c.l.b16 %v4987
        %v5123 = vunpack.c.l.b16 %v4988
        %v5124 = vunpack.c.l.b16 %v4989
        %v5125 = vunpack.c.l.b16 %v4990
        %v5126 = vunpack.c.l.b16 %v4991
        %v5127 = vunpack.c.l.b16 %v4992
        %v5128 = vunpack.c.l.b16 %v4993
        %v5129 = vunpack.c.l.b16 %v4994
        %v5130 = vunpack.c.l.b16 %v4995
        %v5131 = vunpack.c.l.b16 %v4996
        %v5132 = vunpack.c.l.b16 %v4997
        %v5133 = vunpack.c.l.b16 %v4998
        %v5134 = vunpack.c.l.b16 %v4999
        %v5135 = vunpack.c.l.b16 %v5000
        %v5136 = vunpack.c.l.b16 %v5001
        %v5137 = vunpack.c.l.b16 %v5002
        %v5138 = vunpack.c.l.b16 %v5003
        %v5139 = vunpack.c.l.b16 %v5004
        %v5140 = vunpack.c.l.b16 %v5005
        %v5141 = vunpack.c.l.b16 %v5006
        %v5142 = vunpack.c.l.b16 %v5007
        %v5143 = vunpack.c.l.b16 %v5008
        %v5144 = vunpack.c.l.b16 %v5009
        %v5145 = vpack.c.b16 %v5082, %v5081
        %v5146 = vpack.c.b16 %v5084, %v5083
        %v5147 = vpack.c.b16 %v5086, %v5085
        %v5148 = vpack.c.b16 %v5088, %v5087
        %v5149 = vpack.c.b16 %v5090, %v5089
        %v5150 = vpack.c.b16 %v5092, %v5091
        %v5151 = vpack.c.b16 %v5094, %v5093
        %v5152 = vpack.c.b16 %v5096, %v5095
        %v5153 = vpack.c.b16 %v5098, %v5097
        %v5154 = vpack.c.b16 %v5100, %v5099
        %v5155 = vpack.c.b16 %v5102, %v5101
        %v5156 = vpack.c.b16 %v5104, %v5103
        %v5157 = vpack.c.b16 %v5106, %v5105
        %v5158 = vpack.c.b16 %v5108, %v5107
        %v5159 = vpack.c.b16 %v5110, %v5109
        %v5160 = vpack.c.b16 %v5112, %v5111
        %v5161 = vpack.c.b16 %v5114, %v5113
        %v5162 = vpack.c.b16 %v5116, %v5115
        %v5163 = vpack.c.b16 %v5118, %v5117
        %v5164 = vpack.c.b16 %v5120, %v5119
        %v5165 = vpack.c.b16 %v5122, %v5121
        %v5166 = vpack.c.b16 %v5124, %v5123
        %v5167 = vpack.c.b16 %v5126, %v5125
        %v5168 = vpack.c.b16 %v5128, %v5127
        %v5169 = vpack.c.b16 %v5130, %v5129
        %v5170 = vpack.c.b16 %v5132, %v5131
        %v5171 = vpack.c.b16 %v5134, %v5133
        %v5172 = vpack.c.b16 %v5136, %v5135
        %v5173 = vpack.c.b16 %v5138, %v5137
        %v5174 = vpack.c.b16 %v5140, %v5139
        %v5175 = vpack.c.b16 %v5142, %v5141
        %v5176 = vpack.c.b16 %v5144, %v5143
        %5209 = vmatprep.subr.bf16.mxu0 0
        %5210 = vmatpush1.bf16.msra.mxu0 %v5152
        %5211 = vmatprep.subr.bf16.mxu0 0
        %5212 = vmatpush1.bf16.msra.mxu0 %v5151
        %5213 = vmatprep.subr.bf16.mxu0 0
        %5214 = vmatpush1.bf16.msra.mxu0 %v5150
        %5215 = vmatprep.subr.bf16.mxu0 0
        %5216 = vmatpush1.bf16.msra.mxu0 %v5149
        %5217 = vmatprep.subr.bf16.mxu0 0
        %5218 = vmatpush1.bf16.msra.mxu0 %v5148
        %5219 = vmatprep.subr.bf16.mxu0 0
        %5220 = vmatpush1.bf16.msra.mxu0 %v5147
        %5221 = vmatprep.subr.bf16.mxu0 0
        %5222 = vmatpush1.bf16.msra.mxu0 %v5146
        %5223 = vmatprep.subr.bf16.mxu0 0
        %5224 = vmatpush1.bf16.msra.mxu0 %v5145
        %5225 = vmatprep.subr.bf16.mxu0 0
        %5226 = vmatpush2.bf16.msra.mxu0 %v5160
        %5227 = vmatprep.subr.bf16.mxu0 0
        %5228 = vmatpush2.bf16.msra.mxu0 %v5159
        %5229 = vmatprep.subr.bf16.mxu0 0
        %5230 = vmatpush2.bf16.msra.mxu0 %v5158
        %5231 = vmatprep.subr.bf16.mxu0 0
        %5232 = vmatpush2.bf16.msra.mxu0 %v5157
        %5233 = vmatprep.subr.bf16.mxu0 0
        %5234 = vmatpush2.bf16.msra.mxu0 %v5156
        %5235 = vmatprep.subr.bf16.mxu0 0
        %5236 = vmatpush2.bf16.msra.mxu0 %v5155
        %5237 = vmatprep.subr.bf16.mxu0 0
        %5238 = vmatpush2.bf16.msra.mxu0 %v5154
        %5239 = vmatprep.subr.bf16.mxu0 0
        %5240 = vmatpush2.bf16.msra.mxu0 %v5153
        %5241 = vmatprep.mubr.bf16.mxu0 %v4915
        %5242 = vmatmul.mubr.bf16.gmra.mxu0 %v4914
        %v5243 = vpop.f32.mrf.mxu0
        %v5244 = vadd.f32 %v5015, %v5243
        %v5245 = vpop.f32.mrf.mxu0
        %v5246 = vpop.f32.mrf.mxu0
        %v5247 = vadd.f32 %v5015, %v5246
        %v5248 = vpop.f32.mrf.mxu0
        %5249 = vmatprep.mubr.bf16.mxu0 %v4919
        %5250 = vmatmul.mubr.bf16.gmra.mxu0 %v4918
        %v5251 = vpop.f32.mrf.mxu0
        %v5252 = vadd.f32 %v5015, %v5251
        %v5253 = vpop.f32.mrf.mxu0
        %v5254 = vpop.f32.mrf.mxu0
        %v5255 = vadd.f32 %v5015, %v5254
        %v5256 = vpop.f32.mrf.mxu0
        %5257 = vmatprep.mubr.bf16.mxu0 %v4923
        %5258 = vmatmul.mubr.bf16.gmra.mxu0 %v4922
        %v5259 = vpop.f32.mrf.mxu0
        %v5260 = vadd.f32 %v5015, %v5259
        %v5261 = vpop.f32.mrf.mxu0
        %v5262 = vpop.f32.mrf.mxu0
        %v5263 = vadd.f32 %v5015, %v5262
        %v5264 = vpop.f32.mrf.mxu0
        %5265 = vmatprep.mubr.bf16.mxu0 %v4927
        %5266 = vmatmul.mubr.bf16.gmra.mxu0 %v4926
        %v5267 = vpop.f32.mrf.mxu0
        %v5268 = vadd.f32 %v5015, %v5267
        %v5269 = vpop.f32.mrf.mxu0
        %v5270 = vpop.f32.mrf.mxu0
        %v5271 = vadd.f32 %v5015, %v5270
        %v5272 = vpop.f32.mrf.mxu0
        %5273 = vmatprep.mubr.bf16.mxu0 %v4931
        %5274 = vmatmul.mubr.bf16.gmra.mxu0 %v4930
        %v5275 = vpop.f32.mrf.mxu0
        %v5276 = vadd.f32 %v5015, %v5275
        %v5277 = vpop.f32.mrf.mxu0
        %v5278 = vpop.f32.mrf.mxu0
        %v5279 = vadd.f32 %v5015, %v5278
        %v5280 = vpop.f32.mrf.mxu0
        %5281 = vmatprep.mubr.bf16.mxu0 %v4935
        %5282 = vmatmul.mubr.bf16.gmra.mxu0 %v4934
        %v5283 = vpop.f32.mrf.mxu0
        %v5284 = vadd.f32 %v5015, %v5283
        %v5285 = vpop.f32.mrf.mxu0
        %v5286 = vpop.f32.mrf.mxu0
        %v5287 = vadd.f32 %v5015, %v5286
        %v5288 = vpop.f32.mrf.mxu0
        %5289 = vmatprep.mubr.bf16.mxu0 %v4939
        %5290 = vmatmul.mubr.bf16.gmra.mxu0 %v4938
        %v5291 = vpop.f32.mrf.mxu0
        %v5292 = vadd.f32 %v5015, %v5291
        %v5293 = vpop.f32.mrf.mxu0
        %v5294 = vpop.f32.mrf.mxu0
        %v5295 = vadd.f32 %v5015, %v5294
        %v5296 = vpop.f32.mrf.mxu0
        %5297 = vmatprep.mubr.bf16.mxu0 %v4943
        %5298 = vmatmul.mubr.bf16.gmra.mxu0 %v4942
        %v5299 = vpop.f32.mrf.mxu0
        %v5300 = vadd.f32 %v5015, %v5299
        %v5301 = vpop.f32.mrf.mxu0
        %v5302 = vpop.f32.mrf.mxu0
        %v5303 = vadd.f32 %v5015, %v5302
        %v5304 = vpop.f32.mrf.mxu0
        %5305 = vdwg.mxu0
        %5306 = vmatprep.subr.bf16.mxu0 0
        %5307 = vmatpush1.bf16.msra.mxu0 %v5168
        %5308 = vmatprep.subr.bf16.mxu0 0
        %5309 = vmatpush1.bf16.msra.mxu0 %v5167
        %5310 = vmatprep.subr.bf16.mxu0 0
        %5311 = vmatpush1.bf16.msra.mxu0 %v5166
        %5312 = vmatprep.subr.bf16.mxu0 0
        %5313 = vmatpush1.bf16.msra.mxu0 %v5165
        %5314 = vmatprep.subr.bf16.mxu0 0
        %5315 = vmatpush1.bf16.msra.mxu0 %v5164
        %5316 = vmatprep.subr.bf16.mxu0 0
        %5317 = vmatpush1.bf16.msra.mxu0 %v5163
        %5318 = vmatprep.subr.bf16.mxu0 0
        %5319 = vmatpush1.bf16.msra.mxu0 %v5162
        %5320 = vmatprep.subr.bf16.mxu0 0
        %5321 = vmatpush1.bf16.msra.mxu0 %v5161
        %5322 = vmatprep.subr.bf16.mxu0 0
        %5323 = vmatpush2.bf16.msra.mxu0 %v5176
        %5324 = vmatprep.subr.bf16.mxu0 0
        %5325 = vmatpush2.bf16.msra.mxu0 %v5175
        %5326 = vmatprep.subr.bf16.mxu0 0
        %5327 = vmatpush2.bf16.msra.mxu0 %v5174
        %5328 = vmatprep.subr.bf16.mxu0 0
        %5329 = vmatpush2.bf16.msra.mxu0 %v5173
        %5330 = vmatprep.subr.bf16.mxu0 0
        %5331 = vmatpush2.bf16.msra.mxu0 %v5172
        %5332 = vmatprep.subr.bf16.mxu0 0
        %5333 = vmatpush2.bf16.msra.mxu0 %v5171
        %5334 = vmatprep.subr.bf16.mxu0 0
        %5335 = vmatpush2.bf16.msra.mxu0 %v5170
        %5336 = vmatprep.subr.bf16.mxu0 0
        %5337 = vmatpush2.bf16.msra.mxu0 %v5169
        %5338 = vmatprep.mubr.bf16.mxu0 %v4917
        %5339 = vmatmul.mubr.bf16.gmra.mxu0 %v4916
        %v5340 = vpop.f32.mrf.mxu0
        %v5341 = vadd.f32 %v5244, %v5340
        %v5342 = vpop.f32.mrf.mxu0
        %v5343 = vpop.f32.mrf.mxu0
        %v5344 = vadd.f32 %v5247, %v5343
        %v5345 = vpop.f32.mrf.mxu0
        %5346 = vmatprep.mubr.bf16.mxu0 %v4921
        %5347 = vmatmul.mubr.bf16.gmra.mxu0 %v4920
        %v5348 = vpop.f32.mrf.mxu0
        %v5349 = vadd.f32 %v5252, %v5348
        %v5350 = vpop.f32.mrf.mxu0
        %v5351 = vpop.f32.mrf.mxu0
        %v5352 = vadd.f32 %v5255, %v5351
        %v5353 = vpop.f32.mrf.mxu0
        %5354 = vmatprep.mubr.bf16.mxu0 %v4925
        %5355 = vmatmul.mubr.bf16.gmra.mxu0 %v4924
        %v5356 = vpop.f32.mrf.mxu0
        %v5357 = vadd.f32 %v5260, %v5356
        %v5358 = vpop.f32.mrf.mxu0
        %v5359 = vpop.f32.mrf.mxu0
        %v5360 = vadd.f32 %v5263, %v5359
        %v5361 = vpop.f32.mrf.mxu0
        %5362 = vmatprep.mubr.bf16.mxu0 %v4929
        %5363 = vmatmul.mubr.bf16.gmra.mxu0 %v4928
        %v5364 = vpop.f32.mrf.mxu0
        %v5365 = vadd.f32 %v5268, %v5364
        %v5366 = vpop.f32.mrf.mxu0
        %v5367 = vpop.f32.mrf.mxu0
        %v5368 = vadd.f32 %v5271, %v5367
        %v5369 = vpop.f32.mrf.mxu0
        %5370 = vmatprep.mubr.bf16.mxu0 %v4933
        %5371 = vmatmul.mubr.bf16.gmra.mxu0 %v4932
        %v5372 = vpop.f32.mrf.mxu0
        %v5373 = vadd.f32 %v5276, %v5372
        %v5374 = vpop.f32.mrf.mxu0
        %v5375 = vpop.f32.mrf.mxu0
        %v5376 = vadd.f32 %v5279, %v5375
        %v5377 = vpop.f32.mrf.mxu0
        %5378 = vmatprep.mubr.bf16.mxu0 %v4937
        %5379 = vmatmul.mubr.bf16.gmra.mxu0 %v4936
        %v5380 = vpop.f32.mrf.mxu0
        %v5381 = vadd.f32 %v5284, %v5380
        %v5382 = vpop.f32.mrf.mxu0
        %v5383 = vpop.f32.mrf.mxu0
        %v5384 = vadd.f32 %v5287, %v5383
        %v5385 = vpop.f32.mrf.mxu0
        %5386 = vmatprep.mubr.bf16.mxu0 %v4941
        %5387 = vmatmul.mubr.bf16.gmra.mxu0 %v4940
        %v5388 = vpop.f32.mrf.mxu0
        %v5389 = vadd.f32 %v5292, %v5388
        %v5390 = vpop.f32.mrf.mxu0
        %v5391 = vpop.f32.mrf.mxu0
        %v5392 = vadd.f32 %v5295, %v5391
        %v5393 = vpop.f32.mrf.mxu0
        %5394 = vmatprep.mubr.bf16.mxu0 %v4945
        %5395 = vmatmul.mubr.bf16.gmra.mxu0 %v4944
        %v5396 = vpop.f32.mrf.mxu0
        %v5397 = vadd.f32 %v5300, %v5396
        %v5398 = vpop.f32.mrf.mxu0
        %v5399 = vpop.f32.mrf.mxu0
        %v5400 = vadd.f32 %v5303, %v5399
        %v5401 = vpop.f32.mrf.mxu0
        %5402 = vdwg.mxu0
        %5403 = vst [vmem:[%s324] sm:$0xff] %v5341
        %5404 = vst [vmem:[%s324 + $0x8] sm:$0xff] %v5344
        %5405 = vst [vmem:[%s324 + $0x10] sm:$0xff] %v5349
        %5406 = vst [vmem:[%s324 + $0x18] sm:$0xff] %v5352
        %5407 = vst [vmem:[%s324 + $0x20] sm:$0xff] %v5357
        %5408 = vst [vmem:[%s324 + $0x28] sm:$0xff] %v5360
        %5409 = vst [vmem:[%s324 + $0x30] sm:$0xff] %v5365
        %5410 = vst [vmem:[%s324 + $0x38] sm:$0xff] %v5368
        %5411 = vst [vmem:[%s324 + $0x40] sm:$0xff] %v5373
        %5412 = vst [vmem:[%s324 + $0x48] sm:$0xff] %v5376
        %5413 = vst [vmem:[%s324 + $0x50] sm:$0xff] %v5381
        %5414 = vst [vmem:[%s324 + $0x58] sm:$0xff] %v5384
        %5415 = vst [vmem:[%s324 + $0x60] sm:$0xff] %v5389
        %5416 = vst [vmem:[%s324 + $0x68] sm:$0xff] %v5392
        %5417 = vst [vmem:[%s324 + $0x70] sm:$0xff] %v5397
        %5418 = vst [vmem:[%s324 + $0x78] sm:$0xff] %v5400
        %s5419 = smul.u32 16, %s20
        %p5420 = scmp.lt.s32.totalorder %s5419, 31
        %s5421 = scalar_select %p5420, %s5419, 31
        %s5422 = smul.addr %s5421, 8
        %s5423 = scalar_lea.vmem %s6, %s5422
        // Predicated region
        $region65: #{ff_network_forward.1} parent=43 // pred_check
          %p5424 = pneg %p169
        $region66: #{ff_network_forward.1} parent=43 // pred_check_branch
          %5426 = sbr.rel (%p5424) target = $region68
        $region67: #{ff_network_forward.1} parent=43 // pred_region
          %s5427 = smul.u32 16, %s20
        $region68: #{ff_network_forward.1} parent=43 // pred_fallthru
          _
      $region44: #{ff_network_forward.1} parent=5 // pred_fallthru
        _
      %p5428 = scmp.le.s32.totalorder 2, %s15
      // Predicated region
      $region69: #{ff_network_forward.1} parent=5 // pred_check
        %p5429 = pneg %p5428
      $region70: #{ff_network_forward.1} parent=5 // pred_check_branch
        %5431 = sbr.rel (%p5429) target = $region72
      $region71: #{ff_network_forward.1} parent=5 // pred_region
        %s5432 = ssub.s32 %s15, 2
        // Predicated region
        $region73: #{ff_network_forward.1} parent=71 // pred_check
          %p5433 = pneg %p175
        $region74: #{ff_network_forward.1} parent=71 // pred_check_branch
          %5435 = sbr.rel (%p5433) target = $region76
        $region75: #{ff_network_forward.1} parent=71 // pred_region
          %s5436 = smul.u32 16, %s21
          %p5437 = scmp.lt.s32.totalorder %s5436, 31
          %s5438 = scalar_select %p5437, %s5436, 31
          %s5439 = smul.addr %s5438, 8
          %s5440 = scalar_lea.vmem %s6, %s5439
        $region76: #{ff_network_forward.1} parent=71 // pred_fallthru
          _
      $region72: #{ff_network_forward.1} parent=5 // pred_fallthru
        _
    $region6: #{ff_network_forward.1} parent=1 // loop_footer
      %s19 = sadd.s32 1, %s15
    $region7: #{ff_network_forward.1} parent=1 // loop_footer_branch
      %14 = sbr.rel target = $region3
    $region8: #{ff_network_forward.1} parent=1 // loop_exit
      _
    %5441 = vsyncpa [#allocation3], 1
    %s5442 = scalar_lea.sflag [#allocation3], 1
    %5443 = vsyncpa %s5442, 1
    %5444 = vsyncpa [#allocation5], 1
    %5445 = vsyncpa [#allocation8], 1

</llo_original>
